<compile_context>
chip_gen: v6e
topology: v6e:2x2x1
jax: 0.10.0
libtpu: 0.0.40
codegen_flags: <defaults>
</compile_context>

<pallas_src>
import math
from functools import partial

import jax
import jax.numpy as jnp
from jax.experimental import pallas as pl
from jax.experimental.pallas import tpu as pltpu

RES_DTYPE = jnp.bfloat16       # residual-stream storage (halves recurring HBM traffic)
W_DTYPE = jnp.bfloat16         # weight storage
MXU_DTYPE = jnp.bfloat16       # MXU operand dtype (accumulate in f32)
LN_EPS = 1e-6                  # DINOv2 LayerNorm eps
TM = 256                       # row tile for M-gridded matmul kernels (safe on v5e/v6e/v7x)
VMEM_LIMIT = 48 * 1024 * 1024  # scoped VMEM cap (fits v7x 64 MiB physical with headroom)
NEG_INF = -1e30


def _round_up(a, m):
    return ((a + m - 1) // m) * m


def _pick_tile(dim, pref, align=8):
    """Largest tile <= pref that is a multiple of `align` and divides `dim`
    (falls back to the full dim, which is always a legal block)."""
    if dim <= pref:
        return dim
    t = (pref // align) * align
    while t >= align:
        if dim % t == 0:
            return t
        t -= align
    return dim


def _pad_tokens(n):
    return _round_up(n, 128) if n > 128 else _round_up(n, 8)


def _cparams(sem):
    return pltpu.CompilerParams(dimension_semantics=sem, vmem_limit_bytes=VMEM_LIMIT)


# ----------------------------- matmul kernels ------------------------------

def _linear_kernel(x_ref, w_ref, b_ref, o_ref, *, activation):
    y = jnp.dot(x_ref[...].astype(MXU_DTYPE), w_ref[...].astype(MXU_DTYPE),
                preferred_element_type=jnp.float32) + b_ref[...].astype(jnp.float32)
    if activation == "gelu":
        y = jax.nn.gelu(y, approximate=True)
    o_ref[...] = y.astype(o_ref.dtype)


def linear_rows(x, w, b, activation="none", out_dtype=jnp.float32, tm=TM):
    """y = act(x @ w + b); weight kept whole (VMEM-resident), grid over row tiles only."""
    m, k = x.shape
    n = w.shape[1]
    tm = min(tm, _round_up(m, 8))
    return pl.pallas_call(
        partial(_linear_kernel, activation=activation),
        out_shape=jax.ShapeDtypeStruct((m, n), out_dtype),
        grid=(pl.cdiv(m, tm),),
        in_specs=[pl.BlockSpec((tm, k), lambda i: (i, 0)),
                  pl.BlockSpec((k, n), lambda i: (0, 0)),     # weight resident (constant index)
                  pl.BlockSpec((1, n), lambda i: (0, 0))],
        out_specs=pl.BlockSpec((tm, n), lambda i: (i, 0)),
        compiler_params=_cparams(("parallel",)),
        cost_estimate=pl.CostEstimate(
            flops=int(2 * m * n * k),
            transcendentals=int(m * n if activation == "gelu" else 0),
            bytes_accessed=int(m * k * x.dtype.itemsize + 2 * k * n
                               + m * n * jnp.dtype(out_dtype).itemsize)),
    )(x, w, b.reshape(1, n))


def linear_cols(x, w, b, out_dtype=jnp.float32, tn=256):
    """y = x @ w + b; small activation kept whole, grid over output-column tiles (big heads)."""
    m, k = x.shape
    n = w.shape[1]
    tn = min(tn, n)
    return pl.pallas_call(
        partial(_linear_kernel, activation="none"),
        out_shape=jax.ShapeDtypeStruct((m, n), out_dtype),
        grid=(pl.cdiv(n, tn),),
        in_specs=[pl.BlockSpec((m, k), lambda j: (0, 0)),
                  pl.BlockSpec((k, tn), lambda j: (0, j)),
                  pl.BlockSpec((1, tn), lambda j: (0, j))],
        out_specs=pl.BlockSpec((m, tn), lambda j: (0, j)),
        compiler_params=_cparams(("parallel",)),
        cost_estimate=pl.CostEstimate(
            flops=int(2 * m * n * k), transcendentals=0,
            bytes_accessed=int(m * k * 4 + 2 * k * n + m * n * 4)),
    )(x, w, b.reshape(1, n))


def _ln_linear_kernel(x_ref, g_ref, b_ref, w_ref, bias_ref, o_ref, *, activation):
    # layernorm (f32 stats) fused into the matmul that consumes the normalized activations
    x = x_ref[...].astype(jnp.float32)
    mu = jnp.mean(x, axis=-1, keepdims=True)
    var = jnp.mean(jnp.square(x - mu), axis=-1, keepdims=True)
    xn = (x - mu) * jax.lax.rsqrt(var + LN_EPS)
    xn = xn * g_ref[...].astype(jnp.float32) + b_ref[...].astype(jnp.float32)
    y = jnp.dot(xn.astype(MXU_DTYPE), w_ref[...].astype(MXU_DTYPE),
                preferred_element_type=jnp.float32) + bias_ref[...].astype(jnp.float32)
    if activation == "gelu":
        # TODO(synk): PyTorch nn.GELU defaults to exact erf; tanh approximation used here.
        y = jax.nn.gelu(y, approximate=True)
    o_ref[...] = y.astype(o_ref.dtype)


def ln_linear(x, ln_g, ln_b, w, bias, activation="none", out_dtype=RES_DTYPE, tm=TM):
    """y = act(LayerNorm(x) @ w + bias); K/N whole (weight resident), grid over row tiles."""
    m, k = x.shape
    n = w.shape[1]
    tm = min(tm, _round_up(m, 8))
    return pl.pallas_call(
        partial(_ln_linear_kernel, activation=activation),
        out_shape=jax.ShapeDtypeStruct((m, n), out_dtype),
        grid=(pl.cdiv(m, tm),),
        in_specs=[pl.BlockSpec((tm, k), lambda i: (i, 0)),
                  pl.BlockSpec((1, k), lambda i: (0, 0)),
                  pl.BlockSpec((1, k), lambda i: (0, 0)),
                  pl.BlockSpec((k, n), lambda i: (0, 0)),    # weight resident (constant index)
                  pl.BlockSpec((1, n), lambda i: (0, 0))],
        out_specs=pl.BlockSpec((tm, n), lambda i: (i, 0)),
        compiler_params=_cparams(("parallel",)),
        cost_estimate=pl.CostEstimate(
            flops=int(2 * m * n * k + 10 * m * k),
            transcendentals=int(m * n if activation == "gelu" else 0),
            bytes_accessed=int(m * k * x.dtype.itemsize + 2 * k * n
                               + m * n * jnp.dtype(out_dtype).itemsize)),
    )(x, ln_g.reshape(1, k), ln_b.reshape(1, k), w, bias.reshape(1, n))


def _linear_ls_res_kernel(h_ref, w_ref, b_ref, g_ref, r_ref, o_ref):
    # out = res + gamma * (h @ w + b); residual math in f32, stored in bf16
    y = jnp.dot(h_ref[...].astype(MXU_DTYPE), w_ref[...].astype(MXU_DTYPE),
                preferred_element_type=jnp.float32) + b_ref[...].astype(jnp.float32)
    o_ref[...] = (r_ref[...].astype(jnp.float32)
                  + y * g_ref[...].astype(jnp.float32)).astype(o_ref.dtype)


def linear_ls_residual(h, w, bias, gamma, res, tm=TM):
    """res + gamma * (h @ w + bias); weight VMEM-resident, residual aliased into the output."""
    m, k = h.shape
    n = w.shape[1]
    tm = min(tm, _round_up(m, 8))
    return pl.pallas_call(
        _linear_ls_res_kernel,
        out_shape=jax.ShapeDtypeStruct((m, n), res.dtype),
        grid=(pl.cdiv(m, tm),),
        in_specs=[pl.BlockSpec((tm, k), lambda i: (i, 0)),
                  pl.BlockSpec((k, n), lambda i: (0, 0)),    # weight resident (constant index)
                  pl.BlockSpec((1, n), lambda i: (0, 0)),
                  pl.BlockSpec((1, n), lambda i: (0, 0)),
                  pl.BlockSpec((tm, n), lambda i: (i, 0))],
        out_specs=pl.BlockSpec((tm, n), lambda i: (i, 0)),
        compiler_params=_cparams(("parallel",)),
        input_output_aliases={4: 0},   # residual stream aliased -> no extra HBM pass
        cost_estimate=pl.CostEstimate(
            flops=int(2 * m * n * k), transcendentals=0,
            bytes_accessed=int(m * k * h.dtype.itemsize + 2 * k * n
                               + 2 * m * n * res.dtype.itemsize)),
    )(h, w, bias.reshape(1, n), gamma.reshape(1, n), res)


# ----------------------------- attention kernels ----------------------------

def _flash_attn_kernel(q_ref, k_ref, v_ref, o_ref, m_ref, l_ref, acc_ref,
                       *, hg, dh, scale, n_real, tkv):
    kv = pl.program_id(2)

    @pl.when(kv == 0)
    def _():
        m_ref[...] = jnp.full_like(m_ref, NEG_INF)
        l_ref[...] = jnp.zeros_like(l_ref)
        acc_ref[...] = jnp.zeros_like(acc_ref)

    q_all = q_ref[0]          # (N_pad, hg*dh) bf16
    k_all = k_ref[0]          # (tkv,   hg*dh) bf16
    v_all = v_ref[0]

    n_pad = q_all.shape[0]
    if n_real < n_pad:        # mask padded key tokens (static check)
        col = kv * tkv + jax.lax.broadcasted_iota(jnp.int32, (1, tkv), 1)
        valid = col < n_real
    else:
        valid = None

    for h in range(hg):
        sl = slice(h * dh, (h + 1) * dh)
        q = q_all[:, sl]
        k = k_all[:, sl]
        v = v_all[:, sl]
        s = jax.lax.dot_general(q, k, (((1,), (1,)), ((), ())),
                                preferred_element_type=jnp.float32) * scale
        if valid is not None:
            s = jnp.where(valid, s, NEG_INF)
        m_prev = m_ref[h]
        m_new = jnp.maximum(m_prev, jnp.max(s, axis=-1, keepdims=True))
        alpha = jnp.exp(m_prev - m_new)
        p = jnp.exp(s - m_new)
        if valid is not None:
            p = jnp.where(valid, p, 0.0)
        l_ref[h] = alpha * l_ref[h] + jnp.sum(p, axis=-1, keepdims=True)
        acc_ref[h] = alpha * acc_ref[h] + jnp.dot(p.astype(v.dtype), v,
                                                  preferred_element_type=jnp.float32)
        m_ref[h] = m_new

    @pl.when(kv == pl.num_programs(2) - 1)
    def _():
        outs = [acc_ref[h] * pl.reciprocal(l_ref[h], approx=True) for h in range(hg)]
        o_ref[0] = jnp.concatenate(outs, axis=-1).astype(o_ref.dtype)


def _attention_small_kernel(qkv_ref, o_ref, *, nh, dh, scale, n_real):
    # Fallback for tiny head dims that cannot form 128-lane head groups.
    qkv = qkv_ref[0].astype(jnp.float32)          # (N_pad, 3D)
    d = nh * dh
    n_pad = qkv.shape[0]
    if n_real < n_pad:
        col = jax.lax.broadcasted_iota(jnp.int32, (1, n_pad), 1)
        valid = col < n_real
    else:
        valid = None
    outs = []
    for h in range(nh):
        q = qkv[:, h * dh:(h + 1) * dh]
        k = qkv[:, d + h * dh:d + (h + 1) * dh]
        v = qkv[:, 2 * d + h * dh:2 * d + (h + 1) * dh]
        s = jax.lax.dot_general(q.astype(MXU_DTYPE), k.astype(MXU_DTYPE),
                                (((1,), (1,)), ((), ())),
                                preferred_element_type=jnp.float32) * scale
        if valid is not None:
            s = jnp.where(valid, s, NEG_INF)
        s = s - jnp.max(s, axis=-1, keepdims=True)
        p = jnp.exp(s)
        if valid is not None:
            p = jnp.where(valid, p, 0.0)
        l = jnp.sum(p, axis=-1, keepdims=True)
        o = jnp.dot(p.astype(MXU_DTYPE), v.astype(MXU_DTYPE),
                    preferred_element_type=jnp.float32)
        outs.append(o * pl.reciprocal(l, approx=True))
    o_ref[0] = jnp.concatenate(outs, axis=-1).astype(o_ref.dtype)


def _attention_small(qkv, nh, dh, scale, n_real, out_dtype):
    # TODO(synk): used only when head groups cannot be 128-lane aligned (toy dims);
    # production DINOv2 shapes (dh=64, D % 128 == 0) always take the flash path.
    b, n_pad, three_d = qkv.shape
    d = nh * dh
    return pl.pallas_call(
        partial(_attention_small_kernel, nh=nh, dh=dh, scale=scale, n_real=n_real),
        out_shape=jax.ShapeDtypeStruct((b, n_pad, d), out_dtype),
        grid=(b,),
        in_specs=[pl.BlockSpec((1, n_pad, three_d), lambda i: (i, 0, 0))],
        out_specs=pl.BlockSpec((1, n_pad, d), lambda i: (i, 0, 0)),
        compiler_params=_cparams(("parallel",)),
    )(qkv)


def flash_attention(qkv, nh, dh, scale, n_real, out_dtype=RES_DTYPE):
    """Flash attention over the fused (B, N_pad, 3D) qkv tensor.

    The same qkv array is passed three times with different BlockSpecs (q / k / v views),
    so no HBM reshape/transpose is needed.  Heads are processed in 128-lane groups
    (2 heads when dh=64); the kv dimension is tiled with an online softmax.
    """
    b, n_pad, _ = qkv.shape
    d = nh * dh
    if dh < 128 and 128 % dh == 0 and nh % max(1, 128 // dh) == 0:
        hg = 128 // dh
    else:
        hg = nh
    gw = hg * dh
    if gw % 128 != 0:
        return _attention_small(qkv, nh, dh, scale, n_real, out_dtype)

    n_groups = d // gw
    tkv = _pick_tile(n_pad, 512, 8)
    n_kv = n_pad // tkv
    return pl.pallas_call(
        partial(_flash_attn_kernel, hg=hg, dh=dh, scale=scale, n_real=n_real, tkv=tkv),
        out_shape=jax.ShapeDtypeStruct((b, n_pad, d), out_dtype),
        grid=(b, n_groups, n_kv),
        in_specs=[
            pl.BlockSpec((1, n_pad, gw), lambda bi, g, kv: (bi, 0, g)),                 # Q view
            pl.BlockSpec((1, tkv, gw), lambda bi, g, kv: (bi, kv, n_groups + g)),       # K view
            pl.BlockSpec((1, tkv, gw), lambda bi, g, kv: (bi, kv, 2 * n_groups + g)),   # V view
        ],
        out_specs=pl.BlockSpec((1, n_pad, gw), lambda bi, g, kv: (bi, 0, g)),
        scratch_shapes=[pltpu.VMEM((hg, n_pad, 1), jnp.float32),
                        pltpu.VMEM((hg, n_pad, 1), jnp.float32),
                        pltpu.VMEM((hg, n_pad, dh), jnp.float32)],
        compiler_params=_cparams(("parallel", "parallel", "arbitrary")),
        cost_estimate=pl.CostEstimate(
            flops=int(4 * b * n_pad * n_pad * d),
            transcendentals=int(b * nh * n_pad * n_pad),
            bytes_accessed=int(4 * b * n_pad * d * qkv.dtype.itemsize)),
    )(qkv, qkv, qkv)


# ------------------------- final norm + pool kernel -------------------------

def _ln_pool_kernel(x_ref, g_ref, b_ref, o_ref, *, n_real, mode):
    x = x_ref[0].astype(jnp.float32)              # (N_pad, D)
    mu = jnp.mean(x, axis=-1, keepdims=True)
    var = jnp.mean(jnp.square(x - mu), axis=-1, keepdims=True)
    xn = (x - mu) * jax.lax.rsqrt(var + LN_EPS)
    xn = xn * g_ref[...].astype(jnp.float32) + b_ref[...].astype(jnp.float32)
    cls_tok = xn[0:1, :]                           # (1, D)
    row = jax.lax.broadcasted_iota(jnp.int32, (xn.shape[0], 1), 0)
    is_patch = (row >= 1) & (row < n_real)         # exclude cls + padded tokens
    patch_mean = jnp.sum(jnp.where(is_patch, xn, 0.0), axis=0, keepdims=True) \
        * (1.0 / (n_real - 1))
    if mode == "patch":
        pooled = patch_mean
    elif mode == "cls":
        pooled = cls_tok
    else:  # 'both'
        pooled = jnp.concatenate([patch_mean, cls_tok], axis=-1)
    o_ref[0] = pooled.astype(o_ref.dtype)


def ln_pool(x_seq, norm_g, norm_b, n_real, mode):
    b, n_pad, d = x_seq.shape
    f = 2 * d if mode == "both" else d
    out = pl.pallas_call(
        partial(_ln_pool_kernel, n_real=n_real, mode=mode),
        out_shape=jax.ShapeDtypeStruct((b, 1, f), jnp.float32),
        grid=(b,),
        in_specs=[pl.BlockSpec((1, n_pad, d), lambda i: (i, 0, 0)),
                  pl.BlockSpec((1, d), lambda i: (0, 0)),
                  pl.BlockSpec((1, d), lambda i: (0, 0))],
        out_specs=pl.BlockSpec((1, 1, f), lambda i: (i, 0, 0)),
        compiler_params=_cparams(("parallel",)),
    )(x_seq, norm_g.reshape(1, d), norm_b.reshape(1, d))
    return out.reshape(b, f)


# ------------------------------- model glue --------------------------------

def dinov2_vit_forward(x, params, cfg):
    bp = params["backbone"]
    B, C, H, W = x.shape
    p = cfg["patch"]
    D = cfg["embed_dim"]
    nh = cfg["num_heads"]
    ph, pw = H // p, W // p
    dh = D // nh
    scale = 1.0 / math.sqrt(dh)

    # patch embed: Conv2d(C, D, kernel=p, stride=p) == unfold + matmul
    patches = (x.reshape(B, C, ph, p, pw, p)
                .transpose(0, 2, 4, 1, 3, 5)
                .reshape(B * ph * pw, C * p * p))
    tok = linear_rows(patches, bp["patch_w"], bp["patch_b"],
                      out_dtype=jnp.float32).reshape(B, ph * pw, D)

    cls = jnp.broadcast_to(bp["cls_token"], (B, 1, D)).astype(jnp.float32)
    xt = jnp.concatenate([cls, tok], axis=1) + bp["pos_embed"]
    N = xt.shape[1]                       # real token count (cls + patches)
    n_pad = _pad_tokens(N)                # zero-pad tokens once so every kernel tiles cleanly
    xt = jnp.pad(xt, ((0, 0), (0, n_pad - N), (0, 0)))
    x2 = xt.reshape(B * n_pad, D).astype(RES_DTYPE)   # bf16 residual stream

    # TODO(synk): cross-call weight prefetch (layer i+1 weights DMA'd while layer i computes)
    # would need the semaphore/VMEM-future pattern; not implemented here.
    for blk in bp["blocks"]:
        # attention branch: LN+qkv fused, flash attention, proj+LS+residual fused
        qkv = ln_linear(x2, blk["norm1_w"], blk["norm1_b"], blk["qkv_w"], blk["qkv_b"],
                        out_dtype=jnp.bfloat16)
        ao = flash_attention(qkv.reshape(B, n_pad, 3 * D), nh, dh, scale, n_real=N)
        x2 = linear_ls_residual(ao.reshape(B * n_pad, D), blk["proj_w"], blk["proj_b"],
                                blk["ls1_gamma"], x2)
        # mlp branch: LN+fc1(gelu) fused, fc2+LS+residual fused
        m = ln_linear(x2, blk["norm2_w"], blk["norm2_b"], blk["fc1_w"], blk["fc1_b"],
                      activation="gelu", out_dtype=jnp.bfloat16)
        x2 = linear_ls_residual(m, blk["fc2_w"], blk["fc2_b"], blk["ls2_gamma"], x2)

    pooled = ln_pool(x2.reshape(B, n_pad, D), bp["norm_w"], bp["norm_b"],
                     n_real=N, mode=cfg["forward_patches"])
    # TODO(synk): ClassificationHead internals not specified; implemented as a single Linear
    # (n_classification_heads == 1; drop_path is identity at inference).
    logits = linear_cols(pooled, params["head_w"], params["head_b"])
    return logits[:, :cfg["num_classes"]]


# ----------------------------- parameter init ------------------------------

def init_params(key, cfg):
    D, C, p = cfg["embed_dim"], cfg["in_chans"], cfg["patch"]
    hidden = D * cfg["mlp_ratio"]
    n_patches = (cfg["img"] // p) ** 2
    keys = iter(jax.random.split(key, 16 + 16 * cfg["depth"]))

    def nrm(shape, std=0.02, dtype=W_DTYPE):
        return (std * jax.random.normal(next(keys), shape)).astype(dtype)

    backbone = {
        "patch_w": nrm((C * p * p, D)),
        "patch_b": jnp.zeros((D,), jnp.float32),
        "cls_token": nrm((1, 1, D), dtype=jnp.float32),
        "pos_embed": nrm((1, 1 + n_patches, D), dtype=jnp.float32),
        "norm_w": jnp.ones((D,), jnp.float32),
        "norm_b": jnp.zeros((D,), jnp.float32),
        "blocks": [],
    }
    for _ in range(cfg["depth"]):
        backbone["blocks"].append({
            "norm1_w": jnp.ones((D,), jnp.float32), "norm1_b": jnp.zeros((D,), jnp.float32),
            "qkv_w": nrm((D, 3 * D)), "qkv_b": jnp.zeros((3 * D,), jnp.float32),
            "proj_w": nrm((D, D)), "proj_b": jnp.zeros((D,), jnp.float32),
            "ls1_gamma": jnp.full((D,), 1e-5, jnp.float32),
            "norm2_w": jnp.ones((D,), jnp.float32), "norm2_b": jnp.zeros((D,), jnp.float32),
            "fc1_w": nrm((D, hidden)), "fc1_b": jnp.zeros((hidden,), jnp.float32),
            "fc2_w": nrm((hidden, D)), "fc2_b": jnp.zeros((D,), jnp.float32),
            "ls2_gamma": jnp.full((D,), 1e-5, jnp.float32),
        })

    in_features = 2 * D if cfg["forward_patches"] == "both" else D
    n_cls = cfg["num_classes"]
    c_pad = _round_up(n_cls, 128)  # lane-pad the head once at init (not every forward)
    head_w = jnp.pad(nrm((in_features, n_cls)), ((0, 0), (0, c_pad - n_cls)))
    head_b = jnp.pad(jnp.zeros((n_cls,), jnp.float32), ((0, c_pad - n_cls),))
    return {"backbone": backbone, "head_w": head_w, "head_b": head_b}


# ---------------------------------- main ------------------------------------

if __name__ == "__main__":
    # Small config chosen so the main (flash-attention, 128-lane head-group) path is exercised:
    # D=128, nh=2 -> dh=64, one head group; N=5 tokens padded to 8.
    cfg = dict(
        img=16, patch=8, in_chans=3,
        embed_dim=128, depth=2, num_heads=2, mlp_ratio=4,
        num_classes=10, forward_patches="both",
    )
    key = jax.random.PRNGKey(0)
    params = init_params(key, cfg)
    x = jax.random.normal(jax.random.fold_in(key, 999),
                          (2, cfg["in_chans"], cfg["img"], cfg["img"]), jnp.float32)

    fwd = jax.jit(lambda xx, pp: dinov2_vit_forward(xx, pp, cfg))
    logits = fwd(x, params)
    jax.block_until_ready(logits)
    assert logits.shape == (2, cfg["num_classes"])
    assert bool(jnp.all(jnp.isfinite(logits)))
    print("KERNEL_OK")
</pallas_src>

<mosaic_0001>
module attributes {stable_mosaic.version = 11 : i64} {
  func.func @_linear_kernel(%arg0: i32, %arg1: memref<8x192xf32, #tpu.memory_space<vmem>>, %arg2: memref<192x128xbf16, #tpu.memory_space<vmem>>, %arg3: memref<1x128xf32, #tpu.memory_space<vmem>>, %arg4: memref<8x128xf32, #tpu.memory_space<vmem>>) attributes {dimension_semantics = [#tpu.dimension_semantics<parallel>], iteration_bounds = array<i64: 1>, scalar_prefetch = 0 : i64, scratch_operands = 0 : i64, tpu.core_type = #tpu.core_type<tc>, window_params = [{transform_indices = @transform_0, window_bounds = array<i64: 8, 192>}, {pipeline_mode = #tpu.pipeline_mode<synchronous>, transform_indices = @transform_1, window_bounds = array<i64: 192, 128>}, {pipeline_mode = #tpu.pipeline_mode<synchronous>, transform_indices = @transform_2, window_bounds = array<i64: 1, 128>}, {transform_indices = @transform_3, window_bounds = array<i64: 8, 128>}]} {
    %c0 = arith.constant 0 : index
    %c0_0 = arith.constant 0 : index
    %0 = vector.load %arg1[%c0, %c0_0] : memref<8x192xf32, #tpu.memory_space<vmem>>, vector<8x192xf32>
    %1 = arith.truncf %0 : vector<8x192xf32> to vector<8x192xbf16>
    %c0_1 = arith.constant 0 : index
    %c0_2 = arith.constant 0 : index
    %2 = vector.load %arg2[%c0_1, %c0_2] : memref<192x128xbf16, #tpu.memory_space<vmem>>, vector<192x128xbf16>
    %cst = arith.constant dense<0.000000e+00> : vector<8x128xf32>
    %3 = tpu.matmul %1, %2, %cst {dimension_numbers = #tpu.dot_dimension_numbers<[1], [0], [0], [1], [0, 0, 1, 1], [], []>} : vector<8x192xbf16>, vector<192x128xbf16>, vector<8x128xf32> -> vector<8x128xf32>
    %c0_3 = arith.constant 0 : index
    %c0_4 = arith.constant 0 : index
    %4 = vector.load %arg3[%c0_3, %c0_4] : memref<1x128xf32, #tpu.memory_space<vmem>>, vector<1x128xf32>
    %5 = vector.broadcast %4 : vector<1x128xf32> to vector<8x128xf32>
    %6 = arith.addf %3, %5 : vector<8x128xf32>
    %c0_5 = arith.constant 0 : index
    %c0_6 = arith.constant 0 : index
    %7 = vector.load %arg4[%c0_5, %c0_6] : memref<8x128xf32, #tpu.memory_space<vmem>>, vector<8x128xf32>
    tpu.vector_store %arg4[%c0_5, %c0_6], %6 {strides = array<i32>} : memref<8x128xf32, #tpu.memory_space<vmem>>, vector<8x128xf32>,
    return
  }
  func.func @transform_0(%arg0: i32) -> (i32, i32) {
    %c0_i32 = arith.constant 0 : i32
    %c0_i32_0 = arith.constant 0 : i32
    return %arg0, %c0_i32 : i32, i32
  }
  func.func @transform_1(%arg0: i32) -> (i32, i32) {
    %c0_i32 = arith.constant 0 : i32
    %c0_i32_0 = arith.constant 0 : i32
    %c0_i32_1 = arith.constant 0 : i32
    return %c0_i32, %c0_i32_0 : i32, i32
  }
  func.func @transform_2(%arg0: i32) -> (i32, i32) {
    %c0_i32 = arith.constant 0 : i32
    %c0_i32_0 = arith.constant 0 : i32
    %c0_i32_1 = arith.constant 0 : i32
    return %c0_i32, %c0_i32_0 : i32, i32
  }
  func.func @transform_3(%arg0: i32) -> (i32, i32) {
    %c0_i32 = arith.constant 0 : i32
    %c0_i32_0 = arith.constant 0 : i32
    return %arg0, %c0_i32 : i32, i32
  }
}

module attributes {stable_mosaic.version = 11 : i64} {
  func.func @_linear_ls_res_kernel(%arg0: i32, %arg1: memref<16x128xbf16, #tpu.memory_space<vmem>>, %arg2: memref<128x128xbf16, #tpu.memory_space<vmem>>, %arg3: memref<1x128xf32, #tpu.memory_space<vmem>>, %arg4: memref<1x128xf32, #tpu.memory_space<vmem>>, %arg5: memref<16x128xbf16, #tpu.memory_space<vmem>>, %arg6: memref<16x128xbf16, #tpu.memory_space<vmem>>) attributes {dimension_semantics = [#tpu.dimension_semantics<parallel>], iteration_bounds = array<i64: 1>, scalar_prefetch = 0 : i64, scratch_operands = 0 : i64, tpu.core_type = #tpu.core_type<tc>, window_params = [{transform_indices = @transform_0, window_bounds = array<i64: 16, 128>}, {pipeline_mode = #tpu.pipeline_mode<synchronous>, transform_indices = @transform_1, window_bounds = array<i64: 128, 128>}, {pipeline_mode = #tpu.pipeline_mode<synchronous>, transform_indices = @transform_2, window_bounds = array<i64: 1, 128>}, {pipeline_mode = #tpu.pipeline_mode<synchronous>, transform_indices = @transform_3, window_bounds = array<i64: 1, 128>}, {transform_indices = @transform_4, window_bounds = array<i64: 16, 128>}, {transform_indices = @transform_5, window_bounds = array<i64: 16, 128>}]} {
    %c0 = arith.constant 0 : index
    %c0_0 = arith.constant 0 : index
    %0 = vector.load %arg1[%c0, %c0_0] : memref<16x128xbf16, #tpu.memory_space<vmem>>, vector<16x128xbf16>
    %c0_1 = arith.constant 0 : index
    %c0_2 = arith.constant 0 : index
    %1 = vector.load %arg2[%c0_1, %c0_2] : memref<128x128xbf16, #tpu.memory_space<vmem>>, vector<128x128xbf16>
    %cst = arith.constant dense<0.000000e+00> : vector<16x128xf32>
    %2 = tpu.matmul %0, %1, %cst {dimension_numbers = #tpu.dot_dimension_numbers<[1], [0], [0], [1], [0, 0, 1, 1], [], []>} : vector<16x128xbf16>, vector<128x128xbf16>, vector<16x128xf32> -> vector<16x128xf32>
    %c0_3 = arith.constant 0 : index
    %c0_4 = arith.constant 0 : index
    %3 = vector.load %arg3[%c0_3, %c0_4] : memref<1x128xf32, #tpu.memory_space<vmem>>, vector<1x128xf32>
    %4 = vector.broadcast %3 : vector<1x128xf32> to vector<16x128xf32>
    %5 = arith.addf %2, %4 : vector<16x128xf32>
    %c0_5 = arith.constant 0 : index
    %c0_6 = arith.constant 0 : index
    %6 = vector.load %arg5[%c0_5, %c0_6] : memref<16x128xbf16, #tpu.memory_space<vmem>>, vector<16x128xbf16>
    %7 = arith.extf %6 : vector<16x128xbf16> to vector<16x128xf32>
    %c0_7 = arith.constant 0 : index
    %c0_8 = arith.constant 0 : index
    %8 = vector.load %arg4[%c0_7, %c0_8] : memref<1x128xf32, #tpu.memory_space<vmem>>, vector<1x128xf32>
    %9 = vector.broadcast %8 : vector<1x128xf32> to vector<16x128xf32>
    %10 = arith.mulf %5, %9 : vector<16x128xf32>
    %11 = arith.addf %7, %10 : vector<16x128xf32>
    %12 = arith.truncf %11 : vector<16x128xf32> to vector<16x128xbf16>
    %c0_9 = arith.constant 0 : index
    %c0_10 = arith.constant 0 : index
    %13 = vector.load %arg6[%c0_9, %c0_10] : memref<16x128xbf16, #tpu.memory_space<vmem>>, vector<16x128xbf16>
    tpu.vector_store %arg6[%c0_9, %c0_10], %12 {strides = array<i32>} : memref<16x128xbf16, #tpu.memory_space<vmem>>, vector<16x128xbf16>,
    return
  }
  func.func @transform_0(%arg0: i32) -> (i32, i32) {
    %c0_i32 = arith.constant 0 : i32
    %c0_i32_0 = arith.constant 0 : i32
    return %arg0, %c0_i32 : i32, i32
  }
  func.func @transform_1(%arg0: i32) -> (i32, i32) {
    %c0_i32 = arith.constant 0 : i32
    %c0_i32_0 = arith.constant 0 : i32
    %c0_i32_1 = arith.constant 0 : i32
    return %c0_i32, %c0_i32_0 : i32, i32
  }
  func.func @transform_2(%arg0: i32) -> (i32, i32) {
    %c0_i32 = arith.constant 0 : i32
    %c0_i32_0 = arith.constant 0 : i32
    %c0_i32_1 = arith.constant 0 : i32
    return %c0_i32, %c0_i32_0 : i32, i32
  }
  func.func @transform_3(%arg0: i32) -> (i32, i32) {
    %c0_i32 = arith.constant 0 : i32
    %c0_i32_0 = arith.constant 0 : i32
    %c0_i32_1 = arith.constant 0 : i32
    return %c0_i32, %c0_i32_0 : i32, i32
  }
  func.func @transform_4(%arg0: i32) -> (i32, i32) {
    %c0_i32 = arith.constant 0 : i32
    %c0_i32_0 = arith.constant 0 : i32
    return %arg0, %c0_i32 : i32, i32
  }
  func.func @transform_5(%arg0: i32) -> (i32, i32) {
    %c0_i32 = arith.constant 0 : i32
    %c0_i32_0 = arith.constant 0 : i32
    return %arg0, %c0_i32 : i32, i32
  }
}

module attributes {stable_mosaic.version = 11 : i64} {
  func.func @_ln_linear_kernel(%arg0: i32, %arg1: memref<16x128xbf16, #tpu.memory_space<vmem>>, %arg2: memref<1x128xf32, #tpu.memory_space<vmem>>, %arg3: memref<1x128xf32, #tpu.memory_space<vmem>>, %arg4: memref<128x384xbf16, #tpu.memory_space<vmem>>, %arg5: memref<1x384xf32, #tpu.memory_space<vmem>>, %arg6: memref<16x384xbf16, #tpu.memory_space<vmem>>) attributes {dimension_semantics = [#tpu.dimension_semantics<parallel>], iteration_bounds = array<i64: 1>, scalar_prefetch = 0 : i64, scratch_operands = 0 : i64, tpu.core_type = #tpu.core_type<tc>, window_params = [{transform_indices = @transform_0, window_bounds = array<i64: 16, 128>}, {pipeline_mode = #tpu.pipeline_mode<synchronous>, transform_indices = @transform_1, window_bounds = array<i64: 1, 128>}, {pipeline_mode = #tpu.pipeline_mode<synchronous>, transform_indices = @transform_2, window_bounds = array<i64: 1, 128>}, {pipeline_mode = #tpu.pipeline_mode<synchronous>, transform_indices = @transform_3, window_bounds = array<i64: 128, 384>}, {pipeline_mode = #tpu.pipeline_mode<synchronous>, transform_indices = @transform_4, window_bounds = array<i64: 1, 384>}, {transform_indices = @transform_5, window_bounds = array<i64: 16, 384>}]} {
    %c0 = arith.constant 0 : index
    %c0_0 = arith.constant 0 : index
    %0 = vector.load %arg1[%c0, %c0_0] : memref<16x128xbf16, #tpu.memory_space<vmem>>, vector<16x128xbf16>
    %1 = arith.extf %0 : vector<16x128xbf16> to vector<16x128xf32>
    %cst = arith.constant dense<0.000000e+00> : vector<16xf32>
    %2 = vector.multi_reduction <add>, %1, %cst [1] : vector<16x128xf32> to vector<16xf32>
    %3 = vector.shape_cast %2 : vector<16xf32> to vector<16x1xf32>
    %cst_1 = arith.constant 1.280000e+02 : f32
    %4 = vector.broadcast %cst_1 : f32 to vector<16x1xf32>
    %5 = arith.divf %3, %4 : vector<16x1xf32>
    %6 = vector.broadcast %5 : vector<16x1xf32> to vector<16x128xf32>
    %7 = arith.subf %1, %6 : vector<16x128xf32>
    %8 = arith.mulf %7, %7 : vector<16x128xf32>
    %cst_2 = arith.constant dense<0.000000e+00> : vector<16xf32>
    %9 = vector.multi_reduction <add>, %8, %cst_2 [1] : vector<16x128xf32> to vector<16xf32>
    %10 = vector.shape_cast %9 : vector<16xf32> to vector<16x1xf32>
    %cst_3 = arith.constant 1.280000e+02 : f32
    %11 = vector.broadcast %cst_3 : f32 to vector<16x1xf32>
    %12 = arith.divf %10, %11 : vector<16x1xf32>
    %13 = vector.broadcast %5 : vector<16x1xf32> to vector<16x128xf32>
    %14 = arith.subf %1, %13 : vector<16x128xf32>
    %cst_4 = arith.constant 9.99999997E-7 : f32
    %15 = vector.broadcast %cst_4 : f32 to vector<16x1xf32>
    %16 = arith.addf %12, %15 : vector<16x1xf32>
    %17 = math.rsqrt %16 : vector<16x1xf32>
    %18 = vector.broadcast %17 : vector<16x1xf32> to vector<16x128xf32>
    %19 = arith.mulf %14, %18 : vector<16x128xf32>
    %c0_5 = arith.constant 0 : index
    %c0_6 = arith.constant 0 : index
    %20 = vector.load %arg2[%c0_5, %c0_6] : memref<1x128xf32, #tpu.memory_space<vmem>>, vector<1x128xf32>
    %21 = vector.broadcast %20 : vector<1x128xf32> to vector<16x128xf32>
    %22 = arith.mulf %19, %21 : vector<16x128xf32>
    %c0_7 = arith.constant 0 : index
    %c0_8 = arith.constant 0 : index
    %23 = vector.load %arg3[%c0_7, %c0_8] : memref<1x128xf32, #tpu.memory_space<vmem>>, vector<1x128xf32>
    %24 = vector.broadcast %23 : vector<1x128xf32> to vector<16x128xf32>
    %25 = arith.addf %22, %24 : vector<16x128xf32>
    %26 = arith.truncf %25 : vector<16x128xf32> to vector<16x128xbf16>
    %c0_9 = arith.constant 0 : index
    %c0_10 = arith.constant 0 : index
    %27 = vector.load %arg4[%c0_9, %c0_10] : memref<128x384xbf16, #tpu.memory_space<vmem>>, vector<128x384xbf16>
    %cst_11 = arith.constant dense<0.000000e+00> : vector<16x384xf32>
    %28 = tpu.matmul %26, %27, %cst_11 {dimension_numbers = #tpu.dot_dimension_numbers<[1], [0], [0], [1], [0, 0, 1, 1], [], []>} : vector<16x128xbf16>, vector<128x384xbf16>, vector<16x384xf32> -> vector<16x384xf32>
    %c0_12 = arith.constant 0 : index
    %c0_13 = arith.constant 0 : index
    %29 = vector.load %arg5[%c0_12, %c0_13] : memref<1x384xf32, #tpu.memory_space<vmem>>, vector<1x384xf32>
    %30 = vector.broadcast %29 : vector<1x384xf32> to vector<16x384xf32>
    %31 = arith.addf %28, %30 : vector<16x384xf32>
    %32 = arith.truncf %31 : vector<16x384xf32> to vector<16x384xbf16>
    %c0_14 = arith.constant 0 : index
    %c0_15 = arith.constant 0 : index
    %33 = vector.load %arg6[%c0_14, %c0_15] : memref<16x384xbf16, #tpu.memory_space<vmem>>, vector<16x384xbf16>
    tpu.vector_store %arg6[%c0_14, %c0_15], %32 {strides = array<i32>} : memref<16x384xbf16, #tpu.memory_space<vmem>>, vector<16x384xbf16>,
    return
  }
  func.func @transform_0(%arg0: i32) -> (i32, i32) {
    %c0_i32 = arith.constant 0 : i32
    %c0_i32_0 = arith.constant 0 : i32
    return %arg0, %c0_i32 : i32, i32
  }
  func.func @transform_1(%arg0: i32) -> (i32, i32) {
    %c0_i32 = arith.constant 0 : i32
    %c0_i32_0 = arith.constant 0 : i32
    %c0_i32_1 = arith.constant 0 : i32
    return %c0_i32, %c0_i32_0 : i32, i32
  }
  func.func @transform_2(%arg0: i32) -> (i32, i32) {
    %c0_i32 = arith.constant 0 : i32
    %c0_i32_0 = arith.constant 0 : i32
    %c0_i32_1 = arith.constant 0 : i32
    return %c0_i32, %c0_i32_0 : i32, i32
  }
  func.func @transform_3(%arg0: i32) -> (i32, i32) {
    %c0_i32 = arith.constant 0 : i32
    %c0_i32_0 = arith.constant 0 : i32
    %c0_i32_1 = arith.constant 0 : i32
    return %c0_i32, %c0_i32_0 : i32, i32
  }
  func.func @transform_4(%arg0: i32) -> (i32, i32) {
    %c0_i32 = arith.constant 0 : i32
    %c0_i32_0 = arith.constant 0 : i32
    %c0_i32_1 = arith.constant 0 : i32
    return %c0_i32, %c0_i32_0 : i32, i32
  }
  func.func @transform_5(%arg0: i32) -> (i32, i32) {
    %c0_i32 = arith.constant 0 : i32
    %c0_i32_0 = arith.constant 0 : i32
    return %arg0, %c0_i32 : i32, i32
  }
}

module attributes {stable_mosaic.version = 11 : i64} {
  func.func @_flash_attn_kernel(%arg0: i32, %arg1: i32, %arg2: i32, %arg3: memref<1x8x128xbf16, #tpu.memory_space<vmem>>, %arg4: memref<1x8x128xbf16, #tpu.memory_space<vmem>>, %arg5: memref<1x8x128xbf16, #tpu.memory_space<vmem>>, %arg6: memref<1x8x128xbf16, #tpu.memory_space<vmem>>, %arg7: memref<2x8x1xf32, #tpu.memory_space<vmem>>, %arg8: memref<2x8x1xf32, #tpu.memory_space<vmem>>, %arg9: memref<2x8x64xf32, #tpu.memory_space<vmem>>) attributes {dimension_semantics = [#tpu.dimension_semantics<parallel>, #tpu.dimension_semantics<parallel>, #tpu.dimension_semantics<arbitrary>], iteration_bounds = array<i64: 2, 1, 1>, scalar_prefetch = 0 : i64, scratch_operands = 3 : i64, tpu.core_type = #tpu.core_type<tc>, window_params = [{transform_indices = @transform_0, window_bounds = array<i64: 1, 8, 128>}, {transform_indices = @transform_1, window_bounds = array<i64: 1, 8, 128>}, {transform_indices = @transform_2, window_bounds = array<i64: 1, 8, 128>}, {transform_indices = @transform_3, window_bounds = array<i64: 1, 8, 128>}]} {
    %c0_i32 = arith.constant 0 : i32
    %0 = arith.cmpi eq, %arg2, %c0_i32 : i32
    %1 = arith.extui %0 : i1 to i32
    %c0_i32_0 = arith.constant 0 : i32
    %2 = arith.cmpi ne, %1, %c0_i32_0 : i32
    scf.if %2 {
      %cst_59 = arith.constant -1.000000e+30 : f32
      %110 = vector.broadcast %cst_59 : f32 to vector<2x8x1xf32>
      %c0_60 = arith.constant 0 : index
      %c0_61 = arith.constant 0 : index
      %c0_62 = arith.constant 0 : index
      %111 = vector.load %arg7[%c0_60, %c0_61, %c0_62] : memref<2x8x1xf32, #tpu.memory_space<vmem>>, vector<2x8x1xf32>
      tpu.vector_store %arg7[%c0_60, %c0_61, %c0_62], %110 {strides = array<i32>} : memref<2x8x1xf32, #tpu.memory_space<vmem>>, vector<2x8x1xf32>,
      %cst_63 = arith.constant 0.000000e+00 : f32
      %112 = vector.broadcast %cst_63 : f32 to vector<2x8x1xf32>
      %c0_64 = arith.constant 0 : index
      %c0_65 = arith.constant 0 : index
      %c0_66 = arith.constant 0 : index
      %113 = vector.load %arg8[%c0_64, %c0_65, %c0_66] : memref<2x8x1xf32, #tpu.memory_space<vmem>>, vector<2x8x1xf32>
      tpu.vector_store %arg8[%c0_64, %c0_65, %c0_66], %112 {strides = array<i32>} : memref<2x8x1xf32, #tpu.memory_space<vmem>>, vector<2x8x1xf32>,
      %cst_67 = arith.constant 0.000000e+00 : f32
      %114 = vector.broadcast %cst_67 : f32 to vector<2x8x64xf32>
      %c0_68 = arith.constant 0 : index
      %c0_69 = arith.constant 0 : index
      %c0_70 = arith.constant 0 : index
      %115 = vector.load %arg9[%c0_68, %c0_69, %c0_70] : memref<2x8x64xf32, #tpu.memory_space<vmem>>, vector<2x8x64xf32>
      tpu.vector_store %arg9[%c0_68, %c0_69, %c0_70], %114 {strides = array<i32>} : memref<2x8x64xf32, #tpu.memory_space<vmem>>, vector<2x8x64xf32>,
    } else {
    }
    %c0 = arith.constant 0 : index
    %c0_1 = arith.constant 0 : index
    %c0_2 = arith.constant 0 : index
    %3 = vector.load %arg3[%c0, %c0_1, %c0_2] : memref<1x8x128xbf16, #tpu.memory_space<vmem>>, vector<1x8x128xbf16>
    %4 = vector.shape_cast %3 : vector<1x8x128xbf16> to vector<8x128xbf16>
    %c0_3 = arith.constant 0 : index
    %c0_4 = arith.constant 0 : index
    %c0_5 = arith.constant 0 : index
    %5 = vector.load %arg4[%c0_3, %c0_4, %c0_5] : memref<1x8x128xbf16, #tpu.memory_space<vmem>>, vector<1x8x128xbf16>
    %6 = vector.shape_cast %5 : vector<1x8x128xbf16> to vector<8x128xbf16>
    %c0_6 = arith.constant 0 : index
    %c0_7 = arith.constant 0 : index
    %c0_8 = arith.constant 0 : index
    %7 = vector.load %arg5[%c0_6, %c0_7, %c0_8] : memref<1x8x128xbf16, #tpu.memory_space<vmem>>, vector<1x8x128xbf16>
    %8 = vector.shape_cast %7 : vector<1x8x128xbf16> to vector<8x128xbf16>
    %c8_i32 = arith.constant 8 : i32
    %9 = arith.muli %arg2, %c8_i32 : i32
    %10 = tpu.iota {dimensions = array<i32: 1>} : vector<1x8xi32>
    %11 = vector.broadcast %9 : i32 to vector<1x8xi32>
    %12 = arith.addi %11, %10 : vector<1x8xi32>
    %c5_i32 = arith.constant 5 : i32
    %13 = vector.broadcast %c5_i32 : i32 to vector<1x8xi32>
    %14 = arith.cmpi slt, %12, %13 : vector<1x8xi32>
    %15 = vector.extract_strided_slice %4 {offsets = [0, 0], sizes = [8, 64], strides = [1, 1]} : vector<8x128xbf16> to vector<8x64xbf16>
    %16 = vector.extract_strided_slice %6 {offsets = [0, 0], sizes = [8, 64], strides = [1, 1]} : vector<8x128xbf16> to vector<8x64xbf16>
    %17 = vector.extract_strided_slice %8 {offsets = [0, 0], sizes = [8, 64], strides = [1, 1]} : vector<8x128xbf16> to vector<8x64xbf16>
    %cst = arith.constant dense<0.000000e+00> : vector<8x8xf32>
    %18 = tpu.matmul %15, %16, %cst {dimension_numbers = #tpu.dot_dimension_numbers<[1], [1], [0], [0], [0, 0, 1, 0], [], []>} : vector<8x64xbf16>, vector<8x64xbf16>, vector<8x8xf32> -> vector<8x8xf32>
    %cst_9 = arith.constant 1.250000e-01 : f32
    %19 = vector.broadcast %cst_9 : f32 to vector<8x8xf32>
    %20 = arith.mulf %18, %19 : vector<8x8xf32>
    %cst_10 = arith.constant -1.000000e+30 : f32
    %21 = vector.shape_cast %14 : vector<1x8xi1> to vector<1x8xi1>
    %22 = vector.broadcast %21 : vector<1x8xi1> to vector<8x8xi1>
    %23 = vector.broadcast %cst_10 : f32 to vector<8x8xf32>
    %24 = arith.select %22, %20, %23 : vector<8x8xi1>, vector<8x8xf32>
    %c0_11 = arith.constant 0 : index
    %c0_12 = arith.constant 0 : index
    %c0_13 = arith.constant 0 : index
    %25 = vector.load %arg7[%c0_11, %c0_12, %c0_13] : memref<2x8x1xf32, #tpu.memory_space<vmem>>, vector<1x8x1xf32>
    %26 = vector.shape_cast %25 : vector<1x8x1xf32> to vector<8x1xf32>
    %cst_14 = arith.constant dense<0xFF800000> : vector<8xf32>
    %27 = vector.multi_reduction <maximumf>, %24, %cst_14 [1] : vector<8x8xf32> to vector<8xf32>
    %28 = vector.shape_cast %27 : vector<8xf32> to vector<8x1xf32>
    %29 = arith.maximumf %26, %28 : vector<8x1xf32>
    %30 = arith.subf %26, %29 : vector<8x1xf32>
    %31 = math.exp %30 : vector<8x1xf32>
    %32 = vector.broadcast %29 : vector<8x1xf32> to vector<8x8xf32>
    %33 = arith.subf %24, %32 : vector<8x8xf32>
    %34 = math.exp %33 : vector<8x8xf32>
    %cst_15 = arith.constant 0.000000e+00 : f32
    %35 = vector.shape_cast %14 : vector<1x8xi1> to vector<1x8xi1>
    %36 = vector.broadcast %35 : vector<1x8xi1> to vector<8x8xi1>
    %37 = vector.broadcast %cst_15 : f32 to vector<8x8xf32>
    %38 = arith.select %36, %34, %37 : vector<8x8xi1>, vector<8x8xf32>
    %c0_16 = arith.constant 0 : index
    %c0_17 = arith.constant 0 : index
    %c0_18 = arith.constant 0 : index
    %39 = vector.load %arg8[%c0_16, %c0_17, %c0_18] : memref<2x8x1xf32, #tpu.memory_space<vmem>>, vector<1x8x1xf32>
    %40 = vector.shape_cast %39 : vector<1x8x1xf32> to vector<8x1xf32>
    %41 = arith.mulf %31, %40 : vector<8x1xf32>
    %cst_19 = arith.constant dense<0.000000e+00> : vector<8xf32>
    %42 = vector.multi_reduction <add>, %38, %cst_19 [1] : vector<8x8xf32> to vector<8xf32>
    %43 = vector.shape_cast %42 : vector<8xf32> to vector<8x1xf32>
    %44 = arith.addf %41, %43 : vector<8x1xf32>
    %c0_20 = arith.constant 0 : index
    %c0_21 = arith.constant 0 : index
    %c0_22 = arith.constant 0 : index
    %45 = vector.load %arg8[%c0_20, %c0_21, %c0_22] : memref<2x8x1xf32, #tpu.memory_space<vmem>>, vector<1x8x1xf32>
    %46 = vector.shape_cast %45 : vector<1x8x1xf32> to vector<8x1xf32>
    %47 = vector.shape_cast %44 : vector<8x1xf32> to vector<1x8x1xf32>
    tpu.vector_store %arg8[%c0_20, %c0_21, %c0_22], %47 {strides = array<i32>} : memref<2x8x1xf32, #tpu.memory_space<vmem>>, vector<1x8x1xf32>,
    %c0_23 = arith.constant 0 : index
    %c0_24 = arith.constant 0 : index
    %c0_25 = arith.constant 0 : index
    %48 = vector.load %arg9[%c0_23, %c0_24, %c0_25] : memref<2x8x64xf32, #tpu.memory_space<vmem>>, vector<1x8x64xf32>
    %49 = vector.shape_cast %48 : vector<1x8x64xf32> to vector<8x64xf32>
    %50 = vector.broadcast %31 : vector<8x1xf32> to vector<8x64xf32>
    %51 = arith.mulf %50, %49 : vector<8x64xf32>
    %52 = arith.truncf %38 : vector<8x8xf32> to vector<8x8xbf16>
    %cst_26 = arith.constant dense<0.000000e+00> : vector<8x64xf32>
    %53 = tpu.matmul %52, %17, %cst_26 {dimension_numbers = #tpu.dot_dimension_numbers<[1], [0], [0], [1], [0, 0, 1, 1], [], []>} : vector<8x8xbf16>, vector<8x64xbf16>, vector<8x64xf32> -> vector<8x64xf32>
    %54 = arith.addf %51, %53 : vector<8x64xf32>
    %c0_27 = arith.constant 0 : index
    %c0_28 = arith.constant 0 : index
    %c0_29 = arith.constant 0 : index
    %55 = vector.load %arg9[%c0_27, %c0_28, %c0_29] : memref<2x8x64xf32, #tpu.memory_space<vmem>>, vector<1x8x64xf32>
    %56 = vector.shape_cast %55 : vector<1x8x64xf32> to vector<8x64xf32>
    %57 = vector.shape_cast %54 : vector<8x64xf32> to vector<1x8x64xf32>
    tpu.vector_store %arg9[%c0_27, %c0_28, %c0_29], %57 {strides = array<i32>} : memref<2x8x64xf32, #tpu.memory_space<vmem>>, vector<1x8x64xf32>,
    %c0_30 = arith.constant 0 : index
    %c0_31 = arith.constant 0 : index
    %c0_32 = arith.constant 0 : index
    %58 = vector.load %arg7[%c0_30, %c0_31, %c0_32] : memref<2x8x1xf32, #tpu.memory_space<vmem>>, vector<1x8x1xf32>
    %59 = vector.shape_cast %58 : vector<1x8x1xf32> to vector<8x1xf32>
    %60 = vector.shape_cast %29 : vector<8x1xf32> to vector<1x8x1xf32>
    tpu.vector_store %arg7[%c0_30, %c0_31, %c0_32], %60 {strides = array<i32>} : memref<2x8x1xf32, #tpu.memory_space<vmem>>, vector<1x8x1xf32>,
    %61 = vector.extract_strided_slice %4 {offsets = [0, 64], sizes = [8, 64], strides = [1, 1]} : vector<8x128xbf16> to vector<8x64xbf16>
    %62 = vector.extract_strided_slice %6 {offsets = [0, 64], sizes = [8, 64], strides = [1, 1]} : vector<8x128xbf16> to vector<8x64xbf16>
    %63 = vector.extract_strided_slice %8 {offsets = [0, 64], sizes = [8, 64], strides = [1, 1]} : vector<8x128xbf16> to vector<8x64xbf16>
    %cst_33 = arith.constant dense<0.000000e+00> : vector<8x8xf32>
    %64 = tpu.matmul %61, %62, %cst_33 {dimension_numbers = #tpu.dot_dimension_numbers<[1], [1], [0], [0], [0, 0, 1, 0], [], []>} : vector<8x64xbf16>, vector<8x64xbf16>, vector<8x8xf32> -> vector<8x8xf32>
    %cst_34 = arith.constant 1.250000e-01 : f32
    %65 = vector.broadcast %cst_34 : f32 to vector<8x8xf32>
    %66 = arith.mulf %64, %65 : vector<8x8xf32>
    %cst_35 = arith.constant -1.000000e+30 : f32
    %67 = vector.shape_cast %14 : vector<1x8xi1> to vector<1x8xi1>
    %68 = vector.broadcast %67 : vector<1x8xi1> to vector<8x8xi1>
    %69 = vector.broadcast %cst_35 : f32 to vector<8x8xf32>
    %70 = arith.select %68, %66, %69 : vector<8x8xi1>, vector<8x8xf32>
    %c1 = arith.constant 1 : index
    %c0_36 = arith.constant 0 : index
    %c0_37 = arith.constant 0 : index
    %71 = vector.load %arg7[%c1, %c0_36, %c0_37] : memref<2x8x1xf32, #tpu.memory_space<vmem>>, vector<1x8x1xf32>
    %72 = vector.shape_cast %71 : vector<1x8x1xf32> to vector<8x1xf32>
    %cst_38 = arith.constant dense<0xFF800000> : vector<8xf32>
    %73 = vector.multi_reduction <maximumf>, %70, %cst_38 [1] : vector<8x8xf32> to vector<8xf32>
    %74 = vector.shape_cast %73 : vector<8xf32> to vector<8x1xf32>
    %75 = arith.maximumf %72, %74 : vector<8x1xf32>
    %76 = arith.subf %72, %75 : vector<8x1xf32>
    %77 = math.exp %76 : vector<8x1xf32>
    %78 = vector.broadcast %75 : vector<8x1xf32> to vector<8x8xf32>
    %79 = arith.subf %70, %78 : vector<8x8xf32>
    %80 = math.exp %79 : vector<8x8xf32>
    %cst_39 = arith.constant 0.000000e+00 : f32
    %81 = vector.shape_cast %14 : vector<1x8xi1> to vector<1x8xi1>
    %82 = vector.broadcast %81 : vector<1x8xi1> to vector<8x8xi1>
    %83 = vector.broadcast %cst_39 : f32 to vector<8x8xf32>
    %84 = arith.select %82, %80, %83 : vector<8x8xi1>, vector<8x8xf32>
    %c1_40 = arith.constant 1 : index
    %c0_41 = arith.constant 0 : index
    %c0_42 = arith.constant 0 : index
    %85 = vector.load %arg8[%c1_40, %c0_41, %c0_42] : memref<2x8x1xf32, #tpu.memory_space<vmem>>, vector<1x8x1xf32>
    %86 = vector.shape_cast %85 : vector<1x8x1xf32> to vector<8x1xf32>
    %87 = arith.mulf %77, %86 : vector<8x1xf32>
    %cst_43 = arith.constant dense<0.000000e+00> : vector<8xf32>
    %88 = vector.multi_reduction <add>, %84, %cst_43 [1] : vector<8x8xf32> to vector<8xf32>
    %89 = vector.shape_cast %88 : vector<8xf32> to vector<8x1xf32>
    %90 = arith.addf %87, %89 : vector<8x1xf32>
    %c1_44 = arith.constant 1 : index
    %c0_45 = arith.constant 0 : index
    %c0_46 = arith.constant 0 : index
    %91 = vector.load %arg8[%c1_44, %c0_45, %c0_46] : memref<2x8x1xf32, #tpu.memory_space<vmem>>, vector<1x8x1xf32>
    %92 = vector.shape_cast %91 : vector<1x8x1xf32> to vector<8x1xf32>
    %93 = vector.shape_cast %90 : vector<8x1xf32> to vector<1x8x1xf32>
    tpu.vector_store %arg8[%c1_44, %c0_45, %c0_46], %93 {strides = array<i32>} : memref<2x8x1xf32, #tpu.memory_space<vmem>>, vector<1x8x1xf32>,
    %c1_47 = arith.constant 1 : index
    %c0_48 = arith.constant 0 : index
    %c0_49 = arith.constant 0 : index
    %94 = vector.load %arg9[%c1_47, %c0_48, %c0_49] : memref<2x8x64xf32, #tpu.memory_space<vmem>>, vector<1x8x64xf32>
    %95 = vector.shape_cast %94 : vector<1x8x64xf32> to vector<8x64xf32>
    %96 = vector.broadcast %77 : vector<8x1xf32> to vector<8x64xf32>
    %97 = arith.mulf %96, %95 : vector<8x64xf32>
    %98 = arith.truncf %84 : vector<8x8xf32> to vector<8x8xbf16>
    %cst_50 = arith.constant dense<0.000000e+00> : vector<8x64xf32>
    %99 = tpu.matmul %98, %63, %cst_50 {dimension_numbers = #tpu.dot_dimension_numbers<[1], [0], [0], [1], [0, 0, 1, 1], [], []>} : vector<8x8xbf16>, vector<8x64xbf16>, vector<8x64xf32> -> vector<8x64xf32>
    %100 = arith.addf %97, %99 : vector<8x64xf32>
    %c1_51 = arith.constant 1 : index
    %c0_52 = arith.constant 0 : index
    %c0_53 = arith.constant 0 : index
    %101 = vector.load %arg9[%c1_51, %c0_52, %c0_53] : memref<2x8x64xf32, #tpu.memory_space<vmem>>, vector<1x8x64xf32>
    %102 = vector.shape_cast %101 : vector<1x8x64xf32> to vector<8x64xf32>
    %103 = vector.shape_cast %100 : vector<8x64xf32> to vector<1x8x64xf32>
    tpu.vector_store %arg9[%c1_51, %c0_52, %c0_53], %103 {strides = array<i32>} : memref<2x8x64xf32, #tpu.memory_space<vmem>>, vector<1x8x64xf32>,
    %c1_54 = arith.constant 1 : index
    %c0_55 = arith.constant 0 : index
    %c0_56 = arith.constant 0 : index
    %104 = vector.load %arg7[%c1_54, %c0_55, %c0_56] : memref<2x8x1xf32, #tpu.memory_space<vmem>>, vector<1x8x1xf32>
    %105 = vector.shape_cast %104 : vector<1x8x1xf32> to vector<8x1xf32>
    %106 = vector.shape_cast %75 : vector<8x1xf32> to vector<1x8x1xf32>
    tpu.vector_store %arg7[%c1_54, %c0_55, %c0_56], %106 {strides = array<i32>} : memref<2x8x1xf32, #tpu.memory_space<vmem>>, vector<1x8x1xf32>,
    %c0_i32_57 = arith.constant 0 : i32
    %107 = arith.cmpi eq, %arg2, %c0_i32_57 : i32
    %108 = arith.extui %107 : i1 to i32
    %c0_i32_58 = arith.constant 0 : i32
    %109 = arith.cmpi ne, %108, %c0_i32_58 : i32
    scf.if %109 {
      %c0_59 = arith.constant 0 : index
      %c0_60 = arith.constant 0 : index
      %c0_61 = arith.constant 0 : index
      %110 = vector.load %arg9[%c0_59, %c0_60, %c0_61] : memref<2x8x64xf32, #tpu.memory_space<vmem>>, vector<1x8x64xf32>
      %111 = vector.shape_cast %110 : vector<1x8x64xf32> to vector<8x64xf32>
      %c0_62 = arith.constant 0 : index
      %c0_63 = arith.constant 0 : index
      %c0_64 = arith.constant 0 : index
      %112 = vector.load %arg8[%c0_62, %c0_63, %c0_64] : memref<2x8x1xf32, #tpu.memory_space<vmem>>, vector<1x8x1xf32>
      %113 = vector.shape_cast %112 : vector<1x8x1xf32> to vector<8x1xf32>
      %114 = tpu.reciprocal %113 {approx = true} : vector<8x1xf32> -> vector<8x1xf32>
      %115 = vector.broadcast %114 : vector<8x1xf32> to vector<8x64xf32>
      %116 = arith.mulf %111, %115 : vector<8x64xf32>
      %c1_65 = arith.constant 1 : index
      %c0_66 = arith.constant 0 : index
      %c0_67 = arith.constant 0 : index
      %117 = vector.load %arg9[%c1_65, %c0_66, %c0_67] : memref<2x8x64xf32, #tpu.memory_space<vmem>>, vector<1x8x64xf32>
      %118 = vector.shape_cast %117 : vector<1x8x64xf32> to vector<8x64xf32>
      %c1_68 = arith.constant 1 : index
      %c0_69 = arith.constant 0 : index
      %c0_70 = arith.constant 0 : index
      %119 = vector.load %arg8[%c1_68, %c0_69, %c0_70] : memref<2x8x1xf32, #tpu.memory_space<vmem>>, vector<1x8x1xf32>
      %120 = vector.shape_cast %119 : vector<1x8x1xf32> to vector<8x1xf32>
      %121 = tpu.reciprocal %120 {approx = true} : vector<8x1xf32> -> vector<8x1xf32>
      %122 = vector.broadcast %121 : vector<8x1xf32> to vector<8x64xf32>
      %123 = arith.mulf %118, %122 : vector<8x64xf32>
      %124 = tpu.concatenate %116, %123 in 1 : vector<8x64xf32>, vector<8x64xf32> -> vector<8x128xf32>
      %125 = arith.truncf %124 : vector<8x128xf32> to vector<8x128xbf16>
      %c0_71 = arith.constant 0 : index
      %c0_72 = arith.constant 0 : index
      %c0_73 = arith.constant 0 : index
      %126 = vector.load %arg6[%c0_71, %c0_72, %c0_73] : memref<1x8x128xbf16, #tpu.memory_space<vmem>>, vector<1x8x128xbf16>
      %127 = vector.shape_cast %126 : vector<1x8x128xbf16> to vector<8x128xbf16>
      %128 = vector.shape_cast %125 : vector<8x128xbf16> to vector<1x8x128xbf16>
      tpu.vector_store %arg6[%c0_71, %c0_72, %c0_73], %128 {strides = array<i32>} : memref<1x8x128xbf16, #tpu.memory_space<vmem>>, vector<1x8x128xbf16>,
    } else {
    }
    return
  }
  func.func @transform_0(%arg0: i32, %arg1: i32, %arg2: i32) -> (i32, i32, i32) {
    %c0_i32 = arith.constant 0 : i32
    %c0_i32_0 = arith.constant 0 : i32
    return %arg0, %c0_i32, %arg1 : i32, i32, i32
  }
  func.func @transform_1(%arg0: i32, %arg1: i32, %arg2: i32) -> (i32, i32, i32) {
    %c1_i32 = arith.constant 1 : i32
    %0 = arith.addi %c1_i32, %arg1 : i32
    %c0_i32 = arith.constant 0 : i32
    return %arg0, %arg2, %0 : i32, i32, i32
  }
  func.func @transform_2(%arg0: i32, %arg1: i32, %arg2: i32) -> (i32, i32, i32) {
    %c2_i32 = arith.constant 2 : i32
    %0 = arith.addi %c2_i32, %arg1 : i32
    %c0_i32 = arith.constant 0 : i32
    return %arg0, %arg2, %0 : i32, i32, i32
  }
  func.func @transform_3(%arg0: i32, %arg1: i32, %arg2: i32) -> (i32, i32, i32) {
    %c0_i32 = arith.constant 0 : i32
    %c0_i32_0 = arith.constant 0 : i32
    return %arg0, %c0_i32, %arg1 : i32, i32, i32
  }
}

module attributes {stable_mosaic.version = 11 : i64} {
  func.func @_ln_linear_kernel(%arg0: i32, %arg1: memref<16x128xbf16, #tpu.memory_space<vmem>>, %arg2: memref<1x128xf32, #tpu.memory_space<vmem>>, %arg3: memref<1x128xf32, #tpu.memory_space<vmem>>, %arg4: memref<128x512xbf16, #tpu.memory_space<vmem>>, %arg5: memref<1x512xf32, #tpu.memory_space<vmem>>, %arg6: memref<16x512xbf16, #tpu.memory_space<vmem>>) attributes {dimension_semantics = [#tpu.dimension_semantics<parallel>], iteration_bounds = array<i64: 1>, scalar_prefetch = 0 : i64, scratch_operands = 0 : i64, tpu.core_type = #tpu.core_type<tc>, window_params = [{transform_indices = @transform_0, window_bounds = array<i64: 16, 128>}, {pipeline_mode = #tpu.pipeline_mode<synchronous>, transform_indices = @transform_1, window_bounds = array<i64: 1, 128>}, {pipeline_mode = #tpu.pipeline_mode<synchronous>, transform_indices = @transform_2, window_bounds = array<i64: 1, 128>}, {pipeline_mode = #tpu.pipeline_mode<synchronous>, transform_indices = @transform_3, window_bounds = array<i64: 128, 512>}, {pipeline_mode = #tpu.pipeline_mode<synchronous>, transform_indices = @transform_4, window_bounds = array<i64: 1, 512>}, {transform_indices = @transform_5, window_bounds = array<i64: 16, 512>}]} {
    %c0 = arith.constant 0 : index
    %c0_0 = arith.constant 0 : index
    %0 = vector.load %arg1[%c0, %c0_0] : memref<16x128xbf16, #tpu.memory_space<vmem>>, vector<16x128xbf16>
    %1 = arith.extf %0 : vector<16x128xbf16> to vector<16x128xf32>
    %cst = arith.constant dense<0.000000e+00> : vector<16xf32>
    %2 = vector.multi_reduction <add>, %1, %cst [1] : vector<16x128xf32> to vector<16xf32>
    %3 = vector.shape_cast %2 : vector<16xf32> to vector<16x1xf32>
    %cst_1 = arith.constant 1.280000e+02 : f32
    %4 = vector.broadcast %cst_1 : f32 to vector<16x1xf32>
    %5 = arith.divf %3, %4 : vector<16x1xf32>
    %6 = vector.broadcast %5 : vector<16x1xf32> to vector<16x128xf32>
    %7 = arith.subf %1, %6 : vector<16x128xf32>
    %8 = arith.mulf %7, %7 : vector<16x128xf32>
    %cst_2 = arith.constant dense<0.000000e+00> : vector<16xf32>
    %9 = vector.multi_reduction <add>, %8, %cst_2 [1] : vector<16x128xf32> to vector<16xf32>
    %10 = vector.shape_cast %9 : vector<16xf32> to vector<16x1xf32>
    %cst_3 = arith.constant 1.280000e+02 : f32
    %11 = vector.broadcast %cst_3 : f32 to vector<16x1xf32>
    %12 = arith.divf %10, %11 : vector<16x1xf32>
    %13 = vector.broadcast %5 : vector<16x1xf32> to vector<16x128xf32>
    %14 = arith.subf %1, %13 : vector<16x128xf32>
    %cst_4 = arith.constant 9.99999997E-7 : f32
    %15 = vector.broadcast %cst_4 : f32 to vector<16x1xf32>
    %16 = arith.addf %12, %15 : vector<16x1xf32>
    %17 = math.rsqrt %16 : vector<16x1xf32>
    %18 = vector.broadcast %17 : vector<16x1xf32> to vector<16x128xf32>
    %19 = arith.mulf %14, %18 : vector<16x128xf32>
    %c0_5 = arith.constant 0 : index
    %c0_6 = arith.constant 0 : index
    %20 = vector.load %arg2[%c0_5, %c0_6] : memref<1x128xf32, #tpu.memory_space<vmem>>, vector<1x128xf32>
    %21 = vector.broadcast %20 : vector<1x128xf32> to vector<16x128xf32>
    %22 = arith.mulf %19, %21 : vector<16x128xf32>
    %c0_7 = arith.constant 0 : index
    %c0_8 = arith.constant 0 : index
    %23 = vector.load %arg3[%c0_7, %c0_8] : memref<1x128xf32, #tpu.memory_space<vmem>>, vector<1x128xf32>
    %24 = vector.broadcast %23 : vector<1x128xf32> to vector<16x128xf32>
    %25 = arith.addf %22, %24 : vector<16x128xf32>
    %26 = arith.truncf %25 : vector<16x128xf32> to vector<16x128xbf16>
    %c0_9 = arith.constant 0 : index
    %c0_10 = arith.constant 0 : index
    %27 = vector.load %arg4[%c0_9, %c0_10] : memref<128x512xbf16, #tpu.memory_space<vmem>>, vector<128x512xbf16>
    %cst_11 = arith.constant dense<0.000000e+00> : vector<16x512xf32>
    %28 = tpu.matmul %26, %27, %cst_11 {dimension_numbers = #tpu.dot_dimension_numbers<[1], [0], [0], [1], [0, 0, 1, 1], [], []>} : vector<16x128xbf16>, vector<128x512xbf16>, vector<16x512xf32> -> vector<16x512xf32>
    %c0_12 = arith.constant 0 : index
    %c0_13 = arith.constant 0 : index
    %29 = vector.load %arg5[%c0_12, %c0_13] : memref<1x512xf32, #tpu.memory_space<vmem>>, vector<1x512xf32>
    %30 = vector.broadcast %29 : vector<1x512xf32> to vector<16x512xf32>
    %31 = arith.addf %28, %30 : vector<16x512xf32>
    %32 = arith.mulf %31, %31 : vector<16x512xf32>
    %33 = arith.mulf %31, %32 : vector<16x512xf32>
    %cst_14 = arith.constant 4.471500e-02 : f32
    %34 = vector.broadcast %cst_14 : f32 to vector<16x512xf32>
    %35 = arith.mulf %34, %33 : vector<16x512xf32>
    %36 = arith.addf %31, %35 : vector<16x512xf32>
    %cst_15 = arith.constant 0.797884583 : f32
    %37 = vector.broadcast %cst_15 : f32 to vector<16x512xf32>
    %38 = arith.mulf %37, %36 : vector<16x512xf32>
    %39 = math.tanh %38 : vector<16x512xf32>
    %cst_16 = arith.constant 1.000000e+00 : f32
    %40 = vector.broadcast %cst_16 : f32 to vector<16x512xf32>
    %41 = arith.addf %40, %39 : vector<16x512xf32>
    %cst_17 = arith.constant 5.000000e-01 : f32
    %42 = vector.broadcast %cst_17 : f32 to vector<16x512xf32>
    %43 = arith.mulf %42, %41 : vector<16x512xf32>
    %44 = arith.mulf %31, %43 : vector<16x512xf32>
    %45 = arith.truncf %44 : vector<16x512xf32> to vector<16x512xbf16>
    %c0_18 = arith.constant 0 : index
    %c0_19 = arith.constant 0 : index
    %46 = vector.load %arg6[%c0_18, %c0_19] : memref<16x512xbf16, #tpu.memory_space<vmem>>, vector<16x512xbf16>
    tpu.vector_store %arg6[%c0_18, %c0_19], %45 {strides = array<i32>} : memref<16x512xbf16, #tpu.memory_space<vmem>>, vector<16x512xbf16>,
    return
  }
  func.func @transform_0(%arg0: i32) -> (i32, i32) {
    %c0_i32 = arith.constant 0 : i32
    %c0_i32_0 = arith.constant 0 : i32
    return %arg0, %c0_i32 : i32, i32
  }
  func.func @transform_1(%arg0: i32) -> (i32, i32) {
    %c0_i32 = arith.constant 0 : i32
    %c0_i32_0 = arith.constant 0 : i32
    %c0_i32_1 = arith.constant 0 : i32
    return %c0_i32, %c0_i32_0 : i32, i32
  }
  func.func @transform_2(%arg0: i32) -> (i32, i32) {
    %c0_i32 = arith.constant 0 : i32
    %c0_i32_0 = arith.constant 0 : i32
    %c0_i32_1 = arith.constant 0 : i32
    return %c0_i32, %c0_i32_0 : i32, i32
  }
  func.func @transform_3(%arg0: i32) -> (i32, i32) {
    %c0_i32 = arith.constant 0 : i32
    %c0_i32_0 = arith.constant 0 : i32
    %c0_i32_1 = arith.constant 0 : i32
    return %c0_i32, %c0_i32_0 : i32, i32
  }
  func.func @transform_4(%arg0: i32) -> (i32, i32) {
    %c0_i32 = arith.constant 0 : i32
    %c0_i32_0 = arith.constant 0 : i32
    %c0_i32_1 = arith.constant 0 : i32
    return %c0_i32, %c0_i32_0 : i32, i32
  }
  func.func @transform_5(%arg0: i32) -> (i32, i32) {
    %c0_i32 = arith.constant 0 : i32
    %c0_i32_0 = arith.constant 0 : i32
    return %arg0, %c0_i32 : i32, i32
  }
}

module attributes {stable_mosaic.version = 11 : i64} {
  func.func @_linear_ls_res_kernel(%arg0: i32, %arg1: memref<16x512xbf16, #tpu.memory_space<vmem>>, %arg2: memref<512x128xbf16, #tpu.memory_space<vmem>>, %arg3: memref<1x128xf32, #tpu.memory_space<vmem>>, %arg4: memref<1x128xf32, #tpu.memory_space<vmem>>, %arg5: memref<16x128xbf16, #tpu.memory_space<vmem>>, %arg6: memref<16x128xbf16, #tpu.memory_space<vmem>>) attributes {dimension_semantics = [#tpu.dimension_semantics<parallel>], iteration_bounds = array<i64: 1>, scalar_prefetch = 0 : i64, scratch_operands = 0 : i64, tpu.core_type = #tpu.core_type<tc>, window_params = [{transform_indices = @transform_0, window_bounds = array<i64: 16, 512>}, {pipeline_mode = #tpu.pipeline_mode<synchronous>, transform_indices = @transform_1, window_bounds = array<i64: 512, 128>}, {pipeline_mode = #tpu.pipeline_mode<synchronous>, transform_indices = @transform_2, window_bounds = array<i64: 1, 128>}, {pipeline_mode = #tpu.pipeline_mode<synchronous>, transform_indices = @transform_3, window_bounds = array<i64: 1, 128>}, {transform_indices = @transform_4, window_bounds = array<i64: 16, 128>}, {transform_indices = @transform_5, window_bounds = array<i64: 16, 128>}]} {
    %c0 = arith.constant 0 : index
    %c0_0 = arith.constant 0 : index
    %0 = vector.load %arg1[%c0, %c0_0] : memref<16x512xbf16, #tpu.memory_space<vmem>>, vector<16x512xbf16>
    %c0_1 = arith.constant 0 : index
    %c0_2 = arith.constant 0 : index
    %1 = vector.load %arg2[%c0_1, %c0_2] : memref<512x128xbf16, #tpu.memory_space<vmem>>, vector<512x128xbf16>
    %cst = arith.constant dense<0.000000e+00> : vector<16x128xf32>
    %2 = tpu.matmul %0, %1, %cst {dimension_numbers = #tpu.dot_dimension_numbers<[1], [0], [0], [1], [0, 0, 1, 1], [], []>} : vector<16x512xbf16>, vector<512x128xbf16>, vector<16x128xf32> -> vector<16x128xf32>
    %c0_3 = arith.constant 0 : index
    %c0_4 = arith.constant 0 : index
    %3 = vector.load %arg3[%c0_3, %c0_4] : memref<1x128xf32, #tpu.memory_space<vmem>>, vector<1x128xf32>
    %4 = vector.broadcast %3 : vector<1x128xf32> to vector<16x128xf32>
    %5 = arith.addf %2, %4 : vector<16x128xf32>
    %c0_5 = arith.constant 0 : index
    %c0_6 = arith.constant 0 : index
    %6 = vector.load %arg5[%c0_5, %c0_6] : memref<16x128xbf16, #tpu.memory_space<vmem>>, vector<16x128xbf16>
    %7 = arith.extf %6 : vector<16x128xbf16> to vector<16x128xf32>
    %c0_7 = arith.constant 0 : index
    %c0_8 = arith.constant 0 : index
    %8 = vector.load %arg4[%c0_7, %c0_8] : memref<1x128xf32, #tpu.memory_space<vmem>>, vector<1x128xf32>
    %9 = vector.broadcast %8 : vector<1x128xf32> to vector<16x128xf32>
    %10 = arith.mulf %5, %9 : vector<16x128xf32>
    %11 = arith.addf %7, %10 : vector<16x128xf32>
    %12 = arith.truncf %11 : vector<16x128xf32> to vector<16x128xbf16>
    %c0_9 = arith.constant 0 : index
    %c0_10 = arith.constant 0 : index
    %13 = vector.load %arg6[%c0_9, %c0_10] : memref<16x128xbf16, #tpu.memory_space<vmem>>, vector<16x128xbf16>
    tpu.vector_store %arg6[%c0_9, %c0_10], %12 {strides = array<i32>} : memref<16x128xbf16, #tpu.memory_space<vmem>>, vector<16x128xbf16>,
    return
  }
  func.func @transform_0(%arg0: i32) -> (i32, i32) {
    %c0_i32 = arith.constant 0 : i32
    %c0_i32_0 = arith.constant 0 : i32
    return %arg0, %c0_i32 : i32, i32
  }
  func.func @transform_1(%arg0: i32) -> (i32, i32) {
    %c0_i32 = arith.constant 0 : i32
    %c0_i32_0 = arith.constant 0 : i32
    %c0_i32_1 = arith.constant 0 : i32
    return %c0_i32, %c0_i32_0 : i32, i32
  }
  func.func @transform_2(%arg0: i32) -> (i32, i32) {
    %c0_i32 = arith.constant 0 : i32
    %c0_i32_0 = arith.constant 0 : i32
    %c0_i32_1 = arith.constant 0 : i32
    return %c0_i32, %c0_i32_0 : i32, i32
  }
  func.func @transform_3(%arg0: i32) -> (i32, i32) {
    %c0_i32 = arith.constant 0 : i32
    %c0_i32_0 = arith.constant 0 : i32
    %c0_i32_1 = arith.constant 0 : i32
    return %c0_i32, %c0_i32_0 : i32, i32
  }
  func.func @transform_4(%arg0: i32) -> (i32, i32) {
    %c0_i32 = arith.constant 0 : i32
    %c0_i32_0 = arith.constant 0 : i32
    return %arg0, %c0_i32 : i32, i32
  }
  func.func @transform_5(%arg0: i32) -> (i32, i32) {
    %c0_i32 = arith.constant 0 : i32
    %c0_i32_0 = arith.constant 0 : i32
    return %arg0, %c0_i32 : i32, i32
  }
}

module attributes {stable_mosaic.version = 11 : i64} {
  func.func @_ln_pool_kernel(%arg0: i32, %arg1: memref<1x8x128xbf16, #tpu.memory_space<vmem>>, %arg2: memref<1x128xf32, #tpu.memory_space<vmem>>, %arg3: memref<1x128xf32, #tpu.memory_space<vmem>>, %arg4: memref<1x1x256xf32, #tpu.memory_space<vmem>>) attributes {dimension_semantics = [#tpu.dimension_semantics<parallel>], iteration_bounds = array<i64: 2>, scalar_prefetch = 0 : i64, scratch_operands = 0 : i64, tpu.core_type = #tpu.core_type<tc>, window_params = [{transform_indices = @transform_0, window_bounds = array<i64: 1, 8, 128>}, {pipeline_mode = #tpu.pipeline_mode<synchronous>, transform_indices = @transform_1, window_bounds = array<i64: 1, 128>}, {pipeline_mode = #tpu.pipeline_mode<synchronous>, transform_indices = @transform_2, window_bounds = array<i64: 1, 128>}, {transform_indices = @transform_3, window_bounds = array<i64: 1, 1, 256>}]} {
    %c0 = arith.constant 0 : index
    %c0_0 = arith.constant 0 : index
    %c0_1 = arith.constant 0 : index
    %0 = vector.load %arg1[%c0, %c0_0, %c0_1] : memref<1x8x128xbf16, #tpu.memory_space<vmem>>, vector<1x8x128xbf16>
    %1 = vector.shape_cast %0 : vector<1x8x128xbf16> to vector<8x128xbf16>
    %2 = arith.extf %1 : vector<8x128xbf16> to vector<8x128xf32>
    %cst = arith.constant dense<0.000000e+00> : vector<8xf32>
    %3 = vector.multi_reduction <add>, %2, %cst [1] : vector<8x128xf32> to vector<8xf32>
    %4 = vector.shape_cast %3 : vector<8xf32> to vector<8x1xf32>
    %cst_2 = arith.constant 1.280000e+02 : f32
    %5 = vector.broadcast %cst_2 : f32 to vector<8x1xf32>
    %6 = arith.divf %4, %5 : vector<8x1xf32>
    %7 = vector.broadcast %6 : vector<8x1xf32> to vector<8x128xf32>
    %8 = arith.subf %2, %7 : vector<8x128xf32>
    %9 = arith.mulf %8, %8 : vector<8x128xf32>
    %cst_3 = arith.constant dense<0.000000e+00> : vector<8xf32>
    %10 = vector.multi_reduction <add>, %9, %cst_3 [1] : vector<8x128xf32> to vector<8xf32>
    %11 = vector.shape_cast %10 : vector<8xf32> to vector<8x1xf32>
    %cst_4 = arith.constant 1.280000e+02 : f32
    %12 = vector.broadcast %cst_4 : f32 to vector<8x1xf32>
    %13 = arith.divf %11, %12 : vector<8x1xf32>
    %14 = vector.broadcast %6 : vector<8x1xf32> to vector<8x128xf32>
    %15 = arith.subf %2, %14 : vector<8x128xf32>
    %cst_5 = arith.constant 9.99999997E-7 : f32
    %16 = vector.broadcast %cst_5 : f32 to vector<8x1xf32>
    %17 = arith.addf %13, %16 : vector<8x1xf32>
    %18 = math.rsqrt %17 : vector<8x1xf32>
    %19 = vector.broadcast %18 : vector<8x1xf32> to vector<8x128xf32>
    %20 = arith.mulf %15, %19 : vector<8x128xf32>
    %c0_6 = arith.constant 0 : index
    %c0_7 = arith.constant 0 : index
    %21 = vector.load %arg2[%c0_6, %c0_7] : memref<1x128xf32, #tpu.memory_space<vmem>>, vector<1x128xf32>
    %22 = vector.broadcast %21 : vector<1x128xf32> to vector<8x128xf32>
    %23 = arith.mulf %20, %22 : vector<8x128xf32>
    %c0_8 = arith.constant 0 : index
    %c0_9 = arith.constant 0 : index
    %24 = vector.load %arg3[%c0_8, %c0_9] : memref<1x128xf32, #tpu.memory_space<vmem>>, vector<1x128xf32>
    %25 = vector.broadcast %24 : vector<1x128xf32> to vector<8x128xf32>
    %26 = arith.addf %23, %25 : vector<8x128xf32>
    %27 = vector.extract_strided_slice %26 {offsets = [0, 0], sizes = [1, 128], strides = [1, 1]} : vector<8x128xf32> to vector<1x128xf32>
    %28 = tpu.iota {dimensions = array<i32: 0>} : vector<8x1xi32>
    %c1_i32 = arith.constant 1 : i32
    %29 = vector.broadcast %c1_i32 : i32 to vector<8x1xi32>
    %30 = arith.cmpi sge, %28, %29 : vector<8x1xi32>
    %c5_i32 = arith.constant 5 : i32
    %31 = vector.broadcast %c5_i32 : i32 to vector<8x1xi32>
    %32 = arith.cmpi slt, %28, %31 : vector<8x1xi32>
    %33 = arith.andi %30, %32 : vector<8x1xi1>
    %cst_10 = arith.constant 0.000000e+00 : f32
    %34 = vector.shape_cast %33 : vector<8x1xi1> to vector<8x1xi1>
    %35 = vector.broadcast %34 : vector<8x1xi1> to vector<8x128xi1>
    %36 = vector.broadcast %cst_10 : f32 to vector<8x128xf32>
    %37 = arith.select %35, %26, %36 : vector<8x128xi1>, vector<8x128xf32>
    %cst_11 = arith.constant dense<0.000000e+00> : vector<128xf32>
    %38 = vector.multi_reduction <add>, %37, %cst_11 [0] : vector<8x128xf32> to vector<128xf32>
    %39 = vector.shape_cast %38 : vector<128xf32> to vector<1x128xf32>
    %cst_12 = arith.constant 2.500000e-01 : f32
    %40 = vector.broadcast %cst_12 : f32 to vector<1x128xf32>
    %41 = arith.mulf %39, %40 : vector<1x128xf32>
    %42 = tpu.concatenate %41, %27 in 1 : vector<1x128xf32>, vector<1x128xf32> -> vector<1x256xf32>
    %c0_13 = arith.constant 0 : index
    %c0_14 = arith.constant 0 : index
    %c0_15 = arith.constant 0 : index
    %43 = vector.load %arg4[%c0_13, %c0_14, %c0_15] : memref<1x1x256xf32, #tpu.memory_space<vmem>>, vector<1x1x256xf32>
    %44 = vector.shape_cast %43 : vector<1x1x256xf32> to vector<1x256xf32>
    %45 = vector.shape_cast %42 : vector<1x256xf32> to vector<1x1x256xf32>
    tpu.vector_store %arg4[%c0_13, %c0_14, %c0_15], %45 {strides = array<i32>} : memref<1x1x256xf32, #tpu.memory_space<vmem>>, vector<1x1x256xf32>,
    return
  }
  func.func @transform_0(%arg0: i32) -> (i32, i32, i32) {
    %c0_i32 = arith.constant 0 : i32
    %c0_i32_0 = arith.constant 0 : i32
    %c0_i32_1 = arith.constant 0 : i32
    return %arg0, %c0_i32, %c0_i32_0 : i32, i32, i32
  }
  func.func @transform_1(%arg0: i32) -> (i32, i32) {
    %c0_i32 = arith.constant 0 : i32
    %c0_i32_0 = arith.constant 0 : i32
    %c0_i32_1 = arith.constant 0 : i32
    return %c0_i32, %c0_i32_0 : i32, i32
  }
  func.func @transform_2(%arg0: i32) -> (i32, i32) {
    %c0_i32 = arith.constant 0 : i32
    %c0_i32_0 = arith.constant 0 : i32
    %c0_i32_1 = arith.constant 0 : i32
    return %c0_i32, %c0_i32_0 : i32, i32
  }
  func.func @transform_3(%arg0: i32) -> (i32, i32, i32) {
    %c0_i32 = arith.constant 0 : i32
    %c0_i32_0 = arith.constant 0 : i32
    %c0_i32_1 = arith.constant 0 : i32
    return %arg0, %c0_i32, %c0_i32_0 : i32, i32, i32
  }
}

module attributes {stable_mosaic.version = 11 : i64} {
  func.func @_linear_kernel(%arg0: i32, %arg1: memref<2x256xf32, #tpu.memory_space<vmem>>, %arg2: memref<256x128xbf16, #tpu.memory_space<vmem>>, %arg3: memref<1x128xf32, #tpu.memory_space<vmem>>, %arg4: memref<2x128xf32, #tpu.memory_space<vmem>>) attributes {dimension_semantics = [#tpu.dimension_semantics<parallel>], iteration_bounds = array<i64: 1>, scalar_prefetch = 0 : i64, scratch_operands = 0 : i64, tpu.core_type = #tpu.core_type<tc>, window_params = [{pipeline_mode = #tpu.pipeline_mode<synchronous>, transform_indices = @transform_0, window_bounds = array<i64: 2, 256>}, {transform_indices = @transform_1, window_bounds = array<i64: 256, 128>}, {transform_indices = @transform_2, window_bounds = array<i64: 1, 128>}, {transform_indices = @transform_3, window_bounds = array<i64: 2, 128>}]} {
    %c0 = arith.constant 0 : index
    %c0_0 = arith.constant 0 : index
    %0 = vector.load %arg1[%c0, %c0_0] : memref<2x256xf32, #tpu.memory_space<vmem>>, vector<2x256xf32>
    %1 = arith.truncf %0 : vector<2x256xf32> to vector<2x256xbf16>
    %c0_1 = arith.constant 0 : index
    %c0_2 = arith.constant 0 : index
    %2 = vector.load %arg2[%c0_1, %c0_2] : memref<256x128xbf16, #tpu.memory_space<vmem>>, vector<256x128xbf16>
    %cst = arith.constant dense<0.000000e+00> : vector<2x128xf32>
    %3 = tpu.matmul %1, %2, %cst {dimension_numbers = #tpu.dot_dimension_numbers<[1], [0], [0], [1], [0, 0, 1, 1], [], []>} : vector<2x256xbf16>, vector<256x128xbf16>, vector<2x128xf32> -> vector<2x128xf32>
    %c0_3 = arith.constant 0 : index
    %c0_4 = arith.constant 0 : index
    %4 = vector.load %arg3[%c0_3, %c0_4] : memref<1x128xf32, #tpu.memory_space<vmem>>, vector<1x128xf32>
    %5 = vector.broadcast %4 : vector<1x128xf32> to vector<2x128xf32>
    %6 = arith.addf %3, %5 : vector<2x128xf32>
    %c0_5 = arith.constant 0 : index
    %c0_6 = arith.constant 0 : index
    %7 = vector.load %arg4[%c0_5, %c0_6] : memref<2x128xf32, #tpu.memory_space<vmem>>, vector<2x128xf32>
    tpu.vector_store %arg4[%c0_5, %c0_6], %6 {strides = array<i32>} : memref<2x128xf32, #tpu.memory_space<vmem>>, vector<2x128xf32>,
    return
  }
  func.func @transform_0(%arg0: i32) -> (i32, i32) {
    %c0_i32 = arith.constant 0 : i32
    %c0_i32_0 = arith.constant 0 : i32
    %c0_i32_1 = arith.constant 0 : i32
    return %c0_i32, %c0_i32_0 : i32, i32
  }
  func.func @transform_1(%arg0: i32) -> (i32, i32) {
    %c0_i32 = arith.constant 0 : i32
    %c0_i32_0 = arith.constant 0 : i32
    return %c0_i32, %arg0 : i32, i32
  }
  func.func @transform_2(%arg0: i32) -> (i32, i32) {
    %c0_i32 = arith.constant 0 : i32
    %c0_i32_0 = arith.constant 0 : i32
    return %c0_i32, %arg0 : i32, i32
  }
  func.func @transform_3(%arg0: i32) -> (i32, i32) {
    %c0_i32 = arith.constant 0 : i32
    %c0_i32_0 = arith.constant 0 : i32
    return %c0_i32, %arg0 : i32, i32
  }
}

</mosaic_0001>

<llo_original>
// kernel: _lambda_.16
$region0: #{_lambda_.16}
  #allocation0 [shape = 'u32[]', space=smem, size = 0x4, offset = 0x4, fixed_abs, tag = 'smem constant byte address 0x4 - core index']
  #allocation1 [shape = 'u32[144,128]{1,0:T(1,128)}', space=vmem, size = 0x12000, scoped, tag = 'internal scratch']
  %s0 = inlined_call_operand.vmem [shape: bf16[16,128], index: 0, kind: input, shape index: {}]
  %s1 = inlined_call_operand.vmem [shape: bf16[128,128], index: 1, kind: input, shape index: {}]
  %s2 = inlined_call_operand.vmem [shape: f32[1,128], index: 2, kind: input, shape index: {}]
  %s3 = inlined_call_operand.vmem [shape: f32[1,128], index: 3, kind: input, shape index: {}]
  %s4 = inlined_call_operand.vmem [shape: bf16[16,128], index: 4, kind: input, shape index: {}, may-alias: {4,5}]
  %s5 = inlined_call_operand.vmem [shape: bf16[16,128], index: 5, kind: output, shape index: {}, may-alias: {4,5}]
  %s6 = sld [smem:[#allocation0]]
  $region30: #{_lambda_.16} parent=0
    _
  %s8 = ssub.s32 1, %s6
  %s9 = scalar_select 0, %s8, %s6
  // Predicated region
  $region2: #{_lambda_.16} parent=0 // pred_check
    _
  $region3: #{_lambda_.16} parent=0 // pred_check_branch
    %11 = sbr.rel (0) target = $region5
  $region4: #{_lambda_.16} parent=0 // pred_region
    _
  $region5: #{_lambda_.16} parent=0 // pred_fallthru
    _
  // Predicated region
  $region6: #{_lambda_.16} parent=0 // pred_check
    _
  $region7: #{_lambda_.16} parent=0 // pred_check_branch
    %13 = sbr.rel (0) target = $region9
  $region8: #{_lambda_.16} parent=0 // pred_region
    _
  $region9: #{_lambda_.16} parent=0 // pred_fallthru
    _
  // Predicated region
  $region10: #{_lambda_.16} parent=0 // pred_check
    _
  $region11: #{_lambda_.16} parent=0 // pred_check_branch
    %15 = sbr.rel (0) target = $region13
  $region12: #{_lambda_.16} parent=0 // pred_region
    _
  $region13: #{_lambda_.16} parent=0 // pred_fallthru
    _
  // Predicated region
  $region14: #{_lambda_.16} parent=0 // pred_check
    _
  $region15: #{_lambda_.16} parent=0 // pred_check_branch
    %17 = sbr.rel (0) target = $region17
  $region16: #{_lambda_.16} parent=0 // pred_region
    _
  $region17: #{_lambda_.16} parent=0 // pred_fallthru
    _
  // Predicated region
  $region18: #{_lambda_.16} parent=0 // pred_check
    _
  $region19: #{_lambda_.16} parent=0 // pred_check_branch
    %19 = sbr.rel (0) target = $region21
  $region20: #{_lambda_.16} parent=0 // pred_region
    _
  $region21: #{_lambda_.16} parent=0 // pred_fallthru
    _
  %v21 = vld [vmem:[%s0] sm:$0xf]
  %v22 = vld [vmem:[%s0 + $0x4] sm:$0xf]
  %v23 = vld [vmem:[%s1] sm:$0xf]
  %v24 = vld [vmem:[%s1 + $0x4] sm:$0xf]
  %v25 = vld [vmem:[%s1 + $0x8] sm:$0xf]
  %v26 = vld [vmem:[%s1 + $0xc] sm:$0xf]
  %v27 = vld [vmem:[%s1 + $0x10] sm:$0xf]
  %v28 = vld [vmem:[%s1 + $0x14] sm:$0xf]
  %v29 = vld [vmem:[%s1 + $0x18] sm:$0xf]
  %v30 = vld [vmem:[%s1 + $0x1c] sm:$0xf]
  %v31 = vld [vmem:[%s1 + $0x20] sm:$0xf]
  %v32 = vld [vmem:[%s1 + $0x24] sm:$0xf]
  %v33 = vld [vmem:[%s1 + $0x28] sm:$0xf]
  %v34 = vld [vmem:[%s1 + $0x2c] sm:$0xf]
  %v35 = vld [vmem:[%s1 + $0x30] sm:$0xf]
  %v36 = vld [vmem:[%s1 + $0x34] sm:$0xf]
  %v37 = vld [vmem:[%s1 + $0x38] sm:$0xf]
  %v38 = vld [vmem:[%s1 + $0x3c] sm:$0xf]
  %v39 = vld [vmem:[%s2] sm:$0x1]
  %v41 = vlaneseq
  %v42 = vshrl.u32 %v41, 7
  %v43 = vsub.s32 0, %v42
  %v44 = vrot.slane %v39, %v43
  %v48 = vunpack.c.l.b16 %v21
  %v49 = vunpack.c.l.b16 %v22
  %v50 = vpack.c.b16 %v49, %v48
  %v68 = vunpack.c.l.b16 %v23
  %v69 = vunpack.c.l.b16 %v24
  %v70 = vunpack.c.l.b16 %v25
  %v71 = vunpack.c.l.b16 %v26
  %v72 = vunpack.c.l.b16 %v27
  %v73 = vunpack.c.l.b16 %v28
  %v74 = vunpack.c.l.b16 %v29
  %v75 = vunpack.c.l.b16 %v30
  %v76 = vunpack.c.l.b16 %v31
  %v77 = vunpack.c.l.b16 %v32
  %v78 = vunpack.c.l.b16 %v33
  %v79 = vunpack.c.l.b16 %v34
  %v80 = vunpack.c.l.b16 %v35
  %v81 = vunpack.c.l.b16 %v36
  %v82 = vunpack.c.l.b16 %v37
  %v83 = vunpack.c.l.b16 %v38
  %v84 = vpack.c.b16 %v69, %v68
  %v85 = vpack.c.b16 %v71, %v70
  %v86 = vpack.c.b16 %v73, %v72
  %v87 = vpack.c.b16 %v75, %v74
  %v88 = vpack.c.b16 %v77, %v76
  %v89 = vpack.c.b16 %v79, %v78
  %v90 = vpack.c.b16 %v81, %v80
  %v91 = vpack.c.b16 %v83, %v82
  %100 = vmatprep.subr.bf16.mxu0 0
  %101 = vmatpush1.bf16.msra.mxu0 %v91
  %102 = vmatprep.subr.bf16.mxu0 0
  %103 = vmatpush1.bf16.msra.mxu0 %v90
  %104 = vmatprep.subr.bf16.mxu0 0
  %105 = vmatpush1.bf16.msra.mxu0 %v89
  %106 = vmatprep.subr.bf16.mxu0 0
  %107 = vmatpush1.bf16.msra.mxu0 %v88
  %108 = vmatprep.subr.bf16.mxu0 0
  %109 = vmatpush1.bf16.msra.mxu0 %v87
  %110 = vmatprep.subr.bf16.mxu0 0
  %111 = vmatpush1.bf16.msra.mxu0 %v86
  %112 = vmatprep.subr.bf16.mxu0 0
  %113 = vmatpush1.bf16.msra.mxu0 %v85
  %114 = vmatprep.subr.bf16.mxu0 0
  %115 = vmatpush1.bf16.msra.mxu0 %v84
  %116 = vmatprep.subr.bf16.mxu0 0
  %117 = vmatpush2.bf16.msra.mxu0 0
  %118 = vmatprep.subr.bf16.mxu0 0
  %119 = vmatpush2.bf16.msra.mxu0 0
  %120 = vmatprep.subr.bf16.mxu0 0
  %121 = vmatpush2.bf16.msra.mxu0 0
  %122 = vmatprep.subr.bf16.mxu0 0
  %123 = vmatpush2.bf16.msra.mxu0 0
  %124 = vmatprep.subr.bf16.mxu0 0
  %125 = vmatpush2.bf16.msra.mxu0 0
  %126 = vmatprep.subr.bf16.mxu0 0
  %127 = vmatpush2.bf16.msra.mxu0 0
  %128 = vmatprep.subr.bf16.mxu0 0
  %129 = vmatpush2.bf16.msra.mxu0 0
  %130 = vmatprep.subr.bf16.mxu0 0
  %131 = vmatpush2.bf16.msra.mxu0 0
  %132 = vmatprep.mubr.bf16.mxu0 0
  %133 = vmatmul.mubr.bf16.gmra.mxu0 %v50
  %v134 = vpop.f32.mrf.mxu0
  %v135 = vadd.f32 %v44, %v134
  %v136 = vpop.f32.mrf.mxu0
  %v137 = vpop.f32.mrf.mxu0
  %v138 = vadd.f32 %v44, %v137
  %v139 = vpop.f32.mrf.mxu0
  %140 = vdwg.mxu0
  %v141 = vld [vmem:[%s4] sm:$0xf]
  %v142 = vld [vmem:[%s4 + $0x4] sm:$0xf]
  %v143 = vunpack.c.l.bf16 %v141
  %v144 = vunpack.c.l.bf16 %v142
  %v145 = vld [vmem:[%s3] sm:$0x1]
  %v147 = vlaneseq
  %v148 = vshrl.u32 %v147, 7
  %v149 = vsub.s32 0, %v148
  %v150 = vrot.slane %v145, %v149
  %v152 = vmul.f32 %v135, %v150
  %v153 = vmul.f32 %v138, %v150
  %v154 = vadd.f32 %v143, %v152
  %v155 = vadd.f32 %v144, %v153
  %v156 = vpack.c.bf16 %v155, %v154
  %v158 = vunpack.c.l.b16 %v156
  %v159 = vunpack.c.h.b16 %v156
  %v160 = vpack.c.b16 %v158, %v158
  %v161 = vpack.c.b16 %v159, %v159
  %164 = vst [vmem:[%s5] sm:$0xf] %v160
  %165 = vst [vmem:[%s5 + $0x4] sm:$0xf] %v161
  // Predicated region
  $region22: #{_lambda_.16} parent=0 // pred_check
    _
  $region23: #{_lambda_.16} parent=0 // pred_check_branch
    %167 = sbr.rel (0) target = $region25
  $region24: #{_lambda_.16} parent=0 // pred_region
    _
  $region25: #{_lambda_.16} parent=0 // pred_fallthru
    _
  // Predicated region
  $region26: #{_lambda_.16} parent=0 // pred_check
    _
  $region27: #{_lambda_.16} parent=0 // pred_check_branch
    %169 = sbr.rel (0) target = $region29
  $region28: #{_lambda_.16} parent=0 // pred_region
    _
  $region29: #{_lambda_.16} parent=0 // pred_fallthru
    _

// kernel: _lambda_.13
$region0: #{_lambda_.13}
  #allocation0 [shape = 'u32[]', space=smem, size = 0x4, offset = 0x4, fixed_abs, tag = 'smem constant byte address 0x4 - core index']
  #allocation1 [shape = 'u32[144,128]{1,0:T(1,128)}', space=vmem, size = 0x12000, scoped, tag = 'internal scratch']
  %s0 = inlined_call_operand.vmem [shape: f32[8,192], index: 0, kind: input, shape index: {}]
  %s1 = inlined_call_operand.vmem [shape: bf16[192,128], index: 1, kind: input, shape index: {}]
  %s2 = inlined_call_operand.vmem [shape: f32[1,128], index: 2, kind: input, shape index: {}]
  %s3 = inlined_call_operand.vmem [shape: f32[8,128], index: 3, kind: output, shape index: {}]
  %s4 = sld [smem:[#allocation0]]
  $region22: #{_lambda_.13} parent=0
    _
  %s6 = ssub.s32 1, %s4
  %s7 = scalar_select 0, %s6, %s4
  // Predicated region
  $region2: #{_lambda_.13} parent=0 // pred_check
    _
  $region3: #{_lambda_.13} parent=0 // pred_check_branch
    %9 = sbr.rel (0) target = $region5
  $region4: #{_lambda_.13} parent=0 // pred_region
    _
  $region5: #{_lambda_.13} parent=0 // pred_fallthru
    _
  // Predicated region
  $region6: #{_lambda_.13} parent=0 // pred_check
    _
  $region7: #{_lambda_.13} parent=0 // pred_check_branch
    %11 = sbr.rel (0) target = $region9
  $region8: #{_lambda_.13} parent=0 // pred_region
    _
  $region9: #{_lambda_.13} parent=0 // pred_fallthru
    _
  // Predicated region
  $region10: #{_lambda_.13} parent=0 // pred_check
    _
  $region11: #{_lambda_.13} parent=0 // pred_check_branch
    %13 = sbr.rel (0) target = $region13
  $region12: #{_lambda_.13} parent=0 // pred_region
    _
  $region13: #{_lambda_.13} parent=0 // pred_fallthru
    _
  %v15 = vld [vmem:[%s0] sm:$0xff]
  %v16 = vld [vmem:[%s0 + $0x8] sm:$0xff]
  %v17 = vpack.c.bf16 %v15, %v15
  %v18 = vpack.c.bf16 %v16, %v16
  %v19 = vld [vmem:[%s1] sm:$0xf]
  %v20 = vld [vmem:[%s1 + $0x4] sm:$0xf]
  %v21 = vld [vmem:[%s1 + $0x8] sm:$0xf]
  %v22 = vld [vmem:[%s1 + $0xc] sm:$0xf]
  %v23 = vld [vmem:[%s1 + $0x10] sm:$0xf]
  %v24 = vld [vmem:[%s1 + $0x14] sm:$0xf]
  %v25 = vld [vmem:[%s1 + $0x18] sm:$0xf]
  %v26 = vld [vmem:[%s1 + $0x1c] sm:$0xf]
  %v27 = vld [vmem:[%s1 + $0x20] sm:$0xf]
  %v28 = vld [vmem:[%s1 + $0x24] sm:$0xf]
  %v29 = vld [vmem:[%s1 + $0x28] sm:$0xf]
  %v30 = vld [vmem:[%s1 + $0x2c] sm:$0xf]
  %v31 = vld [vmem:[%s1 + $0x30] sm:$0xf]
  %v32 = vld [vmem:[%s1 + $0x34] sm:$0xf]
  %v33 = vld [vmem:[%s1 + $0x38] sm:$0xf]
  %v34 = vld [vmem:[%s1 + $0x3c] sm:$0xf]
  %v35 = vld [vmem:[%s1 + $0x40] sm:$0xf]
  %v36 = vld [vmem:[%s1 + $0x44] sm:$0xf]
  %v37 = vld [vmem:[%s1 + $0x48] sm:$0xf]
  %v38 = vld [vmem:[%s1 + $0x4c] sm:$0xf]
  %v39 = vld [vmem:[%s1 + $0x50] sm:$0xf]
  %v40 = vld [vmem:[%s1 + $0x54] sm:$0xf]
  %v41 = vld [vmem:[%s1 + $0x58] sm:$0xf]
  %v42 = vld [vmem:[%s1 + $0x5c] sm:$0xf]
  %v43 = vld [vmem:[%s2] sm:$0x1]
  %v45 = vlaneseq
  %v46 = vshrl.u32 %v45, 7
  %v47 = vsub.s32 0, %v46
  %v48 = vrot.slane %v43, %v47
  %v74 = vunpack.c.l.b16 %v19
  %v75 = vunpack.c.l.b16 %v20
  %v76 = vunpack.c.l.b16 %v21
  %v77 = vunpack.c.l.b16 %v22
  %v78 = vunpack.c.l.b16 %v23
  %v79 = vunpack.c.l.b16 %v24
  %v80 = vunpack.c.l.b16 %v25
  %v81 = vunpack.c.l.b16 %v26
  %v82 = vunpack.c.l.b16 %v27
  %v83 = vunpack.c.l.b16 %v28
  %v84 = vunpack.c.l.b16 %v29
  %v85 = vunpack.c.l.b16 %v30
  %v86 = vunpack.c.l.b16 %v31
  %v87 = vunpack.c.l.b16 %v32
  %v88 = vunpack.c.l.b16 %v33
  %v89 = vunpack.c.l.b16 %v34
  %v90 = vunpack.c.l.b16 %v35
  %v91 = vunpack.c.l.b16 %v36
  %v92 = vunpack.c.l.b16 %v37
  %v93 = vunpack.c.l.b16 %v38
  %v94 = vunpack.c.l.b16 %v39
  %v95 = vunpack.c.l.b16 %v40
  %v96 = vunpack.c.l.b16 %v41
  %v97 = vunpack.c.l.b16 %v42
  %v98 = vpack.c.b16 %v75, %v74
  %v99 = vpack.c.b16 %v77, %v76
  %v100 = vpack.c.b16 %v79, %v78
  %v101 = vpack.c.b16 %v81, %v80
  %v102 = vpack.c.b16 %v83, %v82
  %v103 = vpack.c.b16 %v85, %v84
  %v104 = vpack.c.b16 %v87, %v86
  %v105 = vpack.c.b16 %v89, %v88
  %v106 = vpack.c.b16 %v91, %v90
  %v107 = vpack.c.b16 %v93, %v92
  %v108 = vpack.c.b16 %v95, %v94
  %v109 = vpack.c.b16 %v97, %v96
  %vm122 = vcmask 523264
  %v124 = vsel %vm122, %v18, 0
  %126 = vmatprep.subr.bf16.mxu0 0
  %127 = vmatpush1.bf16.msra.mxu0 %v105
  %128 = vmatprep.subr.bf16.mxu0 0
  %129 = vmatpush1.bf16.msra.mxu0 %v104
  %130 = vmatprep.subr.bf16.mxu0 0
  %131 = vmatpush1.bf16.msra.mxu0 %v103
  %132 = vmatprep.subr.bf16.mxu0 0
  %133 = vmatpush1.bf16.msra.mxu0 %v102
  %134 = vmatprep.subr.bf16.mxu0 0
  %135 = vmatpush1.bf16.msra.mxu0 %v101
  %136 = vmatprep.subr.bf16.mxu0 0
  %137 = vmatpush1.bf16.msra.mxu0 %v100
  %138 = vmatprep.subr.bf16.mxu0 0
  %139 = vmatpush1.bf16.msra.mxu0 %v99
  %140 = vmatprep.subr.bf16.mxu0 0
  %141 = vmatpush1.bf16.msra.mxu0 %v98
  %142 = vmatprep.subr.bf16.mxu0 0
  %143 = vmatpush2.bf16.msra.mxu0 0
  %144 = vmatprep.subr.bf16.mxu0 0
  %145 = vmatpush2.bf16.msra.mxu0 0
  %146 = vmatprep.subr.bf16.mxu0 0
  %147 = vmatpush2.bf16.msra.mxu0 0
  %148 = vmatprep.subr.bf16.mxu0 0
  %149 = vmatpush2.bf16.msra.mxu0 0
  %150 = vmatprep.subr.bf16.mxu0 0
  %151 = vmatpush2.bf16.msra.mxu0 %v109
  %152 = vmatprep.subr.bf16.mxu0 0
  %153 = vmatpush2.bf16.msra.mxu0 %v108
  %154 = vmatprep.subr.bf16.mxu0 0
  %155 = vmatpush2.bf16.msra.mxu0 %v107
  %156 = vmatprep.subr.bf16.mxu0 0
  %157 = vmatpush2.bf16.msra.mxu0 %v106
  %158 = vmatprep.mubr.bf16.mxu0 %v124
  %159 = vmatmul.mubr.bf16.gmra.mxu0 %v17
  %v160 = vpop.f32.mrf.mxu0
  %v161 = vadd.f32 %v48, %v160
  %v162 = vpop.f32.mrf.mxu0
  %v163 = vpop.f32.mrf.mxu0
  %v164 = vpop.f32.mrf.mxu0
  %165 = vdwg.mxu0
  %166 = vst [vmem:[%s3] sm:$0xff] %v161
  // Predicated region
  $region14: #{_lambda_.13} parent=0 // pred_check
    _
  $region15: #{_lambda_.13} parent=0 // pred_check_branch
    %168 = sbr.rel (0) target = $region17
  $region16: #{_lambda_.13} parent=0 // pred_region
    _
  $region17: #{_lambda_.13} parent=0 // pred_fallthru
    _
  // Predicated region
  $region18: #{_lambda_.13} parent=0 // pred_check
    _
  $region19: #{_lambda_.13} parent=0 // pred_check_branch
    %170 = sbr.rel (0) target = $region21
  $region20: #{_lambda_.13} parent=0 // pred_region
    _
  $region21: #{_lambda_.13} parent=0 // pred_fallthru
    _

// kernel: _lambda_.14
$region0: #{_lambda_.14}
  #allocation0 [shape = 'u32[]', space=smem, size = 0x4, offset = 0x4, fixed_abs, tag = 'smem constant byte address 0x4 - core index']
  #allocation1 [shape = 'u32[144,128]{1,0:T(1,128)}', space=vmem, size = 0x12000, scoped, tag = 'internal scratch']
  %s0 = inlined_call_operand.vmem [shape: bf16[16,128], index: 0, kind: input, shape index: {}]
  %s1 = inlined_call_operand.vmem [shape: f32[1,128], index: 1, kind: input, shape index: {}]
  %s2 = inlined_call_operand.vmem [shape: f32[1,128], index: 2, kind: input, shape index: {}]
  %s3 = inlined_call_operand.vmem [shape: bf16[128,384], index: 3, kind: input, shape index: {}]
  %s4 = inlined_call_operand.vmem [shape: f32[1,384], index: 4, kind: input, shape index: {}]
  %s5 = inlined_call_operand.vmem [shape: bf16[16,384], index: 5, kind: output, shape index: {}]
  %s6 = sld [smem:[#allocation0]]
  $region30: #{_lambda_.14} parent=0
    _
  %s8 = ssub.s32 1, %s6
  %s9 = scalar_select 0, %s8, %s6
  // Predicated region
  $region2: #{_lambda_.14} parent=0 // pred_check
    _
  $region3: #{_lambda_.14} parent=0 // pred_check_branch
    %11 = sbr.rel (0) target = $region5
  $region4: #{_lambda_.14} parent=0 // pred_region
    _
  $region5: #{_lambda_.14} parent=0 // pred_fallthru
    _
  // Predicated region
  $region6: #{_lambda_.14} parent=0 // pred_check
    _
  $region7: #{_lambda_.14} parent=0 // pred_check_branch
    %13 = sbr.rel (0) target = $region9
  $region8: #{_lambda_.14} parent=0 // pred_region
    _
  $region9: #{_lambda_.14} parent=0 // pred_fallthru
    _
  // Predicated region
  $region10: #{_lambda_.14} parent=0 // pred_check
    _
  $region11: #{_lambda_.14} parent=0 // pred_check_branch
    %15 = sbr.rel (0) target = $region13
  $region12: #{_lambda_.14} parent=0 // pred_region
    _
  $region13: #{_lambda_.14} parent=0 // pred_fallthru
    _
  // Predicated region
  $region14: #{_lambda_.14} parent=0 // pred_check
    _
  $region15: #{_lambda_.14} parent=0 // pred_check_branch
    %17 = sbr.rel (0) target = $region17
  $region16: #{_lambda_.14} parent=0 // pred_region
    _
  $region17: #{_lambda_.14} parent=0 // pred_fallthru
    _
  // Predicated region
  $region18: #{_lambda_.14} parent=0 // pred_check
    _
  $region19: #{_lambda_.14} parent=0 // pred_check_branch
    %19 = sbr.rel (0) target = $region21
  $region20: #{_lambda_.14} parent=0 // pred_region
    _
  $region21: #{_lambda_.14} parent=0 // pred_fallthru
    _
  %v21 = vld [vmem:[%s0] sm:$0xf]
  %v22 = vld [vmem:[%s0 + $0x4] sm:$0xf]
  %v23 = vunpack.c.l.bf16 %v21
  %v24 = vunpack.c.l.bf16 %v22
  %25 = vadd.xlane.f32.xlu0 %v23
  %v26 = vpop.xlane.xlu0 %25
  %27 = vadd.xlane.f32.xlu0 %v24
  %v28 = vpop.xlane.xlu0 %27
  %v29 = vrcp.pop 128.0
  %v30 = vmul.f32 %v26, %v29
  %v31 = vmul.f32 %v28, %v29
  %v32 = vsub.f32 %v23, %v30
  %v33 = vsub.f32 %v24, %v31
  %v34 = vmul.f32 %v32, %v32
  %v35 = vmul.f32 %v33, %v33
  %36 = vadd.xlane.f32.xlu0 %v34
  %v37 = vpop.xlane.xlu0 %36
  %38 = vadd.xlane.f32.xlu0 %v35
  %v39 = vpop.xlane.xlu0 %38
  %v40 = vmul.f32 %v37, %v29
  %v41 = vmul.f32 %v39, %v29
  %v42 = vadd.f32 %v40, 1e-06
  %v43 = vadd.f32 %v41, 1e-06
  %v44 = vrsqrt.pop %v42
  %v45 = vrsqrt.pop %v43
  %v46 = vmul.f32 %v32, %v44
  %v47 = vmul.f32 %v33, %v45
  %v48 = vld [vmem:[%s1] sm:$0x1]
  %v50 = vlaneseq
  %v51 = vshrl.u32 %v50, 7
  %v52 = vsub.s32 0, %v51
  %v53 = vrot.slane %v48, %v52
  %v55 = vmul.f32 %v46, %v53
  %v56 = vmul.f32 %v47, %v53
  %v57 = vld [vmem:[%s2] sm:$0x1]
  %v59 = vlaneseq
  %v60 = vshrl.u32 %v59, 7
  %v61 = vsub.s32 0, %v60
  %v62 = vrot.slane %v57, %v61
  %v64 = vadd.f32 %v55, %v62
  %v65 = vadd.f32 %v56, %v62
  %v66 = vpack.c.bf16 %v65, %v64
  %v67 = vld [vmem:[%s3] sm:$0xff]
  %v68 = vld [vmem:[%s3 + $0x8] sm:$0xf]
  %v69 = vld [vmem:[%s3 + $0xc] sm:$0xff]
  %v70 = vld [vmem:[%s3 + $0x14] sm:$0xf]
  %v71 = vld [vmem:[%s3 + $0x18] sm:$0xff]
  %v72 = vld [vmem:[%s3 + $0x20] sm:$0xf]
  %v73 = vld [vmem:[%s3 + $0x24] sm:$0xff]
  %v74 = vld [vmem:[%s3 + $0x2c] sm:$0xf]
  %v75 = vld [vmem:[%s3 + $0x30] sm:$0xff]
  %v76 = vld [vmem:[%s3 + $0x38] sm:$0xf]
  %v77 = vld [vmem:[%s3 + $0x3c] sm:$0xff]
  %v78 = vld [vmem:[%s3 + $0x44] sm:$0xf]
  %v79 = vld [vmem:[%s3 + $0x48] sm:$0xff]
  %v80 = vld [vmem:[%s3 + $0x50] sm:$0xf]
  %v81 = vld [vmem:[%s3 + $0x54] sm:$0xff]
  %v82 = vld [vmem:[%s3 + $0x5c] sm:$0xf]
  %v83 = vld [vmem:[%s3 + $0x60] sm:$0xff]
  %v84 = vld [vmem:[%s3 + $0x68] sm:$0xf]
  %v85 = vld [vmem:[%s3 + $0x6c] sm:$0xff]
  %v86 = vld [vmem:[%s3 + $0x74] sm:$0xf]
  %v87 = vld [vmem:[%s3 + $0x78] sm:$0xff]
  %v88 = vld [vmem:[%s3 + $0x80] sm:$0xf]
  %v89 = vld [vmem:[%s3 + $0x84] sm:$0xff]
  %v90 = vld [vmem:[%s3 + $0x8c] sm:$0xf]
  %v91 = vld [vmem:[%s3 + $0x90] sm:$0xff]
  %v92 = vld [vmem:[%s3 + $0x98] sm:$0xf]
  %v93 = vld [vmem:[%s3 + $0x9c] sm:$0xff]
  %v94 = vld [vmem:[%s3 + $0xa4] sm:$0xf]
  %v95 = vld [vmem:[%s3 + $0xa8] sm:$0xff]
  %v96 = vld [vmem:[%s3 + $0xb0] sm:$0xf]
  %v97 = vld [vmem:[%s3 + $0xb4] sm:$0xff]
  %v98 = vld [vmem:[%s3 + $0xbc] sm:$0xf]
  %v99 = vld [vmem:[%s4] sm:$0x7]
  %v101 = vlaneseq
  %v102 = vshrl.u32 %v101, 7
  %v103 = vsub.s32 0, %v102
  %v104 = vrot.slane %v99, %v103
  %v105 = vlaneseq
  %v106 = vshrl.u32 %v105, 7
  %v107 = vsub.s32 1, %v106
  %v108 = vrot.slane %v99, %v107
  %v109 = vlaneseq
  %v110 = vshrl.u32 %v109, 7
  %v111 = vsub.s32 2, %v110
  %v112 = vrot.slane %v99, %v111
  %v148 = vunpack.c.l.b16 %v67
  %v149 = vunpack.c.h.b16 %v67
  %v150 = vunpack.c.l.b16 %v68
  %v151 = vunpack.c.l.b16 %v69
  %v152 = vunpack.c.h.b16 %v69
  %v153 = vunpack.c.l.b16 %v70
  %v154 = vunpack.c.l.b16 %v71
  %v155 = vunpack.c.h.b16 %v71
  %v156 = vunpack.c.l.b16 %v72
  %v157 = vunpack.c.l.b16 %v73
  %v158 = vunpack.c.h.b16 %v73
  %v159 = vunpack.c.l.b16 %v74
  %v160 = vunpack.c.l.b16 %v75
  %v161 = vunpack.c.h.b16 %v75
  %v162 = vunpack.c.l.b16 %v76
  %v163 = vunpack.c.l.b16 %v77
  %v164 = vunpack.c.h.b16 %v77
  %v165 = vunpack.c.l.b16 %v78
  %v166 = vunpack.c.l.b16 %v79
  %v167 = vunpack.c.h.b16 %v79
  %v168 = vunpack.c.l.b16 %v80
  %v169 = vunpack.c.l.b16 %v81
  %v170 = vunpack.c.h.b16 %v81
  %v171 = vunpack.c.l.b16 %v82
  %v172 = vunpack.c.l.b16 %v83
  %v173 = vunpack.c.h.b16 %v83
  %v174 = vunpack.c.l.b16 %v84
  %v175 = vunpack.c.l.b16 %v85
  %v176 = vunpack.c.h.b16 %v85
  %v177 = vunpack.c.l.b16 %v86
  %v178 = vunpack.c.l.b16 %v87
  %v179 = vunpack.c.h.b16 %v87
  %v180 = vunpack.c.l.b16 %v88
  %v181 = vunpack.c.l.b16 %v89
  %v182 = vunpack.c.h.b16 %v89
  %v183 = vunpack.c.l.b16 %v90
  %v184 = vunpack.c.l.b16 %v91
  %v185 = vunpack.c.h.b16 %v91
  %v186 = vunpack.c.l.b16 %v92
  %v187 = vunpack.c.l.b16 %v93
  %v188 = vunpack.c.h.b16 %v93
  %v189 = vunpack.c.l.b16 %v94
  %v190 = vunpack.c.l.b16 %v95
  %v191 = vunpack.c.h.b16 %v95
  %v192 = vunpack.c.l.b16 %v96
  %v193 = vunpack.c.l.b16 %v97
  %v194 = vunpack.c.h.b16 %v97
  %v195 = vunpack.c.l.b16 %v98
  %v196 = vpack.c.b16 %v151, %v148
  %v197 = vpack.c.b16 %v152, %v149
  %v198 = vpack.c.b16 %v153, %v150
  %v199 = vpack.c.b16 %v157, %v154
  %v200 = vpack.c.b16 %v158, %v155
  %v201 = vpack.c.b16 %v159, %v156
  %v202 = vpack.c.b16 %v163, %v160
  %v203 = vpack.c.b16 %v164, %v161
  %v204 = vpack.c.b16 %v165, %v162
  %v205 = vpack.c.b16 %v169, %v166
  %v206 = vpack.c.b16 %v170, %v167
  %v207 = vpack.c.b16 %v171, %v168
  %v208 = vpack.c.b16 %v175, %v172
  %v209 = vpack.c.b16 %v176, %v173
  %v210 = vpack.c.b16 %v177, %v174
  %v211 = vpack.c.b16 %v181, %v178
  %v212 = vpack.c.b16 %v182, %v179
  %v213 = vpack.c.b16 %v183, %v180
  %v214 = vpack.c.b16 %v187, %v184
  %v215 = vpack.c.b16 %v188, %v185
  %v216 = vpack.c.b16 %v189, %v186
  %v217 = vpack.c.b16 %v193, %v190
  %v218 = vpack.c.b16 %v194, %v191
  %v219 = vpack.c.b16 %v195, %v192
  %244 = vmatprep.subr.bf16.mxu0 %v218
  %245 = vmatpush1.bf16.msra.mxu0 %v217
  %246 = vmatprep.subr.bf16.mxu0 %v215
  %247 = vmatpush1.bf16.msra.mxu0 %v214
  %248 = vmatprep.subr.bf16.mxu0 %v212
  %249 = vmatpush1.bf16.msra.mxu0 %v211
  %250 = vmatprep.subr.bf16.mxu0 %v209
  %251 = vmatpush1.bf16.msra.mxu0 %v208
  %252 = vmatprep.subr.bf16.mxu0 %v206
  %253 = vmatpush1.bf16.msra.mxu0 %v205
  %254 = vmatprep.subr.bf16.mxu0 %v203
  %255 = vmatpush1.bf16.msra.mxu0 %v202
  %256 = vmatprep.subr.bf16.mxu0 %v200
  %257 = vmatpush1.bf16.msra.mxu0 %v199
  %258 = vmatprep.subr.bf16.mxu0 %v197
  %259 = vmatpush1.bf16.msra.mxu0 %v196
  %260 = vmatprep.subr.bf16.mxu0 0
  %261 = vmatpush2.bf16.msra.mxu0 0
  %262 = vmatprep.subr.bf16.mxu0 0
  %263 = vmatpush2.bf16.msra.mxu0 0
  %264 = vmatprep.subr.bf16.mxu0 0
  %265 = vmatpush2.bf16.msra.mxu0 0
  %266 = vmatprep.subr.bf16.mxu0 0
  %267 = vmatpush2.bf16.msra.mxu0 0
  %268 = vmatprep.subr.bf16.mxu0 0
  %269 = vmatpush2.bf16.msra.mxu0 0
  %270 = vmatprep.subr.bf16.mxu0 0
  %271 = vmatpush2.bf16.msra.mxu0 0
  %272 = vmatprep.subr.bf16.mxu0 0
  %273 = vmatpush2.bf16.msra.mxu0 0
  %274 = vmatprep.subr.bf16.mxu0 0
  %275 = vmatpush2.bf16.msra.mxu0 0
  %276 = vmatprep.mubr.bf16.mxu0 0
  %277 = vmatmul.mubr.bf16.gmra.mxu0 %v66
  %v278 = vpop.f32.mrf.mxu0
  %v279 = vadd.f32 %v104, %v278
  %v280 = vpop.f32.mrf.mxu0
  %v281 = vadd.f32 %v108, %v280
  %v282 = vpop.f32.mrf.mxu0
  %v283 = vadd.f32 %v104, %v282
  %v284 = vpop.f32.mrf.mxu0
  %v285 = vadd.f32 %v108, %v284
  %286 = vdwg.mxu0
  %287 = vmatprep.subr.bf16.mxu0 0
  %288 = vmatpush1.bf16.msra.mxu0 %v219
  %289 = vmatprep.subr.bf16.mxu0 0
  %290 = vmatpush1.bf16.msra.mxu0 %v216
  %291 = vmatprep.subr.bf16.mxu0 0
  %292 = vmatpush1.bf16.msra.mxu0 %v213
  %293 = vmatprep.subr.bf16.mxu0 0
  %294 = vmatpush1.bf16.msra.mxu0 %v210
  %295 = vmatprep.subr.bf16.mxu0 0
  %296 = vmatpush1.bf16.msra.mxu0 %v207
  %297 = vmatprep.subr.bf16.mxu0 0
  %298 = vmatpush1.bf16.msra.mxu0 %v204
  %299 = vmatprep.subr.bf16.mxu0 0
  %300 = vmatpush1.bf16.msra.mxu0 %v201
  %301 = vmatprep.subr.bf16.mxu0 0
  %302 = vmatpush1.bf16.msra.mxu0 %v198
  %303 = vmatprep.subr.bf16.mxu0 0
  %304 = vmatpush2.bf16.msra.mxu0 0
  %305 = vmatprep.subr.bf16.mxu0 0
  %306 = vmatpush2.bf16.msra.mxu0 0
  %307 = vmatprep.subr.bf16.mxu0 0
  %308 = vmatpush2.bf16.msra.mxu0 0
  %309 = vmatprep.subr.bf16.mxu0 0
  %310 = vmatpush2.bf16.msra.mxu0 0
  %311 = vmatprep.subr.bf16.mxu0 0
  %312 = vmatpush2.bf16.msra.mxu0 0
  %313 = vmatprep.subr.bf16.mxu0 0
  %314 = vmatpush2.bf16.msra.mxu0 0
  %315 = vmatprep.subr.bf16.mxu0 0
  %316 = vmatpush2.bf16.msra.mxu0 0
  %317 = vmatprep.subr.bf16.mxu0 0
  %318 = vmatpush2.bf16.msra.mxu0 0
  %319 = vmatprep.mubr.bf16.mxu0 0
  %320 = vmatmul.mubr.bf16.gmra.mxu0 %v66
  %v321 = vpop.f32.mrf.mxu0
  %v322 = vadd.f32 %v112, %v321
  %v323 = vpop.f32.mrf.mxu0
  %v324 = vpop.f32.mrf.mxu0
  %v325 = vadd.f32 %v112, %v324
  %v326 = vpop.f32.mrf.mxu0
  %327 = vdwg.mxu0
  %v328 = vpack.c.bf16 %v283, %v279
  %v329 = vpack.c.bf16 %v285, %v281
  %v330 = vpack.c.bf16 %v325, %v322
  %v334 = vunpack.c.l.b16 %v328
  %v335 = vunpack.c.l.b16 %v329
  %v336 = vunpack.c.l.b16 %v330
  %v337 = vunpack.c.h.b16 %v328
  %v338 = vunpack.c.h.b16 %v329
  %v339 = vunpack.c.h.b16 %v330
  %v340 = vpack.c.b16 %v335, %v334
  %v341 = vpack.c.b16 %v336, %v336
  %v342 = vpack.c.b16 %v338, %v337
  %v343 = vpack.c.b16 %v339, %v339
  %348 = vst [vmem:[%s5] sm:$0xff] %v340
  %349 = vst [vmem:[%s5 + $0x8] sm:$0xf] %v341
  %350 = vst [vmem:[%s5 + $0xc] sm:$0xff] %v342
  %351 = vst [vmem:[%s5 + $0x14] sm:$0xf] %v343
  // Predicated region
  $region22: #{_lambda_.14} parent=0 // pred_check
    _
  $region23: #{_lambda_.14} parent=0 // pred_check_branch
    %353 = sbr.rel (0) target = $region25
  $region24: #{_lambda_.14} parent=0 // pred_region
    _
  $region25: #{_lambda_.14} parent=0 // pred_fallthru
    _
  // Predicated region
  $region26: #{_lambda_.14} parent=0 // pred_check
    _
  $region27: #{_lambda_.14} parent=0 // pred_check_branch
    %355 = sbr.rel (0) target = $region29
  $region28: #{_lambda_.14} parent=0 // pred_region
    _
  $region29: #{_lambda_.14} parent=0 // pred_fallthru
    _

// kernel: _lambda_.15
$region0: #{_lambda_.15}
  #allocation0 [shape = 'u32[]', space=smem, size = 0x4, offset = 0x4, fixed_abs, tag = 'smem constant byte address 0x4 - core index']
  #allocation1 [shape = 'u32[144,128]{1,0:T(1,128)}', space=vmem, size = 0x12000, scoped, tag = 'internal scratch']
  #allocation2 [shape = 'f32[2,8,1]{2,1,0:T(8,128)}', space=vmem, size = 0x2000, scoped, tag = 'scratch operand']
  #allocation3 [shape = 'f32[2,8,1]{2,1,0:T(8,128)}', space=vmem, size = 0x2000, scoped, tag = 'scratch operand']
  #allocation4 [shape = 'f32[2,8,64]{2,1,0:T(8,128)}', space=vmem, size = 0x2000, scoped, tag = 'scratch operand']
  %s0 = inlined_call_operand.vmem [shape: bf16[2,8,384], index: 0, kind: input, shape index: {}, may-alias: {0,1,2}]
  %s1 = inlined_call_operand.vmem [shape: bf16[2,8,384], index: 1, kind: input, shape index: {}, may-alias: {0,1,2}]
  %s2 = inlined_call_operand.vmem [shape: bf16[2,8,384], index: 2, kind: input, shape index: {}, may-alias: {0,1,2}]
  %s3 = inlined_call_operand.vmem [shape: bf16[2,8,128], index: 3, kind: output, shape index: {}]
  %s4 = sld [smem:[#allocation0]]
  $region53: #{_lambda_.15} parent=0
    _
  %s6 = ssub.s32 1, %s4
  %s7 = scalar_select 0, %s6, %s4
  loop: start=0, step=1, limit=4
  $region2: #{_lambda_.15} parent=0 // loop_pre_header
    _
  $region3: #{_lambda_.15} parent=0 // loop_header
    %s9 = sphi 0, %s13
    %p10 = scmp.ge.s32.totalorder %s9, 4
    %s16 = sphi 0, %s35
    %s17 = sphi 0, %s31
    %s18 = sphi 0, %s27
    %s19 = sphi 0, %s16
    %s20 = sphi 0, %s17
    %s21 = sphi 0, %s18
    %s22 = sphi 0, %s19
    %s23 = sphi 0, %s20
    %s24 = sphi 0, %s21
    %s40 = sphi 0, %s42
    %s43 = sphi 0, %s40
    %s44 = sphi 0, %s43
    %s60 = sphi 0, %s44
    %s72 = sphi 0, %s74
    %s75 = sphi 0, %s72
    %s76 = sphi 0, %s75
    %s92 = sphi 0, %s76
    %s104 = sphi 0, %s106
    %s107 = sphi 0, %s104
    %s108 = sphi 0, %s107
    %s124 = sphi 0, %s108
    %s132 = sphi 0, %s134
    %s135 = sphi 0, %s132
    %s136 = sphi 0, %s135
    %s152 = sphi 0, %s136
  $region4: #{_lambda_.15} parent=0 // loop_header_branch
    %12 = sbr.rel (%p10) target = $region8
  $region5: #{_lambda_.15} parent=0 // loop_body
    %s14 = ssub.s32 %s9, 1
    %s15 = ssub.s32 %s9, 2
    %s25 = sadd.s32 1, %s18
    %p26 = scmp.ge.s32.totalorder %s25, 1
    %s27 = scalar_select %p26, 0, %s25
    %s28 = sadd.s32 1, %s17
    %s29 = scalar_select %p26, %s28, %s17
    %p30 = scmp.ge.s32.totalorder %s29, 1
    %s31 = scalar_select %p30, 0, %s29
    %s32 = sadd.s32 1, %s16
    %s33 = scalar_select %p30, %s32, %s16
    %p34 = scmp.ge.s32.totalorder %s33, 2
    %s35 = scalar_select %p34, 0, %s33
    %s36 = ssub.s32 %s16, %s35
    %s37 = ssub.s32 %s17, %s31
    %s38 = sor.u32 %s36, %s37
    %p39 = scmp.eq.s32.totalorder %s38, 0
    %s41 = sadd.s32 %s40, 1
    %s42 = scalar_select %p39, %s40, %s41
    %p45 = pneg %p39
    %p46 = scmp.eq.s32.totalorder %s9, 1
    %p47 = por %p45, %p46
    %p48 = scmp.ne.s32.totalorder %s40, %s43
    %p49 = scmp.eq.s32.totalorder %s9, 0
    %p50 = por %p48, %p49
    %p51 = scmp.ne.s32.totalorder %s40, %s43
    %p52 = scmp.eq.s32.totalorder %s14, 1
    %p53 = por %p51, %p52
    %p54 = scmp.ne.s32.totalorder %s43, %s44
    %p55 = scmp.eq.s32.totalorder %s14, 0
    %p56 = por %p54, %p55
    %p57 = scmp.ne.s32.totalorder %s43, %s44
    %p58 = scmp.eq.s32.totalorder %s15, 1
    %p59 = por %p57, %p58
    %p61 = scmp.ne.s32.totalorder %s44, %s60
    %p62 = scmp.eq.s32.totalorder %s15, 0
    %p63 = por %p61, %p62
    %s64 = sadd.s32 %s17, 1
    %s65 = sadd.s32 %s31, 1
    %s66 = ssub.s32 %s16, %s35
    %s67 = ssub.s32 %s18, %s27
    %s68 = sor.u32 %s66, %s67
    %s69 = ssub.s32 %s64, %s65
    %s70 = sor.u32 %s68, %s69
    %p71 = scmp.eq.s32.totalorder %s70, 0
    %s73 = sadd.s32 %s72, 1
    %s74 = scalar_select %p71, %s72, %s73
    %p77 = pneg %p71
    %p78 = scmp.eq.s32.totalorder %s9, 1
    %p79 = por %p77, %p78
    %p80 = scmp.ne.s32.totalorder %s72, %s75
    %p81 = scmp.eq.s32.totalorder %s9, 0
    %p82 = por %p80, %p81
    %p83 = scmp.ne.s32.totalorder %s72, %s75
    %p84 = scmp.eq.s32.totalorder %s14, 1
    %p85 = por %p83, %p84
    %p86 = scmp.ne.s32.totalorder %s75, %s76
    %p87 = scmp.eq.s32.totalorder %s14, 0
    %p88 = por %p86, %p87
    %p89 = scmp.ne.s32.totalorder %s75, %s76
    %p90 = scmp.eq.s32.totalorder %s15, 1
    %p91 = por %p89, %p90
    %p93 = scmp.ne.s32.totalorder %s76, %s92
    %p94 = scmp.eq.s32.totalorder %s15, 0
    %p95 = por %p93, %p94
    %s96 = sadd.s32 %s17, 2
    %s97 = sadd.s32 %s31, 2
    %s98 = ssub.s32 %s16, %s35
    %s99 = ssub.s32 %s18, %s27
    %s100 = sor.u32 %s98, %s99
    %s101 = ssub.s32 %s96, %s97
    %s102 = sor.u32 %s100, %s101
    %p103 = scmp.eq.s32.totalorder %s102, 0
    %s105 = sadd.s32 %s104, 1
    %s106 = scalar_select %p103, %s104, %s105
    %p109 = pneg %p103
    %p110 = scmp.eq.s32.totalorder %s9, 1
    %p111 = por %p109, %p110
    %p112 = scmp.ne.s32.totalorder %s104, %s107
    %p113 = scmp.eq.s32.totalorder %s9, 0
    %p114 = por %p112, %p113
    %p115 = scmp.ne.s32.totalorder %s104, %s107
    %p116 = scmp.eq.s32.totalorder %s14, 1
    %p117 = por %p115, %p116
    %p118 = scmp.ne.s32.totalorder %s107, %s108
    %p119 = scmp.eq.s32.totalorder %s14, 0
    %p120 = por %p118, %p119
    %p121 = scmp.ne.s32.totalorder %s107, %s108
    %p122 = scmp.eq.s32.totalorder %s15, 1
    %p123 = por %p121, %p122
    %p125 = scmp.ne.s32.totalorder %s108, %s124
    %p126 = scmp.eq.s32.totalorder %s15, 0
    %p127 = por %p125, %p126
    %s128 = ssub.s32 %s16, %s35
    %s129 = ssub.s32 %s17, %s31
    %s130 = sor.u32 %s128, %s129
    %p131 = scmp.eq.s32.totalorder %s130, 0
    %s133 = sadd.s32 %s132, 1
    %s134 = scalar_select %p131, %s132, %s133
    %p137 = pneg %p131
    %p138 = scmp.eq.s32.totalorder %s9, 1
    %p139 = por %p137, %p138
    %p140 = scmp.ne.s32.totalorder %s132, %s135
    %p141 = scmp.eq.s32.totalorder %s9, 0
    %p142 = por %p140, %p141
    %p143 = scmp.ne.s32.totalorder %s132, %s135
    %p144 = scmp.eq.s32.totalorder %s14, 1
    %p145 = por %p143, %p144
    %p146 = scmp.ne.s32.totalorder %s135, %s136
    %p147 = scmp.eq.s32.totalorder %s14, 0
    %p148 = por %p146, %p147
    %p149 = scmp.ne.s32.totalorder %s135, %s136
    %p150 = scmp.eq.s32.totalorder %s15, 1
    %p151 = por %p149, %p150
    %p153 = scmp.ne.s32.totalorder %s136, %s152
    %p154 = scmp.eq.s32.totalorder %s15, 0
    %p155 = por %p153, %p154
    %p156 = scmp.le.s32.totalorder 1, %s9
    %p157 = scmp.lt.s32.totalorder %s9, 3
    %p158 = pnand %p156, %p157
    %p159 = pneg %p158
    // Predicated region
    $region9: #{_lambda_.15} parent=5 // pred_check
      _
    $region10: #{_lambda_.15} parent=5 // pred_check_branch
      %161 = sbr.rel (%p158) target = $region12
    $region11: #{_lambda_.15} parent=5 // pred_region
      %s162 = ssub.s32 %s9, 1
    $region12: #{_lambda_.15} parent=5 // pred_fallthru
      _
    %p163 = scmp.lt.s32.totalorder %s9, 2
    // Predicated region
    $region13: #{_lambda_.15} parent=5 // pred_check
      %p164 = pneg %p163
    $region14: #{_lambda_.15} parent=5 // pred_check_branch
      %166 = sbr.rel (%p164) target = $region16
    $region15: #{_lambda_.15} parent=5 // pred_region
      // Predicated region
      $region17: #{_lambda_.15} parent=15 // pred_check
        %p167 = pneg %p50
      $region18: #{_lambda_.15} parent=15 // pred_check_branch
        %169 = sbr.rel (%p167) target = $region20
      $region19: #{_lambda_.15} parent=15 // pred_region
        %p170 = scmp.lt.s32.totalorder %s16, 1
        %s171 = scalar_select %p170, %s16, 1
        %p172 = scmp.lt.s32.totalorder %s17, 2
        %s173 = scalar_select %p172, %s17, 2
        %s174 = smul.addr %s171, 3
        %s175 = sadd.s32 %s173, %s174
        %s176 = smul.addr %s175, 4
        %s177 = scalar_lea.vmem %s0, %s176
      $region20: #{_lambda_.15} parent=15 // pred_fallthru
        _
      // Predicated region
      $region21: #{_lambda_.15} parent=15 // pred_check
        %p178 = pneg %p82
      $region22: #{_lambda_.15} parent=15 // pred_check_branch
        %180 = sbr.rel (%p178) target = $region24
      $region23: #{_lambda_.15} parent=15 // pred_region
        %s181 = sadd.s32 %s17, 1
        %p182 = scmp.lt.s32.totalorder %s16, 1
        %s183 = scalar_select %p182, %s16, 1
        %p184 = scmp.lt.s32.totalorder %s18, 0
        %s185 = scalar_select %p184, %s18, 0
        %p186 = scmp.lt.s32.totalorder %s181, 2
        %s187 = scalar_select %p186, %s181, 2
        %s188 = smul.addr %s185, 3
        %s189 = sadd.s32 %s187, %s188
        %s190 = smul.addr %s183, 3
        %s191 = sadd.s32 %s189, %s190
        %s192 = smul.addr %s191, 4
        %s193 = scalar_lea.vmem %s1, %s192
        %s194 = sadd.s32 %s17, 1
      $region24: #{_lambda_.15} parent=15 // pred_fallthru
        _
      // Predicated region
      $region25: #{_lambda_.15} parent=15 // pred_check
        %p195 = pneg %p114
      $region26: #{_lambda_.15} parent=15 // pred_check_branch
        %197 = sbr.rel (%p195) target = $region28
      $region27: #{_lambda_.15} parent=15 // pred_region
        %s198 = sadd.s32 %s17, 2
        %p199 = scmp.lt.s32.totalorder %s16, 1
        %s200 = scalar_select %p199, %s16, 1
        %p201 = scmp.lt.s32.totalorder %s18, 0
        %s202 = scalar_select %p201, %s18, 0
        %p203 = scmp.lt.s32.totalorder %s198, 2
        %s204 = scalar_select %p203, %s198, 2
        %s205 = smul.addr %s202, 3
        %s206 = sadd.s32 %s204, %s205
        %s207 = smul.addr %s200, 3
        %s208 = sadd.s32 %s206, %s207
        %s209 = smul.addr %s208, 4
        %s210 = scalar_lea.vmem %s2, %s209
        %s211 = sadd.s32 %s17, 2
      $region28: #{_lambda_.15} parent=15 // pred_fallthru
        _
    $region16: #{_lambda_.15} parent=5 // pred_fallthru
      _
    %p212 = scmp.le.s32.totalorder 1, %s9
    %p213 = scmp.lt.s32.totalorder %s9, 3
    %p214 = pnand %p212, %p213
    %p215 = pneg %p214
    // Predicated region
    $region29: #{_lambda_.15} parent=5 // pred_check
      _
    $region30: #{_lambda_.15} parent=5 // pred_check_branch
      %217 = sbr.rel (%p214) target = $region32
    $region31: #{_lambda_.15} parent=5 // pred_region
      %s218 = ssub.s32 %s9, 1
      %p219 = scmp.lt.s32.totalorder %s19, 1
      %s220 = scalar_select %p219, %s19, 1
      %p221 = scmp.lt.s32.totalorder %s20, 2
      %s222 = scalar_select %p221, %s20, 2
      %s223 = smul.addr %s220, 3
      %s224 = sadd.s32 %s222, %s223
      %s225 = smul.addr %s224, 4
      %s226 = scalar_lea.vmem %s0, %s225
      %p227 = pneg %p56
      %p228 = pneg %p53
      %s229 = sadd.s32 %s20, 1
      %p230 = scmp.lt.s32.totalorder %s19, 1
      %s231 = scalar_select %p230, %s19, 1
      %p232 = scmp.lt.s32.totalorder %s21, 0
      %s233 = scalar_select %p232, %s21, 0
      %p234 = scmp.lt.s32.totalorder %s229, 2
      %s235 = scalar_select %p234, %s229, 2
      %s236 = smul.addr %s233, 3
      %s237 = sadd.s32 %s235, %s236
      %s238 = smul.addr %s231, 3
      %s239 = sadd.s32 %s237, %s238
      %s240 = smul.addr %s239, 4
      %s241 = scalar_lea.vmem %s1, %s240
      %p242 = pneg %p88
      %p243 = pneg %p85
      %s244 = sadd.s32 %s20, 2
      %p245 = scmp.lt.s32.totalorder %s19, 1
      %s246 = scalar_select %p245, %s19, 1
      %p247 = scmp.lt.s32.totalorder %s21, 0
      %s248 = scalar_select %p247, %s21, 0
      %p249 = scmp.lt.s32.totalorder %s244, 2
      %s250 = scalar_select %p249, %s244, 2
      %s251 = smul.addr %s248, 3
      %s252 = sadd.s32 %s250, %s251
      %s253 = smul.addr %s246, 3
      %s254 = sadd.s32 %s252, %s253
      %s255 = smul.addr %s254, 4
      %s256 = scalar_lea.vmem %s2, %s255
      %p257 = pneg %p120
      %p258 = pneg %p117
      %p259 = pneg %p148
      %p260 = pneg %p145
      %p261 = scmp.lt.s32.totalorder %s19, 1
      %s262 = scalar_select %p261, %s19, 1
      %p263 = scmp.lt.s32.totalorder %s20, 0
      %s264 = scalar_select %p263, %s20, 0
      %s265 = sadd.s32 %s264, %s262
      %s266 = smul.addr %s265, 4
      %s267 = scalar_lea.vmem %s3, %s266
      %p268 = scmp.lt.s32.totalorder %s19, 1
      %s269 = scalar_select %p268, %s19, 1
      %p270 = scmp.lt.s32.totalorder %s20, 2
      %s271 = scalar_select %p270, %s20, 2
      %s272 = smul.addr %s269, 3
      %s273 = sadd.s32 %s271, %s272
      %s274 = smul.addr %s273, 4
      %s275 = scalar_lea.vmem %s0, %s274
      %s276 = sadd.s32 %s20, 1
      %p277 = scmp.lt.s32.totalorder %s19, 1
      %s278 = scalar_select %p277, %s19, 1
      %p279 = scmp.lt.s32.totalorder %s21, 0
      %s280 = scalar_select %p279, %s21, 0
      %p281 = scmp.lt.s32.totalorder %s276, 2
      %s282 = scalar_select %p281, %s276, 2
      %s283 = smul.addr %s280, 3
      %s284 = sadd.s32 %s282, %s283
      %s285 = smul.addr %s278, 3
      %s286 = sadd.s32 %s284, %s285
      %s287 = smul.addr %s286, 4
      %s288 = scalar_lea.vmem %s1, %s287
      %s289 = sadd.s32 %s20, 1
      %s290 = sadd.s32 %s20, 2
      %p291 = scmp.lt.s32.totalorder %s19, 1
      %s292 = scalar_select %p291, %s19, 1
      %p293 = scmp.lt.s32.totalorder %s21, 0
      %s294 = scalar_select %p293, %s21, 0
      %p295 = scmp.lt.s32.totalorder %s290, 2
      %s296 = scalar_select %p295, %s290, 2
      %s297 = smul.addr %s294, 3
      %s298 = sadd.s32 %s296, %s297
      %s299 = smul.addr %s292, 3
      %s300 = sadd.s32 %s298, %s299
      %s301 = smul.addr %s300, 4
      %s302 = scalar_lea.vmem %s2, %s301
      %s303 = sadd.s32 %s20, 2
      %p304 = scmp.lt.s32.totalorder %s19, 1
      %s305 = scalar_select %p304, %s19, 1
      %p306 = scmp.lt.s32.totalorder %s20, 0
      %s307 = scalar_select %p306, %s20, 0
      %s308 = sadd.s32 %s307, %s305
      %s309 = smul.addr %s308, 4
      %s310 = scalar_lea.vmem %s3, %s309
      %p312 = scmp.eq.s32.totalorder %s21, 0
      // Predicated region
      $region33: #{_lambda_.15} parent=31 // pred_check
        %p313 = pneg %p312
      $region34: #{_lambda_.15} parent=31 // pred_check_branch
        %315 = sbr.rel (%p313) target = $region36
      $region35: #{_lambda_.15} parent=31 // pred_region
        %vm316 = vcmask 7168
        %317 = vst.msk [vmem:[#allocation2] sm:$0xff] %vm316, -1e+30
        %318 = vst.msk [vmem:[#allocation2 + $0x8] sm:$0xff] %vm316, -1e+30
        %319 = vst.msk [vmem:[#allocation3] sm:$0xff] %vm316, 0.0
        %320 = vst.msk [vmem:[#allocation3 + $0x8] sm:$0xff] %vm316, 0.0
        %vm321 = vcmask 523264
        %322 = vst.msk [vmem:[#allocation4] sm:$0xff] %vm321, 0.0
        %323 = vst.msk [vmem:[#allocation4 + $0x8] sm:$0xff] %vm321, 0.0
      $region36: #{_lambda_.15} parent=31 // pred_fallthru
        _
      %v324 = vld [vmem:[%s275] sm:$0xf]
      %v325 = vld [vmem:[%s288] sm:$0xf]
      %v326 = vld [vmem:[%s302] sm:$0xf]
      %s327 = smul.u32 %s21, 8
      %v328 = vlaneseq
      %v329 = vand.u32 %v328, 127
      %v330 = vstv %s327
      %v331 = vadd.s32 %v330, %v329
      %vm332 = vcmp.lt.s32.totalorder %v331, 5
      %vm333 = vcmask 523264
      %v335 = vsel %vm333, %v324, 0
      %v338 = vsel %vm333, %v325, 0
      %340 = vmatprep.subr.bf16.mxu0 0
      %341 = vmatpush1.bf16.xpose.msra.mxu0 0
      %342 = vmatprep.subr.bf16.mxu0 0
      %343 = vmatpush1.bf16.xpose.msra.mxu0 0
      %344 = vmatprep.subr.bf16.mxu0 0
      %345 = vmatpush1.bf16.xpose.msra.mxu0 0
      %346 = vmatprep.subr.bf16.mxu0 0
      %347 = vmatpush1.bf16.xpose.msra.mxu0 0
      %348 = vmatprep.subr.bf16.mxu0 0
      %349 = vmatpush1.bf16.xpose.msra.mxu0 0
      %350 = vmatprep.subr.bf16.mxu0 0
      %351 = vmatpush1.bf16.xpose.msra.mxu0 0
      %352 = vmatprep.subr.bf16.mxu0 0
      %353 = vmatpush1.bf16.xpose.msra.mxu0 0
      %354 = vmatprep.subr.bf16.mxu0 0
      %355 = vmatpush1.bf16.xpose.msra.mxu0 %v338
      %356 = vmatprep.subr.bf16.mxu0 0
      %357 = vmatpush2.bf16.xpose.msra.mxu0 0
      %358 = vmatprep.subr.bf16.mxu0 0
      %359 = vmatpush2.bf16.xpose.msra.mxu0 0
      %360 = vmatprep.subr.bf16.mxu0 0
      %361 = vmatpush2.bf16.xpose.msra.mxu0 0
      %362 = vmatprep.subr.bf16.mxu0 0
      %363 = vmatpush2.bf16.xpose.msra.mxu0 0
      %364 = vmatprep.subr.bf16.mxu0 0
      %365 = vmatpush2.bf16.xpose.msra.mxu0 0
      %366 = vmatprep.subr.bf16.mxu0 0
      %367 = vmatpush2.bf16.xpose.msra.mxu0 0
      %368 = vmatprep.subr.bf16.mxu0 0
      %369 = vmatpush2.bf16.xpose.msra.mxu0 0
      %370 = vmatprep.subr.bf16.mxu0 0
      %371 = vmatpush2.bf16.xpose.msra.mxu0 0
      %372 = vmatprep.mubr.bf16.mxu0 0
      %373 = vmatmul.mubr.bf16.gmra.mxu0 %v335
      %v374 = vpop.f32.mrf.mxu0
      %v375 = vadd.f32 0.0, %v374
      %v376 = vpop.f32.mrf.mxu0
      %v377 = vpop.f32.mrf.mxu0
      %v378 = vpop.f32.mrf.mxu0
      %379 = vdwg.mxu0
      %v380 = vmul.f32 %v375, 0.125
      %v381 = vsel %vm332, 1, 0
      %vm382 = vcmp.eq.s32.totalorder %v381, 1
      %v383 = vsel %vm382, %v380, -1e+30
      %v384 = vld [vmem:[#allocation2] sm:$0xff]
      %vm385 = vcmask 64512
      %v386 = vsel %vm385, %v383, -inf
      %387 = vmax.xlane.f32.xlu0 %v386
      %v388 = vpop.xlane.xlu0 %387
      %v389 = vmax.f32 %v384, %v388
      %v390 = vsub.f32 %v384, %v389
      %v391 = vmul.f32 %v390, 1.442695
      %v392 = vpow.pop %v391
      %394 = vset.pattern.permute.xlu0 0
      %395 = vperm.xlu0 %394, %v389
      %v396 = vpop.permute.xlu0 %395
      %v398 = vsub.f32 %v383, %v396
      %v399 = vmul.f32 %v398, 1.442695
      %v400 = vpow.pop %v399
      %v401 = vsel %vm382, %v400, 0.0
      %v402 = vld [vmem:[#allocation3] sm:$0xff]
      %v403 = vmul.f32 %v392, %v402
      %v404 = vsel %vm385, %v401, 0.0
      %405 = vadd.xlane.f32.xlu0 %v404
      %v406 = vpop.xlane.xlu0 %405
      %v407 = vadd.f32 %v403, %v406
      %vm408 = vcmask 7168
      %409 = vst.msk [vmem:[#allocation3] sm:$0xff] %vm408, %v407
      %v410 = vld [vmem:[#allocation4] sm:$0xff]
      %412 = vset.pattern.permute.xlu0 0
      %413 = vperm.xlu0 %412, %v392
      %v414 = vpop.permute.xlu0 %413
      %v416 = vmul.f32 %v414, %v410
      %v417 = vpack.c.bf16 %v401, %v401
      %v419 = vsel %vm385, %v417, 0
      %vm421 = vcmask 1043456
      %v423 = vsel %vm421, %v326, 0
      %425 = vmatprep.subr.bf16.mxu0 0
      %426 = vmatpush1.bf16.msra.mxu0 0
      %427 = vmatprep.subr.bf16.mxu0 0
      %428 = vmatpush1.bf16.msra.mxu0 0
      %429 = vmatprep.subr.bf16.mxu0 0
      %430 = vmatpush1.bf16.msra.mxu0 0
      %431 = vmatprep.subr.bf16.mxu0 0
      %432 = vmatpush1.bf16.msra.mxu0 0
      %433 = vmatprep.subr.bf16.mxu0 0
      %434 = vmatpush1.bf16.msra.mxu0 0
      %435 = vmatprep.subr.bf16.mxu0 0
      %436 = vmatpush1.bf16.msra.mxu0 0
      %437 = vmatprep.subr.bf16.mxu0 0
      %438 = vmatpush1.bf16.msra.mxu0 0
      %439 = vmatprep.subr.bf16.mxu0 0
      %440 = vmatpush1.bf16.msra.mxu0 %v423
      %441 = vmatprep.subr.bf16.mxu0 0
      %442 = vmatpush2.bf16.msra.mxu0 0
      %443 = vmatprep.subr.bf16.mxu0 0
      %444 = vmatpush2.bf16.msra.mxu0 0
      %445 = vmatprep.subr.bf16.mxu0 0
      %446 = vmatpush2.bf16.msra.mxu0 0
      %447 = vmatprep.subr.bf16.mxu0 0
      %448 = vmatpush2.bf16.msra.mxu0 0
      %449 = vmatprep.subr.bf16.mxu0 0
      %450 = vmatpush2.bf16.msra.mxu0 0
      %451 = vmatprep.subr.bf16.mxu0 0
      %452 = vmatpush2.bf16.msra.mxu0 0
      %453 = vmatprep.subr.bf16.mxu0 0
      %454 = vmatpush2.bf16.msra.mxu0 0
      %455 = vmatprep.subr.bf16.mxu0 0
      %456 = vmatpush2.bf16.msra.mxu0 0
      %457 = vmatprep.mubr.bf16.mxu0 0
      %458 = vmatmul.mubr.bf16.gmra.mxu0 %v419
      %v459 = vpop.f32.mrf.mxu0
      %v460 = vadd.f32 0.0, %v459
      %v461 = vpop.f32.mrf.mxu0
      %v462 = vpop.f32.mrf.mxu0
      %v463 = vpop.f32.mrf.mxu0
      %464 = vdwg.mxu0
      %v465 = vadd.f32 %v416, %v460
      %466 = vst.msk [vmem:[#allocation4] sm:$0xff] %vm333, %v465
      %467 = vst.msk [vmem:[#allocation2] sm:$0xff] %vm408, %v389
      %v469 = vunpack.c.l.b16 %v324
      %v470 = vpack.c.b16 %v469, %v469
      %471 = vrot.lane.b32.xlu0 %v470, 64
      %v472 = vpop.permute.xlu0 %471
      %v474 = vunpack.c.l.b16 %v325
      %v475 = vpack.c.b16 %v474, %v474
      %476 = vrot.lane.b32.xlu0 %v475, 64
      %v477 = vpop.permute.xlu0 %476
      %v479 = vsel %vm333, %v472, 0
      %v482 = vsel %vm333, %v477, 0
      %484 = vmatprep.subr.bf16.mxu0 0
      %485 = vmatpush1.bf16.xpose.msra.mxu0 0
      %486 = vmatprep.subr.bf16.mxu0 0
      %487 = vmatpush1.bf16.xpose.msra.mxu0 0
      %488 = vmatprep.subr.bf16.mxu0 0
      %489 = vmatpush1.bf16.xpose.msra.mxu0 0
      %490 = vmatprep.subr.bf16.mxu0 0
      %491 = vmatpush1.bf16.xpose.msra.mxu0 0
      %492 = vmatprep.subr.bf16.mxu0 0
      %493 = vmatpush1.bf16.xpose.msra.mxu0 0
      %494 = vmatprep.subr.bf16.mxu0 0
      %495 = vmatpush1.bf16.xpose.msra.mxu0 0
      %496 = vmatprep.subr.bf16.mxu0 0
      %497 = vmatpush1.bf16.xpose.msra.mxu0 0
      %498 = vmatprep.subr.bf16.mxu0 0
      %499 = vmatpush1.bf16.xpose.msra.mxu0 %v482
      %500 = vmatprep.subr.bf16.mxu0 0
      %501 = vmatpush2.bf16.xpose.msra.mxu0 0
      %502 = vmatprep.subr.bf16.mxu0 0
      %503 = vmatpush2.bf16.xpose.msra.mxu0 0
      %504 = vmatprep.subr.bf16.mxu0 0
      %505 = vmatpush2.bf16.xpose.msra.mxu0 0
      %506 = vmatprep.subr.bf16.mxu0 0
      %507 = vmatpush2.bf16.xpose.msra.mxu0 0
      %508 = vmatprep.subr.bf16.mxu0 0
      %509 = vmatpush2.bf16.xpose.msra.mxu0 0
      %510 = vmatprep.subr.bf16.mxu0 0
      %511 = vmatpush2.bf16.xpose.msra.mxu0 0
      %512 = vmatprep.subr.bf16.mxu0 0
      %513 = vmatpush2.bf16.xpose.msra.mxu0 0
      %514 = vmatprep.subr.bf16.mxu0 0
      %515 = vmatpush2.bf16.xpose.msra.mxu0 0
      %516 = vmatprep.mubr.bf16.mxu0 0
      %517 = vmatmul.mubr.bf16.gmra.mxu0 %v479
      %v518 = vpop.f32.mrf.mxu0
      %v519 = vadd.f32 0.0, %v518
      %v520 = vpop.f32.mrf.mxu0
      %v521 = vpop.f32.mrf.mxu0
      %v522 = vpop.f32.mrf.mxu0
      %523 = vdwg.mxu0
      %v524 = vmul.f32 %v519, 0.125
      %v525 = vsel %vm382, %v524, -1e+30
      %s526 = scalar_lea.vmem [#allocation2], 8
      %v527 = vld [vmem:[%s526] sm:$0xff]
      %v528 = vsel %vm385, %v525, -inf
      %529 = vmax.xlane.f32.xlu0 %v528
      %v530 = vpop.xlane.xlu0 %529
      %v531 = vmax.f32 %v527, %v530
      %v532 = vsub.f32 %v527, %v531
      %v533 = vmul.f32 %v532, 1.442695
      %v534 = vpow.pop %v533
      %536 = vset.pattern.permute.xlu0 0
      %537 = vperm.xlu0 %536, %v531
      %v538 = vpop.permute.xlu0 %537
      %v540 = vsub.f32 %v525, %v538
      %v541 = vmul.f32 %v540, 1.442695
      %v542 = vpow.pop %v541
      %v543 = vsel %vm382, %v542, 0.0
      %s544 = scalar_lea.vmem [#allocation3], 8
      %v545 = vld [vmem:[%s544] sm:$0xff]
      %v546 = vmul.f32 %v534, %v545
      %v547 = vsel %vm385, %v543, 0.0
      %548 = vadd.xlane.f32.xlu0 %v547
      %v549 = vpop.xlane.xlu0 %548
      %v550 = vadd.f32 %v546, %v549
      %551 = vst.msk [vmem:[%s544] sm:$0xff] %vm408, %v550
      %s552 = scalar_lea.vmem [#allocation4], 8
      %v553 = vld [vmem:[%s552] sm:$0xff]
      %555 = vset.pattern.permute.xlu0 0
      %556 = vperm.xlu0 %555, %v534
      %v557 = vpop.permute.xlu0 %556
      %v559 = vmul.f32 %v557, %v553
      %v560 = vpack.c.bf16 %v543, %v543
      %v562 = vunpack.c.l.b16 %v326
      %v563 = vpack.c.b16 %v562, %v562
      %564 = vrot.lane.b32.xlu0 %v563, 64
      %v565 = vpop.permute.xlu0 %564
      %v567 = vsel %vm385, %v560, 0
      %v570 = vsel %vm421, %v565, 0
      %572 = vmatprep.subr.bf16.mxu0 0
      %573 = vmatpush1.bf16.msra.mxu0 0
      %574 = vmatprep.subr.bf16.mxu0 0
      %575 = vmatpush1.bf16.msra.mxu0 0
      %576 = vmatprep.subr.bf16.mxu0 0
      %577 = vmatpush1.bf16.msra.mxu0 0
      %578 = vmatprep.subr.bf16.mxu0 0
      %579 = vmatpush1.bf16.msra.mxu0 0
      %580 = vmatprep.subr.bf16.mxu0 0
      %581 = vmatpush1.bf16.msra.mxu0 0
      %582 = vmatprep.subr.bf16.mxu0 0
      %583 = vmatpush1.bf16.msra.mxu0 0
      %584 = vmatprep.subr.bf16.mxu0 0
      %585 = vmatpush1.bf16.msra.mxu0 0
      %586 = vmatprep.subr.bf16.mxu0 0
      %587 = vmatpush1.bf16.msra.mxu0 %v570
      %588 = vmatprep.subr.bf16.mxu0 0
      %589 = vmatpush2.bf16.msra.mxu0 0
      %590 = vmatprep.subr.bf16.mxu0 0
      %591 = vmatpush2.bf16.msra.mxu0 0
      %592 = vmatprep.subr.bf16.mxu0 0
      %593 = vmatpush2.bf16.msra.mxu0 0
      %594 = vmatprep.subr.bf16.mxu0 0
      %595 = vmatpush2.bf16.msra.mxu0 0
      %596 = vmatprep.subr.bf16.mxu0 0
      %597 = vmatpush2.bf16.msra.mxu0 0
      %598 = vmatprep.subr.bf16.mxu0 0
      %599 = vmatpush2.bf16.msra.mxu0 0
      %600 = vmatprep.subr.bf16.mxu0 0
      %601 = vmatpush2.bf16.msra.mxu0 0
      %602 = vmatprep.subr.bf16.mxu0 0
      %603 = vmatpush2.bf16.msra.mxu0 0
      %604 = vmatprep.mubr.bf16.mxu0 0
      %605 = vmatmul.mubr.bf16.gmra.mxu0 %v567
      %v606 = vpop.f32.mrf.mxu0
      %v607 = vadd.f32 0.0, %v606
      %v608 = vpop.f32.mrf.mxu0
      %v609 = vpop.f32.mrf.mxu0
      %v610 = vpop.f32.mrf.mxu0
      %611 = vdwg.mxu0
      %v612 = vadd.f32 %v559, %v607
      %613 = vst.msk [vmem:[%s552] sm:$0xff] %vm333, %v612
      %614 = vst.msk [vmem:[%s526] sm:$0xff] %vm408, %v531
      // Predicated region
      $region37: #{_lambda_.15} parent=31 // pred_check
        %p615 = pneg %p312
      $region38: #{_lambda_.15} parent=31 // pred_check_branch
        %617 = sbr.rel (%p615) target = $region40
      $region39: #{_lambda_.15} parent=31 // pred_region
        %v618 = vld [vmem:[#allocation4] sm:$0xff]
        %v619 = vld [vmem:[#allocation3] sm:$0xff]
        %v620 = vrcp.pop %v619
        %622 = vset.pattern.permute.xlu0 0
        %623 = vperm.xlu0 %622, %v620
        %v624 = vpop.permute.xlu0 %623
        %v626 = vmul.f32 %v618, %v624
        %v627 = vld [vmem:[%s552] sm:$0xff]
        %v628 = vld [vmem:[%s544] sm:$0xff]
        %v629 = vrcp.pop %v628
        %631 = vset.pattern.permute.xlu0 0
        %632 = vperm.xlu0 %631, %v629
        %v633 = vpop.permute.xlu0 %632
        %v635 = vmul.f32 %v627, %v633
        %637 = vrot.lane.b32.xlu0 %v635, 64
        %v638 = vpop.permute.xlu0 %637
        %v640 = vsel %vm333, %v626, %v638
        %v641 = vpack.c.bf16 %v640, %v640
        %642 = vst [vmem:[%s310] sm:$0xf] %v641
      $region40: #{_lambda_.15} parent=31 // pred_fallthru
        _
      %p643 = scmp.lt.s32.totalorder %s19, 1
      %s644 = scalar_select %p643, %s19, 1
      %p645 = scmp.lt.s32.totalorder %s20, 0
      %s646 = scalar_select %p645, %s20, 0
      %s647 = sadd.s32 %s646, %s644
      %s648 = smul.addr %s647, 4
      %s649 = scalar_lea.vmem %s3, %s648
      // Predicated region
      $region41: #{_lambda_.15} parent=31 // pred_check
        %p650 = pneg %p145
      $region42: #{_lambda_.15} parent=31 // pred_check_branch
        %652 = sbr.rel (%p650) target = $region44
      $region43: #{_lambda_.15} parent=31 // pred_region
        _
      $region44: #{_lambda_.15} parent=31 // pred_fallthru
        _
    $region32: #{_lambda_.15} parent=5 // pred_fallthru
      _
    %p653 = scmp.le.s32.totalorder 2, %s9
    // Predicated region
    $region45: #{_lambda_.15} parent=5 // pred_check
      %p654 = pneg %p653
    $region46: #{_lambda_.15} parent=5 // pred_check_branch
      %656 = sbr.rel (%p654) target = $region48
    $region47: #{_lambda_.15} parent=5 // pred_region
      %s657 = ssub.s32 %s9, 2
      // Predicated region
      $region49: #{_lambda_.15} parent=47 // pred_check
        %p658 = pneg %p151
      $region50: #{_lambda_.15} parent=47 // pred_check_branch
        %660 = sbr.rel (%p658) target = $region52
      $region51: #{_lambda_.15} parent=47 // pred_region
        %p661 = scmp.lt.s32.totalorder %s22, 1
        %s662 = scalar_select %p661, %s22, 1
        %p663 = scmp.lt.s32.totalorder %s23, 0
        %s664 = scalar_select %p663, %s23, 0
        %s665 = sadd.s32 %s664, %s662
        %s666 = smul.addr %s665, 4
        %s667 = scalar_lea.vmem %s3, %s666
      $region52: #{_lambda_.15} parent=47 // pred_fallthru
        _
    $region48: #{_lambda_.15} parent=5 // pred_fallthru
      _
  $region6: #{_lambda_.15} parent=0 // loop_footer
    %s13 = sadd.s32 1, %s9
  $region7: #{_lambda_.15} parent=0 // loop_footer_branch
    %8 = sbr.rel target = $region3
  $region8: #{_lambda_.15} parent=0 // loop_exit
    _

// kernel: _lambda_.24
$region0: #{_lambda_.24}
  #allocation0 [shape = 'u32[]', space=smem, size = 0x4, offset = 0x4, fixed_abs, tag = 'smem constant byte address 0x4 - core index']
  #allocation1 [shape = 'u32[144,128]{1,0:T(1,128)}', space=vmem, size = 0x12000, scoped, tag = 'internal scratch']
  %s0 = inlined_call_operand.vmem [shape: bf16[2,8,128], index: 0, kind: input, shape index: {}]
  %s1 = inlined_call_operand.vmem [shape: f32[1,128], index: 1, kind: input, shape index: {}]
  %s2 = inlined_call_operand.vmem [shape: f32[1,128], index: 2, kind: input, shape index: {}]
  %s3 = inlined_call_operand.vmem [shape: f32[2,1,256], index: 3, kind: output, shape index: {}]
  %s4 = sld [smem:[#allocation0]]
  $region45: #{_lambda_.24} parent=0
    _
  %s6 = ssub.s32 1, %s4
  %s7 = scalar_select 0, %s6, %s4
  loop: start=0, step=1, limit=4
  $region2: #{_lambda_.24} parent=0 // loop_pre_header
    _
  $region3: #{_lambda_.24} parent=0 // loop_header
    %s9 = sphi 0, %s13
    %p10 = scmp.ge.s32.totalorder %s9, 4
    %s19 = sphi 0, %s21
    %s22 = sphi 0, %s19
    %s23 = sphi 0, %s22
    %s39 = sphi 0, %s23
    %s43 = sphi 0, %s43
    %s45 = sphi 0, %s43
    %s46 = sphi 0, %s45
    %s60 = sphi 0, %s46
    %s64 = sphi 0, %s64
    %s66 = sphi 0, %s64
    %s67 = sphi 0, %s66
    %s81 = sphi 0, %s67
    %s87 = sphi 0, %s89
    %s90 = sphi 0, %s87
    %s91 = sphi 0, %s90
    %s107 = sphi 0, %s91
  $region4: #{_lambda_.24} parent=0 // loop_header_branch
    %12 = sbr.rel (%p10) target = $region8
  $region5: #{_lambda_.24} parent=0 // loop_body
    %s14 = ssub.s32 %s9, 1
    %s15 = ssub.s32 %s9, 2
    %s16 = sadd.s32 %s9, 1
    %s17 = ssub.s32 %s9, %s16
    %p18 = scmp.eq.s32.totalorder %s17, 0
    %s20 = sadd.s32 %s19, 1
    %s21 = scalar_select %p18, %s19, %s20
    %p24 = pneg %p18
    %p25 = scmp.eq.s32.totalorder %s9, 1
    %p26 = por %p24, %p25
    %p27 = scmp.ne.s32.totalorder %s19, %s22
    %p28 = scmp.eq.s32.totalorder %s9, 0
    %p29 = por %p27, %p28
    %p30 = scmp.ne.s32.totalorder %s19, %s22
    %p31 = scmp.eq.s32.totalorder %s14, 1
    %p32 = por %p30, %p31
    %p33 = scmp.ne.s32.totalorder %s22, %s23
    %p34 = scmp.eq.s32.totalorder %s14, 0
    %p35 = por %p33, %p34
    %p36 = scmp.ne.s32.totalorder %s22, %s23
    %p37 = scmp.eq.s32.totalorder %s15, 1
    %p38 = por %p36, %p37
    %p40 = scmp.ne.s32.totalorder %s23, %s39
    %p41 = scmp.eq.s32.totalorder %s15, 0
    %p42 = por %p40, %p41
    %s44 = sadd.s32 %s43, 1
    %p47 = scmp.eq.s32.totalorder %s9, 1
    %p48 = scmp.ne.s32.totalorder %s43, %s45
    %p49 = scmp.eq.s32.totalorder %s9, 0
    %p50 = por %p48, %p49
    %p51 = scmp.ne.s32.totalorder %s43, %s45
    %p52 = scmp.eq.s32.totalorder %s14, 1
    %p53 = por %p51, %p52
    %p54 = scmp.ne.s32.totalorder %s45, %s46
    %p55 = scmp.eq.s32.totalorder %s14, 0
    %p56 = por %p54, %p55
    %p57 = scmp.ne.s32.totalorder %s45, %s46
    %p58 = scmp.eq.s32.totalorder %s15, 1
    %p59 = por %p57, %p58
    %p61 = scmp.ne.s32.totalorder %s46, %s60
    %p62 = scmp.eq.s32.totalorder %s15, 0
    %p63 = por %p61, %p62
    %s65 = sadd.s32 %s64, 1
    %p68 = scmp.eq.s32.totalorder %s9, 1
    %p69 = scmp.ne.s32.totalorder %s64, %s66
    %p70 = scmp.eq.s32.totalorder %s9, 0
    %p71 = por %p69, %p70
    %p72 = scmp.ne.s32.totalorder %s64, %s66
    %p73 = scmp.eq.s32.totalorder %s14, 1
    %p74 = por %p72, %p73
    %p75 = scmp.ne.s32.totalorder %s66, %s67
    %p76 = scmp.eq.s32.totalorder %s14, 0
    %p77 = por %p75, %p76
    %p78 = scmp.ne.s32.totalorder %s66, %s67
    %p79 = scmp.eq.s32.totalorder %s15, 1
    %p80 = por %p78, %p79
    %p82 = scmp.ne.s32.totalorder %s67, %s81
    %p83 = scmp.eq.s32.totalorder %s15, 0
    %p84 = por %p82, %p83
    %s85 = ssub.s32 %s9, %s16
    %p86 = scmp.eq.s32.totalorder %s85, 0
    %s88 = sadd.s32 %s87, 1
    %s89 = scalar_select %p86, %s87, %s88
    %p92 = pneg %p86
    %p93 = scmp.eq.s32.totalorder %s9, 1
    %p94 = por %p92, %p93
    %p95 = scmp.ne.s32.totalorder %s87, %s90
    %p96 = scmp.eq.s32.totalorder %s9, 0
    %p97 = por %p95, %p96
    %p98 = scmp.ne.s32.totalorder %s87, %s90
    %p99 = scmp.eq.s32.totalorder %s14, 1
    %p100 = por %p98, %p99
    %p101 = scmp.ne.s32.totalorder %s90, %s91
    %p102 = scmp.eq.s32.totalorder %s14, 0
    %p103 = por %p101, %p102
    %p104 = scmp.ne.s32.totalorder %s90, %s91
    %p105 = scmp.eq.s32.totalorder %s15, 1
    %p106 = por %p104, %p105
    %p108 = scmp.ne.s32.totalorder %s91, %s107
    %p109 = scmp.eq.s32.totalorder %s15, 0
    %p110 = por %p108, %p109
    %p111 = scmp.le.s32.totalorder 1, %s9
    %p112 = scmp.lt.s32.totalorder %s9, 3
    %p113 = pnand %p111, %p112
    %p114 = pneg %p113
    // Predicated region
    $region9: #{_lambda_.24} parent=5 // pred_check
      _
    $region10: #{_lambda_.24} parent=5 // pred_check_branch
      %116 = sbr.rel (%p113) target = $region12
    $region11: #{_lambda_.24} parent=5 // pred_region
      %s117 = ssub.s32 %s9, 1
      // Predicated region
      $region13: #{_lambda_.24} parent=11 // pred_check
        %p118 = pneg %p56
      $region14: #{_lambda_.24} parent=11 // pred_check_branch
        %120 = sbr.rel (%p118) target = $region16
      $region15: #{_lambda_.24} parent=11 // pred_region
        _
      $region16: #{_lambda_.24} parent=11 // pred_fallthru
        _
      // Predicated region
      $region17: #{_lambda_.24} parent=11 // pred_check
        %p121 = pneg %p77
      $region18: #{_lambda_.24} parent=11 // pred_check_branch
        %123 = sbr.rel (%p121) target = $region20
      $region19: #{_lambda_.24} parent=11 // pred_region
        _
      $region20: #{_lambda_.24} parent=11 // pred_fallthru
        _
    $region12: #{_lambda_.24} parent=5 // pred_fallthru
      _
    %p124 = scmp.lt.s32.totalorder %s9, 2
    // Predicated region
    $region21: #{_lambda_.24} parent=5 // pred_check
      %p125 = pneg %p124
    $region22: #{_lambda_.24} parent=5 // pred_check_branch
      %127 = sbr.rel (%p125) target = $region24
    $region23: #{_lambda_.24} parent=5 // pred_region
      // Predicated region
      $region25: #{_lambda_.24} parent=23 // pred_check
        %p128 = pneg %p29
      $region26: #{_lambda_.24} parent=23 // pred_check_branch
        %130 = sbr.rel (%p128) target = $region28
      $region27: #{_lambda_.24} parent=23 // pred_region
        %p131 = scmp.lt.s32.totalorder %s9, 1
        %s132 = scalar_select %p131, %s9, 1
        %s133 = smul.addr %s132, 4
        %s134 = scalar_lea.vmem %s0, %s133
      $region28: #{_lambda_.24} parent=23 // pred_fallthru
        _
    $region24: #{_lambda_.24} parent=5 // pred_fallthru
      _
    %p135 = scmp.le.s32.totalorder 1, %s9
    %p136 = scmp.lt.s32.totalorder %s9, 3
    %p137 = pnand %p135, %p136
    %p138 = pneg %p137
    // Predicated region
    $region29: #{_lambda_.24} parent=5 // pred_check
      _
    $region30: #{_lambda_.24} parent=5 // pred_check_branch
      %140 = sbr.rel (%p137) target = $region32
    $region31: #{_lambda_.24} parent=5 // pred_region
      %s141 = ssub.s32 %s9, 1
      %p142 = scmp.lt.s32.totalorder %s14, 1
      %s143 = scalar_select %p142, %s14, 1
      %s144 = smul.addr %s143, 4
      %s145 = scalar_lea.vmem %s0, %s144
      %p146 = pneg %p35
      %p147 = pneg %p32
      %p148 = pneg %p56
      %p149 = pneg %p53
      %p150 = pneg %p77
      %p151 = pneg %p74
      %p152 = pneg %p103
      %p153 = pneg %p100
      %p154 = scmp.lt.s32.totalorder %s14, 1
      %s155 = scalar_select %p154, %s14, 1
      %s156 = smul.addr %s155, 2
      %s157 = scalar_lea.vmem %s3, %s156
      %p158 = scmp.lt.s32.totalorder %s14, 1
      %s159 = scalar_select %p158, %s14, 1
      %s160 = smul.addr %s159, 4
      %s161 = scalar_lea.vmem %s0, %s160
      %p162 = scmp.lt.s32.totalorder %s14, 1
      %s163 = scalar_select %p162, %s14, 1
      %s164 = smul.addr %s163, 2
      %s165 = scalar_lea.vmem %s3, %s164
      %v166 = vld [vmem:[%s161] sm:$0xf]
      %v167 = vunpack.c.l.bf16 %v166
      %168 = vadd.xlane.f32.xlu0 %v167
      %v169 = vpop.xlane.xlu0 %168
      %v170 = vrcp.pop 128.0
      %v171 = vmul.f32 %v169, %v170
      %v172 = vsub.f32 %v167, %v171
      %v173 = vmul.f32 %v172, %v172
      %174 = vadd.xlane.f32.xlu0 %v173
      %v175 = vpop.xlane.xlu0 %174
      %v176 = vmul.f32 %v175, %v170
      %v177 = vadd.f32 %v176, 1e-06
      %v178 = vrsqrt.pop %v177
      %v179 = vmul.f32 %v172, %v178
      %v180 = vld [vmem:[%s1] sm:$0x1]
      %v182 = vlaneseq
      %v183 = vshrl.u32 %v182, 7
      %v184 = vsub.s32 0, %v183
      %v185 = vrot.slane %v180, %v184
      %v187 = vmul.f32 %v179, %v185
      %v188 = vld [vmem:[%s2] sm:$0x1]
      %v190 = vlaneseq
      %v191 = vshrl.u32 %v190, 7
      %v192 = vsub.s32 0, %v191
      %v193 = vrot.slane %v188, %v192
      %v195 = vadd.f32 %v187, %v193
      %v196 = vlaneseq
      %v197 = vshrl.u32 %v196, 7
      %vm198 = vcmp.ge.s32.totalorder %v197, 1
      %vm199 = vcmp.lt.s32.totalorder %v197, 5
      %vm200 = vmand %vm198, %vm199
      %v201 = vsel %vm200, 1, 0
      %vm202 = vcmp.eq.s32.totalorder %v201, 1
      %v203 = vsel %vm202, %v195, 0.0
      %v204 = vrot.slane %v203, 4
      %v205 = vadd.f32 %v203, %v204
      %v206 = vrot.slane %v205, 2
      %v207 = vadd.f32 %v205, %v206
      %v208 = vrot.slane %v207, 1
      %v209 = vadd.f32 %v207, %v208
      %v210 = vmul.f32 %v209, 0.25
      %v213 = vcombine.low %v210, %v195
      %v215 = vunpack.c.l.s4 1966171168
      %v216 = vunpack.c.0.s8 %v215
      %v217 = vlaneseq
      %v218 = vshrl.u32 %v217, 7
      %v219 = vsub.s32 %v216, %v218
      %v220 = vrot.slane %v213, %v219
      %v222 = vunpack.c.l.s4 1966171168
      %v223 = vunpack.c.0.s8 %v222
      %v224 = vlaneseq
      %v225 = vshrl.u32 %v224, 7
      %v226 = vsub.s32 %v223, %v225
      %v227 = vrot.slane %v220, %v226
      %v229 = vlaneseq
      %vm230 = vcmp.ge.s32.totalorder %v229, 0
      %vm231 = vcmp.lt.s32.totalorder %v229, 256
      %vm232 = vmand %vm230, %vm231
      %233 = vst.msk [vmem:[%s165] sm:$0x3] %vm232, %v227
      %p234 = scmp.lt.s32.totalorder %s14, 1
      %s235 = scalar_select %p234, %s14, 1
      %s236 = smul.addr %s235, 2
      %s237 = scalar_lea.vmem %s3, %s236
      // Predicated region
      $region33: #{_lambda_.24} parent=31 // pred_check
        %p238 = pneg %p100
      $region34: #{_lambda_.24} parent=31 // pred_check_branch
        %240 = sbr.rel (%p238) target = $region36
      $region35: #{_lambda_.24} parent=31 // pred_region
        _
      $region36: #{_lambda_.24} parent=31 // pred_fallthru
        _
    $region32: #{_lambda_.24} parent=5 // pred_fallthru
      _
    %p241 = scmp.le.s32.totalorder 2, %s9
    // Predicated region
    $region37: #{_lambda_.24} parent=5 // pred_check
      %p242 = pneg %p241
    $region38: #{_lambda_.24} parent=5 // pred_check_branch
      %244 = sbr.rel (%p242) target = $region40
    $region39: #{_lambda_.24} parent=5 // pred_region
      %s245 = ssub.s32 %s9, 2
      // Predicated region
      $region41: #{_lambda_.24} parent=39 // pred_check
        %p246 = pneg %p106
      $region42: #{_lambda_.24} parent=39 // pred_check_branch
        %248 = sbr.rel (%p246) target = $region44
      $region43: #{_lambda_.24} parent=39 // pred_region
        %p249 = scmp.lt.s32.totalorder %s15, 1
        %s250 = scalar_select %p249, %s15, 1
        %s251 = smul.addr %s250, 2
        %s252 = scalar_lea.vmem %s3, %s251
      $region44: #{_lambda_.24} parent=39 // pred_fallthru
        _
    $region40: #{_lambda_.24} parent=5 // pred_fallthru
      _
  $region6: #{_lambda_.24} parent=0 // loop_footer
    %s13 = sadd.s32 1, %s9
  $region7: #{_lambda_.24} parent=0 // loop_footer_branch
    %8 = sbr.rel target = $region3
  $region8: #{_lambda_.24} parent=0 // loop_exit
    _

// kernel: _lambda_.17
$region0: #{_lambda_.17}
  #allocation0 [shape = 'u32[]', space=smem, size = 0x4, offset = 0x4, fixed_abs, tag = 'smem constant byte address 0x4 - core index']
  #allocation1 [shape = 'u32[144,128]{1,0:T(1,128)}', space=vmem, size = 0x12000, scoped, tag = 'internal scratch']
  %s0 = inlined_call_operand.vmem [shape: bf16[16,128], index: 0, kind: input, shape index: {}]
  %s1 = inlined_call_operand.vmem [shape: f32[1,128], index: 1, kind: input, shape index: {}]
  %s2 = inlined_call_operand.vmem [shape: f32[1,128], index: 2, kind: input, shape index: {}]
  %s3 = inlined_call_operand.vmem [shape: bf16[128,512], index: 3, kind: input, shape index: {}]
  %s4 = inlined_call_operand.vmem [shape: f32[1,512], index: 4, kind: input, shape index: {}]
  %s5 = inlined_call_operand.vmem [shape: bf16[16,512], index: 5, kind: output, shape index: {}]
  %s6 = sld [smem:[#allocation0]]
  $region30: #{_lambda_.17} parent=0
    _
  %s8 = ssub.s32 1, %s6
  %s9 = scalar_select 0, %s8, %s6
  // Predicated region
  $region2: #{_lambda_.17} parent=0 // pred_check
    _
  $region3: #{_lambda_.17} parent=0 // pred_check_branch
    %11 = sbr.rel (0) target = $region5
  $region4: #{_lambda_.17} parent=0 // pred_region
    _
  $region5: #{_lambda_.17} parent=0 // pred_fallthru
    _
  // Predicated region
  $region6: #{_lambda_.17} parent=0 // pred_check
    _
  $region7: #{_lambda_.17} parent=0 // pred_check_branch
    %13 = sbr.rel (0) target = $region9
  $region8: #{_lambda_.17} parent=0 // pred_region
    _
  $region9: #{_lambda_.17} parent=0 // pred_fallthru
    _
  // Predicated region
  $region10: #{_lambda_.17} parent=0 // pred_check
    _
  $region11: #{_lambda_.17} parent=0 // pred_check_branch
    %15 = sbr.rel (0) target = $region13
  $region12: #{_lambda_.17} parent=0 // pred_region
    _
  $region13: #{_lambda_.17} parent=0 // pred_fallthru
    _
  // Predicated region
  $region14: #{_lambda_.17} parent=0 // pred_check
    _
  $region15: #{_lambda_.17} parent=0 // pred_check_branch
    %17 = sbr.rel (0) target = $region17
  $region16: #{_lambda_.17} parent=0 // pred_region
    _
  $region17: #{_lambda_.17} parent=0 // pred_fallthru
    _
  // Predicated region
  $region18: #{_lambda_.17} parent=0 // pred_check
    _
  $region19: #{_lambda_.17} parent=0 // pred_check_branch
    %19 = sbr.rel (0) target = $region21
  $region20: #{_lambda_.17} parent=0 // pred_region
    _
  $region21: #{_lambda_.17} parent=0 // pred_fallthru
    _
  %v21 = vld [vmem:[%s0] sm:$0xf]
  %v22 = vld [vmem:[%s0 + $0x4] sm:$0xf]
  %v23 = vunpack.c.l.bf16 %v21
  %v24 = vunpack.c.l.bf16 %v22
  %25 = vadd.xlane.f32.xlu0 %v23
  %v26 = vpop.xlane.xlu0 %25
  %27 = vadd.xlane.f32.xlu0 %v24
  %v28 = vpop.xlane.xlu0 %27
  %v29 = vrcp.pop 128.0
  %v30 = vmul.f32 %v26, %v29
  %v31 = vmul.f32 %v28, %v29
  %v32 = vsub.f32 %v23, %v30
  %v33 = vsub.f32 %v24, %v31
  %v34 = vmul.f32 %v32, %v32
  %v35 = vmul.f32 %v33, %v33
  %36 = vadd.xlane.f32.xlu0 %v34
  %v37 = vpop.xlane.xlu0 %36
  %38 = vadd.xlane.f32.xlu0 %v35
  %v39 = vpop.xlane.xlu0 %38
  %v40 = vmul.f32 %v37, %v29
  %v41 = vmul.f32 %v39, %v29
  %v42 = vadd.f32 %v40, 1e-06
  %v43 = vadd.f32 %v41, 1e-06
  %v44 = vrsqrt.pop %v42
  %v45 = vrsqrt.pop %v43
  %v46 = vmul.f32 %v32, %v44
  %v47 = vmul.f32 %v33, %v45
  %v48 = vld [vmem:[%s1] sm:$0x1]
  %v50 = vlaneseq
  %v51 = vshrl.u32 %v50, 7
  %v52 = vsub.s32 0, %v51
  %v53 = vrot.slane %v48, %v52
  %v55 = vmul.f32 %v46, %v53
  %v56 = vmul.f32 %v47, %v53
  %v57 = vld [vmem:[%s2] sm:$0x1]
  %v59 = vlaneseq
  %v60 = vshrl.u32 %v59, 7
  %v61 = vsub.s32 0, %v60
  %v62 = vrot.slane %v57, %v61
  %v64 = vadd.f32 %v55, %v62
  %v65 = vadd.f32 %v56, %v62
  %v66 = vpack.c.bf16 %v65, %v64
  %v67 = vld [vmem:[%s3] sm:$0xff]
  %v68 = vld [vmem:[%s3 + $0x8] sm:$0xff]
  %v69 = vld [vmem:[%s3 + $0x10] sm:$0xff]
  %v70 = vld [vmem:[%s3 + $0x18] sm:$0xff]
  %v71 = vld [vmem:[%s3 + $0x20] sm:$0xff]
  %v72 = vld [vmem:[%s3 + $0x28] sm:$0xff]
  %v73 = vld [vmem:[%s3 + $0x30] sm:$0xff]
  %v74 = vld [vmem:[%s3 + $0x38] sm:$0xff]
  %v75 = vld [vmem:[%s3 + $0x40] sm:$0xff]
  %v76 = vld [vmem:[%s3 + $0x48] sm:$0xff]
  %v77 = vld [vmem:[%s3 + $0x50] sm:$0xff]
  %v78 = vld [vmem:[%s3 + $0x58] sm:$0xff]
  %v79 = vld [vmem:[%s3 + $0x60] sm:$0xff]
  %v80 = vld [vmem:[%s3 + $0x68] sm:$0xff]
  %v81 = vld [vmem:[%s3 + $0x70] sm:$0xff]
  %v82 = vld [vmem:[%s3 + $0x78] sm:$0xff]
  %v83 = vld [vmem:[%s3 + $0x80] sm:$0xff]
  %v84 = vld [vmem:[%s3 + $0x88] sm:$0xff]
  %v85 = vld [vmem:[%s3 + $0x90] sm:$0xff]
  %v86 = vld [vmem:[%s3 + $0x98] sm:$0xff]
  %v87 = vld [vmem:[%s3 + $0xa0] sm:$0xff]
  %v88 = vld [vmem:[%s3 + $0xa8] sm:$0xff]
  %v89 = vld [vmem:[%s3 + $0xb0] sm:$0xff]
  %v90 = vld [vmem:[%s3 + $0xb8] sm:$0xff]
  %v91 = vld [vmem:[%s3 + $0xc0] sm:$0xff]
  %v92 = vld [vmem:[%s3 + $0xc8] sm:$0xff]
  %v93 = vld [vmem:[%s3 + $0xd0] sm:$0xff]
  %v94 = vld [vmem:[%s3 + $0xd8] sm:$0xff]
  %v95 = vld [vmem:[%s3 + $0xe0] sm:$0xff]
  %v96 = vld [vmem:[%s3 + $0xe8] sm:$0xff]
  %v97 = vld [vmem:[%s3 + $0xf0] sm:$0xff]
  %v98 = vld [vmem:[%s3 + $0xf8] sm:$0xff]
  %v99 = vld [vmem:[%s4] sm:$0xf]
  %v101 = vlaneseq
  %v102 = vshrl.u32 %v101, 7
  %v103 = vsub.s32 0, %v102
  %v104 = vrot.slane %v99, %v103
  %v105 = vlaneseq
  %v106 = vshrl.u32 %v105, 7
  %v107 = vsub.s32 1, %v106
  %v108 = vrot.slane %v99, %v107
  %v109 = vlaneseq
  %v110 = vshrl.u32 %v109, 7
  %v111 = vsub.s32 2, %v110
  %v112 = vrot.slane %v99, %v111
  %v113 = vlaneseq
  %v114 = vshrl.u32 %v113, 7
  %v115 = vsub.s32 3, %v114
  %v116 = vrot.slane %v99, %v115
  %v153 = vunpack.c.l.b16 %v67
  %v154 = vunpack.c.h.b16 %v67
  %v155 = vunpack.c.l.b16 %v68
  %v156 = vunpack.c.h.b16 %v68
  %v157 = vunpack.c.l.b16 %v69
  %v158 = vunpack.c.h.b16 %v69
  %v159 = vunpack.c.l.b16 %v70
  %v160 = vunpack.c.h.b16 %v70
  %v161 = vunpack.c.l.b16 %v71
  %v162 = vunpack.c.h.b16 %v71
  %v163 = vunpack.c.l.b16 %v72
  %v164 = vunpack.c.h.b16 %v72
  %v165 = vunpack.c.l.b16 %v73
  %v166 = vunpack.c.h.b16 %v73
  %v167 = vunpack.c.l.b16 %v74
  %v168 = vunpack.c.h.b16 %v74
  %v169 = vunpack.c.l.b16 %v75
  %v170 = vunpack.c.h.b16 %v75
  %v171 = vunpack.c.l.b16 %v76
  %v172 = vunpack.c.h.b16 %v76
  %v173 = vunpack.c.l.b16 %v77
  %v174 = vunpack.c.h.b16 %v77
  %v175 = vunpack.c.l.b16 %v78
  %v176 = vunpack.c.h.b16 %v78
  %v177 = vunpack.c.l.b16 %v79
  %v178 = vunpack.c.h.b16 %v79
  %v179 = vunpack.c.l.b16 %v80
  %v180 = vunpack.c.h.b16 %v80
  %v181 = vunpack.c.l.b16 %v81
  %v182 = vunpack.c.h.b16 %v81
  %v183 = vunpack.c.l.b16 %v82
  %v184 = vunpack.c.h.b16 %v82
  %v185 = vunpack.c.l.b16 %v83
  %v186 = vunpack.c.h.b16 %v83
  %v187 = vunpack.c.l.b16 %v84
  %v188 = vunpack.c.h.b16 %v84
  %v189 = vunpack.c.l.b16 %v85
  %v190 = vunpack.c.h.b16 %v85
  %v191 = vunpack.c.l.b16 %v86
  %v192 = vunpack.c.h.b16 %v86
  %v193 = vunpack.c.l.b16 %v87
  %v194 = vunpack.c.h.b16 %v87
  %v195 = vunpack.c.l.b16 %v88
  %v196 = vunpack.c.h.b16 %v88
  %v197 = vunpack.c.l.b16 %v89
  %v198 = vunpack.c.h.b16 %v89
  %v199 = vunpack.c.l.b16 %v90
  %v200 = vunpack.c.h.b16 %v90
  %v201 = vunpack.c.l.b16 %v91
  %v202 = vunpack.c.h.b16 %v91
  %v203 = vunpack.c.l.b16 %v92
  %v204 = vunpack.c.h.b16 %v92
  %v205 = vunpack.c.l.b16 %v93
  %v206 = vunpack.c.h.b16 %v93
  %v207 = vunpack.c.l.b16 %v94
  %v208 = vunpack.c.h.b16 %v94
  %v209 = vunpack.c.l.b16 %v95
  %v210 = vunpack.c.h.b16 %v95
  %v211 = vunpack.c.l.b16 %v96
  %v212 = vunpack.c.h.b16 %v96
  %v213 = vunpack.c.l.b16 %v97
  %v214 = vunpack.c.h.b16 %v97
  %v215 = vunpack.c.l.b16 %v98
  %v216 = vunpack.c.h.b16 %v98
  %v217 = vpack.c.b16 %v157, %v153
  %v218 = vpack.c.b16 %v158, %v154
  %v219 = vpack.c.b16 %v159, %v155
  %v220 = vpack.c.b16 %v160, %v156
  %v221 = vpack.c.b16 %v165, %v161
  %v222 = vpack.c.b16 %v166, %v162
  %v223 = vpack.c.b16 %v167, %v163
  %v224 = vpack.c.b16 %v168, %v164
  %v225 = vpack.c.b16 %v173, %v169
  %v226 = vpack.c.b16 %v174, %v170
  %v227 = vpack.c.b16 %v175, %v171
  %v228 = vpack.c.b16 %v176, %v172
  %v229 = vpack.c.b16 %v181, %v177
  %v230 = vpack.c.b16 %v182, %v178
  %v231 = vpack.c.b16 %v183, %v179
  %v232 = vpack.c.b16 %v184, %v180
  %v233 = vpack.c.b16 %v189, %v185
  %v234 = vpack.c.b16 %v190, %v186
  %v235 = vpack.c.b16 %v191, %v187
  %v236 = vpack.c.b16 %v192, %v188
  %v237 = vpack.c.b16 %v197, %v193
  %v238 = vpack.c.b16 %v198, %v194
  %v239 = vpack.c.b16 %v199, %v195
  %v240 = vpack.c.b16 %v200, %v196
  %v241 = vpack.c.b16 %v205, %v201
  %v242 = vpack.c.b16 %v206, %v202
  %v243 = vpack.c.b16 %v207, %v203
  %v244 = vpack.c.b16 %v208, %v204
  %v245 = vpack.c.b16 %v213, %v209
  %v246 = vpack.c.b16 %v214, %v210
  %v247 = vpack.c.b16 %v215, %v211
  %v248 = vpack.c.b16 %v216, %v212
  %281 = vmatprep.subr.bf16.mxu0 %v246
  %282 = vmatpush1.bf16.msra.mxu0 %v245
  %283 = vmatprep.subr.bf16.mxu0 %v242
  %284 = vmatpush1.bf16.msra.mxu0 %v241
  %285 = vmatprep.subr.bf16.mxu0 %v238
  %286 = vmatpush1.bf16.msra.mxu0 %v237
  %287 = vmatprep.subr.bf16.mxu0 %v234
  %288 = vmatpush1.bf16.msra.mxu0 %v233
  %289 = vmatprep.subr.bf16.mxu0 %v230
  %290 = vmatpush1.bf16.msra.mxu0 %v229
  %291 = vmatprep.subr.bf16.mxu0 %v226
  %292 = vmatpush1.bf16.msra.mxu0 %v225
  %293 = vmatprep.subr.bf16.mxu0 %v222
  %294 = vmatpush1.bf16.msra.mxu0 %v221
  %295 = vmatprep.subr.bf16.mxu0 %v218
  %296 = vmatpush1.bf16.msra.mxu0 %v217
  %297 = vmatprep.subr.bf16.mxu0 0
  %298 = vmatpush2.bf16.msra.mxu0 0
  %299 = vmatprep.subr.bf16.mxu0 0
  %300 = vmatpush2.bf16.msra.mxu0 0
  %301 = vmatprep.subr.bf16.mxu0 0
  %302 = vmatpush2.bf16.msra.mxu0 0
  %303 = vmatprep.subr.bf16.mxu0 0
  %304 = vmatpush2.bf16.msra.mxu0 0
  %305 = vmatprep.subr.bf16.mxu0 0
  %306 = vmatpush2.bf16.msra.mxu0 0
  %307 = vmatprep.subr.bf16.mxu0 0
  %308 = vmatpush2.bf16.msra.mxu0 0
  %309 = vmatprep.subr.bf16.mxu0 0
  %310 = vmatpush2.bf16.msra.mxu0 0
  %311 = vmatprep.subr.bf16.mxu0 0
  %312 = vmatpush2.bf16.msra.mxu0 0
  %313 = vmatprep.mubr.bf16.mxu0 0
  %314 = vmatmul.mubr.bf16.gmra.mxu0 %v66
  %v315 = vpop.f32.mrf.mxu0
  %v316 = vadd.f32 %v104, %v315
  %v317 = vpop.f32.mrf.mxu0
  %v318 = vadd.f32 %v108, %v317
  %v319 = vpop.f32.mrf.mxu0
  %v320 = vadd.f32 %v104, %v319
  %v321 = vpop.f32.mrf.mxu0
  %v322 = vadd.f32 %v108, %v321
  %323 = vdwg.mxu0
  %324 = vmatprep.subr.bf16.mxu0 %v248
  %325 = vmatpush1.bf16.msra.mxu0 %v247
  %326 = vmatprep.subr.bf16.mxu0 %v244
  %327 = vmatpush1.bf16.msra.mxu0 %v243
  %328 = vmatprep.subr.bf16.mxu0 %v240
  %329 = vmatpush1.bf16.msra.mxu0 %v239
  %330 = vmatprep.subr.bf16.mxu0 %v236
  %331 = vmatpush1.bf16.msra.mxu0 %v235
  %332 = vmatprep.subr.bf16.mxu0 %v232
  %333 = vmatpush1.bf16.msra.mxu0 %v231
  %334 = vmatprep.subr.bf16.mxu0 %v228
  %335 = vmatpush1.bf16.msra.mxu0 %v227
  %336 = vmatprep.subr.bf16.mxu0 %v224
  %337 = vmatpush1.bf16.msra.mxu0 %v223
  %338 = vmatprep.subr.bf16.mxu0 %v220
  %339 = vmatpush1.bf16.msra.mxu0 %v219
  %340 = vmatprep.subr.bf16.mxu0 0
  %341 = vmatpush2.bf16.msra.mxu0 0
  %342 = vmatprep.subr.bf16.mxu0 0
  %343 = vmatpush2.bf16.msra.mxu0 0
  %344 = vmatprep.subr.bf16.mxu0 0
  %345 = vmatpush2.bf16.msra.mxu0 0
  %346 = vmatprep.subr.bf16.mxu0 0
  %347 = vmatpush2.bf16.msra.mxu0 0
  %348 = vmatprep.subr.bf16.mxu0 0
  %349 = vmatpush2.bf16.msra.mxu0 0
  %350 = vmatprep.subr.bf16.mxu0 0
  %351 = vmatpush2.bf16.msra.mxu0 0
  %352 = vmatprep.subr.bf16.mxu0 0
  %353 = vmatpush2.bf16.msra.mxu0 0
  %354 = vmatprep.subr.bf16.mxu0 0
  %355 = vmatpush2.bf16.msra.mxu0 0
  %356 = vmatprep.mubr.bf16.mxu0 0
  %357 = vmatmul.mubr.bf16.gmra.mxu0 %v66
  %v358 = vpop.f32.mrf.mxu0
  %v359 = vadd.f32 %v112, %v358
  %v360 = vpop.f32.mrf.mxu0
  %v361 = vadd.f32 %v116, %v360
  %v362 = vpop.f32.mrf.mxu0
  %v363 = vadd.f32 %v112, %v362
  %v364 = vpop.f32.mrf.mxu0
  %v365 = vadd.f32 %v116, %v364
  %366 = vdwg.mxu0
  %v367 = vmul.f32 %v316, %v316
  %v368 = vmul.f32 %v318, %v318
  %v369 = vmul.f32 %v359, %v359
  %v370 = vmul.f32 %v361, %v361
  %v371 = vmul.f32 %v320, %v320
  %v372 = vmul.f32 %v322, %v322
  %v373 = vmul.f32 %v363, %v363
  %v374 = vmul.f32 %v365, %v365
  %v375 = vmul.f32 %v316, %v367
  %v376 = vmul.f32 %v318, %v368
  %v377 = vmul.f32 %v359, %v369
  %v378 = vmul.f32 %v361, %v370
  %v379 = vmul.f32 %v320, %v371
  %v380 = vmul.f32 %v322, %v372
  %v381 = vmul.f32 %v363, %v373
  %v382 = vmul.f32 %v365, %v374
  %v383 = vmul.f32 %v375, 0.044715
  %v384 = vmul.f32 %v376, 0.044715
  %v385 = vmul.f32 %v377, 0.044715
  %v386 = vmul.f32 %v378, 0.044715
  %v387 = vmul.f32 %v379, 0.044715
  %v388 = vmul.f32 %v380, 0.044715
  %v389 = vmul.f32 %v381, 0.044715
  %v390 = vmul.f32 %v382, 0.044715
  %v391 = vadd.f32 %v316, %v383
  %v392 = vadd.f32 %v318, %v384
  %v393 = vadd.f32 %v359, %v385
  %v394 = vadd.f32 %v361, %v386
  %v395 = vadd.f32 %v320, %v387
  %v396 = vadd.f32 %v322, %v388
  %v397 = vadd.f32 %v363, %v389
  %v398 = vadd.f32 %v365, %v390
  %v399 = vmul.f32 %v391, 0.7978846
  %v400 = vmul.f32 %v392, 0.7978846
  %v401 = vmul.f32 %v393, 0.7978846
  %v402 = vmul.f32 %v394, 0.7978846
  %v403 = vmul.f32 %v395, 0.7978846
  %v404 = vmul.f32 %v396, 0.7978846
  %v405 = vmul.f32 %v397, 0.7978846
  %v406 = vmul.f32 %v398, 0.7978846
  %v407 = vtanh.pop %v399
  %v408 = vtanh.pop %v400
  %v409 = vtanh.pop %v401
  %v410 = vtanh.pop %v402
  %v411 = vtanh.pop %v403
  %v412 = vtanh.pop %v404
  %v413 = vtanh.pop %v405
  %v414 = vtanh.pop %v406
  %v415 = vadd.f32 %v407, 1.0
  %v416 = vadd.f32 %v408, 1.0
  %v417 = vadd.f32 %v409, 1.0
  %v418 = vadd.f32 %v410, 1.0
  %v419 = vadd.f32 %v411, 1.0
  %v420 = vadd.f32 %v412, 1.0
  %v421 = vadd.f32 %v413, 1.0
  %v422 = vadd.f32 %v414, 1.0
  %v423 = vmul.f32 %v415, 0.5
  %v424 = vmul.f32 %v416, 0.5
  %v425 = vmul.f32 %v417, 0.5
  %v426 = vmul.f32 %v418, 0.5
  %v427 = vmul.f32 %v419, 0.5
  %v428 = vmul.f32 %v420, 0.5
  %v429 = vmul.f32 %v421, 0.5
  %v430 = vmul.f32 %v422, 0.5
  %v431 = vmul.f32 %v316, %v423
  %v432 = vmul.f32 %v318, %v424
  %v433 = vmul.f32 %v359, %v425
  %v434 = vmul.f32 %v361, %v426
  %v435 = vmul.f32 %v320, %v427
  %v436 = vmul.f32 %v322, %v428
  %v437 = vmul.f32 %v363, %v429
  %v438 = vmul.f32 %v365, %v430
  %v439 = vpack.c.bf16 %v435, %v431
  %v440 = vpack.c.bf16 %v436, %v432
  %v441 = vpack.c.bf16 %v437, %v433
  %v442 = vpack.c.bf16 %v438, %v434
  %v447 = vunpack.c.l.b16 %v439
  %v448 = vunpack.c.l.b16 %v440
  %v449 = vunpack.c.l.b16 %v441
  %v450 = vunpack.c.l.b16 %v442
  %v451 = vunpack.c.h.b16 %v439
  %v452 = vunpack.c.h.b16 %v440
  %v453 = vunpack.c.h.b16 %v441
  %v454 = vunpack.c.h.b16 %v442
  %v455 = vpack.c.b16 %v448, %v447
  %v456 = vpack.c.b16 %v450, %v449
  %v457 = vpack.c.b16 %v452, %v451
  %v458 = vpack.c.b16 %v454, %v453
  %463 = vst [vmem:[%s5] sm:$0xff] %v455
  %464 = vst [vmem:[%s5 + $0x8] sm:$0xff] %v456
  %465 = vst [vmem:[%s5 + $0x10] sm:$0xff] %v457
  %466 = vst [vmem:[%s5 + $0x18] sm:$0xff] %v458
  // Predicated region
  $region22: #{_lambda_.17} parent=0 // pred_check
    _
  $region23: #{_lambda_.17} parent=0 // pred_check_branch
    %468 = sbr.rel (0) target = $region25
  $region24: #{_lambda_.17} parent=0 // pred_region
    _
  $region25: #{_lambda_.17} parent=0 // pred_fallthru
    _
  // Predicated region
  $region26: #{_lambda_.17} parent=0 // pred_check
    _
  $region27: #{_lambda_.17} parent=0 // pred_check_branch
    %470 = sbr.rel (0) target = $region29
  $region28: #{_lambda_.17} parent=0 // pred_region
    _
  $region29: #{_lambda_.17} parent=0 // pred_fallthru
    _

// kernel: _lambda_.25
$region0: #{_lambda_.25}
  #allocation0 [shape = 'u32[]', space=smem, size = 0x4, offset = 0x4, fixed_abs, tag = 'smem constant byte address 0x4 - core index']
  #allocation1 [shape = 'u32[144,128]{1,0:T(1,128)}', space=vmem, size = 0x12000, scoped, tag = 'internal scratch']
  %s0 = inlined_call_operand.vmem [shape: f32[2,256], index: 0, kind: input, shape index: {}]
  %s1 = inlined_call_operand.vmem [shape: bf16[256,128], index: 1, kind: input, shape index: {}]
  %s2 = inlined_call_operand.vmem [shape: f32[1,128], index: 2, kind: input, shape index: {}]
  %s3 = inlined_call_operand.hbm [shape: f32[2,128], index: 3, kind: output, shape index: {}]
  %s4 = sld [smem:[#allocation0]]
  $region22: #{_lambda_.25} parent=0
    _
  %s6 = ssub.s32 1, %s4
  %s7 = scalar_select 0, %s6, %s4
  $region1: #{_lambda_.25} parent=0
    #allocation2 [shape = 'u8[1024]{0}', space=vmem, size = 0x400, scoped, tag = 'output window, operand 0, single buffered']
    #allocation3 [shape = 's32[1]{0}', space=sflag, size = 0x4, scoped, tag = 'scoped memory for _lambda_.25']
    %8 = vsyncpa [#allocation3], 0
    // Predicated region
    $region2: #{_lambda_.25} parent=1 // pred_check
      _
    $region3: #{_lambda_.25} parent=1 // pred_check_branch
      %10 = sbr.rel (0) target = $region5
    $region4: #{_lambda_.25} parent=1 // pred_region
      _
    $region5: #{_lambda_.25} parent=1 // pred_fallthru
      _
    // Predicated region
    $region6: #{_lambda_.25} parent=1 // pred_check
      _
    $region7: #{_lambda_.25} parent=1 // pred_check_branch
      %12 = sbr.rel (0) target = $region9
    $region8: #{_lambda_.25} parent=1 // pred_region
      _
    $region9: #{_lambda_.25} parent=1 // pred_fallthru
      _
    // Predicated region
    $region10: #{_lambda_.25} parent=1 // pred_check
      _
    $region11: #{_lambda_.25} parent=1 // pred_check_branch
      %14 = sbr.rel (0) target = $region13
    $region12: #{_lambda_.25} parent=1 // pred_region
      _
    $region13: #{_lambda_.25} parent=1 // pred_fallthru
      _
    %v16 = vld [vmem:[%s0] sm:$0xf]
    %v19 = vunpack.c.l.s4 1983009808
    %v20 = vunpack.c.0.s8 %v19
    %v21 = vlaneseq
    %v22 = vshrl.u32 %v21, 7
    %v23 = vsub.s32 %v20, %v22
    %v24 = vrot.slane %v16, %v23
    %v25 = vcombine.high %v24, %v24
    %v28 = vpack.c.bf16 %v24, %v24
    %v29 = vpack.c.bf16 %v25, %v25
    %v30 = vld [vmem:[%s1] sm:$0xf]
    %v31 = vld [vmem:[%s1 + $0x4] sm:$0xf]
    %v32 = vld [vmem:[%s1 + $0x8] sm:$0xf]
    %v33 = vld [vmem:[%s1 + $0xc] sm:$0xf]
    %v34 = vld [vmem:[%s1 + $0x10] sm:$0xf]
    %v35 = vld [vmem:[%s1 + $0x14] sm:$0xf]
    %v36 = vld [vmem:[%s1 + $0x18] sm:$0xf]
    %v37 = vld [vmem:[%s1 + $0x1c] sm:$0xf]
    %v38 = vld [vmem:[%s1 + $0x20] sm:$0xf]
    %v39 = vld [vmem:[%s1 + $0x24] sm:$0xf]
    %v40 = vld [vmem:[%s1 + $0x28] sm:$0xf]
    %v41 = vld [vmem:[%s1 + $0x2c] sm:$0xf]
    %v42 = vld [vmem:[%s1 + $0x30] sm:$0xf]
    %v43 = vld [vmem:[%s1 + $0x34] sm:$0xf]
    %v44 = vld [vmem:[%s1 + $0x38] sm:$0xf]
    %v45 = vld [vmem:[%s1 + $0x3c] sm:$0xf]
    %v46 = vld [vmem:[%s1 + $0x40] sm:$0xf]
    %v47 = vld [vmem:[%s1 + $0x44] sm:$0xf]
    %v48 = vld [vmem:[%s1 + $0x48] sm:$0xf]
    %v49 = vld [vmem:[%s1 + $0x4c] sm:$0xf]
    %v50 = vld [vmem:[%s1 + $0x50] sm:$0xf]
    %v51 = vld [vmem:[%s1 + $0x54] sm:$0xf]
    %v52 = vld [vmem:[%s1 + $0x58] sm:$0xf]
    %v53 = vld [vmem:[%s1 + $0x5c] sm:$0xf]
    %v54 = vld [vmem:[%s1 + $0x60] sm:$0xf]
    %v55 = vld [vmem:[%s1 + $0x64] sm:$0xf]
    %v56 = vld [vmem:[%s1 + $0x68] sm:$0xf]
    %v57 = vld [vmem:[%s1 + $0x6c] sm:$0xf]
    %v58 = vld [vmem:[%s1 + $0x70] sm:$0xf]
    %v59 = vld [vmem:[%s1 + $0x74] sm:$0xf]
    %v60 = vld [vmem:[%s1 + $0x78] sm:$0xf]
    %v61 = vld [vmem:[%s1 + $0x7c] sm:$0xf]
    %v62 = vld [vmem:[%s2] sm:$0x1]
    %v64 = vlaneseq
    %v65 = vshrl.u32 %v64, 7
    %v66 = vsub.s32 0, %v65
    %v67 = vrot.slane %v62, %v66
    %v101 = vunpack.c.l.b16 %v30
    %v102 = vunpack.c.l.b16 %v31
    %v103 = vunpack.c.l.b16 %v32
    %v104 = vunpack.c.l.b16 %v33
    %v105 = vunpack.c.l.b16 %v34
    %v106 = vunpack.c.l.b16 %v35
    %v107 = vunpack.c.l.b16 %v36
    %v108 = vunpack.c.l.b16 %v37
    %v109 = vunpack.c.l.b16 %v38
    %v110 = vunpack.c.l.b16 %v39
    %v111 = vunpack.c.l.b16 %v40
    %v112 = vunpack.c.l.b16 %v41
    %v113 = vunpack.c.l.b16 %v42
    %v114 = vunpack.c.l.b16 %v43
    %v115 = vunpack.c.l.b16 %v44
    %v116 = vunpack.c.l.b16 %v45
    %v117 = vunpack.c.l.b16 %v46
    %v118 = vunpack.c.l.b16 %v47
    %v119 = vunpack.c.l.b16 %v48
    %v120 = vunpack.c.l.b16 %v49
    %v121 = vunpack.c.l.b16 %v50
    %v122 = vunpack.c.l.b16 %v51
    %v123 = vunpack.c.l.b16 %v52
    %v124 = vunpack.c.l.b16 %v53
    %v125 = vunpack.c.l.b16 %v54
    %v126 = vunpack.c.l.b16 %v55
    %v127 = vunpack.c.l.b16 %v56
    %v128 = vunpack.c.l.b16 %v57
    %v129 = vunpack.c.l.b16 %v58
    %v130 = vunpack.c.l.b16 %v59
    %v131 = vunpack.c.l.b16 %v60
    %v132 = vunpack.c.l.b16 %v61
    %v133 = vpack.c.b16 %v102, %v101
    %v134 = vpack.c.b16 %v104, %v103
    %v135 = vpack.c.b16 %v106, %v105
    %v136 = vpack.c.b16 %v108, %v107
    %v137 = vpack.c.b16 %v110, %v109
    %v138 = vpack.c.b16 %v112, %v111
    %v139 = vpack.c.b16 %v114, %v113
    %v140 = vpack.c.b16 %v116, %v115
    %v141 = vpack.c.b16 %v118, %v117
    %v142 = vpack.c.b16 %v120, %v119
    %v143 = vpack.c.b16 %v122, %v121
    %v144 = vpack.c.b16 %v124, %v123
    %v145 = vpack.c.b16 %v126, %v125
    %v146 = vpack.c.b16 %v128, %v127
    %v147 = vpack.c.b16 %v130, %v129
    %v148 = vpack.c.b16 %v132, %v131
    %165 = vmatprep.subr.bf16.mxu0 0
    %166 = vmatpush1.bf16.msra.mxu0 %v140
    %167 = vmatprep.subr.bf16.mxu0 0
    %168 = vmatpush1.bf16.msra.mxu0 %v139
    %169 = vmatprep.subr.bf16.mxu0 0
    %170 = vmatpush1.bf16.msra.mxu0 %v138
    %171 = vmatprep.subr.bf16.mxu0 0
    %172 = vmatpush1.bf16.msra.mxu0 %v137
    %173 = vmatprep.subr.bf16.mxu0 0
    %174 = vmatpush1.bf16.msra.mxu0 %v136
    %175 = vmatprep.subr.bf16.mxu0 0
    %176 = vmatpush1.bf16.msra.mxu0 %v135
    %177 = vmatprep.subr.bf16.mxu0 0
    %178 = vmatpush1.bf16.msra.mxu0 %v134
    %179 = vmatprep.subr.bf16.mxu0 0
    %180 = vmatpush1.bf16.msra.mxu0 %v133
    %181 = vmatprep.subr.bf16.mxu0 0
    %182 = vmatpush2.bf16.msra.mxu0 %v148
    %183 = vmatprep.subr.bf16.mxu0 0
    %184 = vmatpush2.bf16.msra.mxu0 %v147
    %185 = vmatprep.subr.bf16.mxu0 0
    %186 = vmatpush2.bf16.msra.mxu0 %v146
    %187 = vmatprep.subr.bf16.mxu0 0
    %188 = vmatpush2.bf16.msra.mxu0 %v145
    %189 = vmatprep.subr.bf16.mxu0 0
    %190 = vmatpush2.bf16.msra.mxu0 %v144
    %191 = vmatprep.subr.bf16.mxu0 0
    %192 = vmatpush2.bf16.msra.mxu0 %v143
    %193 = vmatprep.subr.bf16.mxu0 0
    %194 = vmatpush2.bf16.msra.mxu0 %v142
    %195 = vmatprep.subr.bf16.mxu0 0
    %196 = vmatpush2.bf16.msra.mxu0 %v141
    %197 = vmatprep.mubr.bf16.mxu0 %v29
    %198 = vmatmul.mubr.bf16.gmra.mxu0 %v28
    %v199 = vpop.f32.mrf.mxu0
    %v200 = vadd.f32 %v67, %v199
    %v201 = vpop.f32.mrf.mxu0
    %v202 = vpop.f32.mrf.mxu0
    %v203 = vpop.f32.mrf.mxu0
    %204 = vdwg.mxu0
    %205 = vst [vmem:[#allocation2] sm:$0x3] %v200
    // Predicated region
    $region14: #{_lambda_.25} parent=1 // pred_check
      _
    $region15: #{_lambda_.25} parent=1 // pred_check_branch
      %207 = sbr.rel (0) target = $region17
    $region16: #{_lambda_.25} parent=1 // pred_region
      %s209 = ssub.s32 32, 32
      %210 = vsyncadd [#allocation3], %s209
      %s212 = sshll.u32 [#allocation2], 4
      %s213 = int_to_ptr.vmem [resolvable:$true] %s212
      %215 = dma.vmem_to_hbm [thread:$0]  %s213, 32, %s3, [#allocation3]
    $region17: #{_lambda_.25} parent=1 // pred_fallthru
      _
    // Predicated region
    $region18: #{_lambda_.25} parent=1 // pred_check
      _
    $region19: #{_lambda_.25} parent=1 // pred_check_branch
      %217 = sbr.rel (0) target = $region21
    $region20: #{_lambda_.25} parent=1 // pred_region
      %218 = dma.done [#allocation3], 32
    $region21: #{_lambda_.25} parent=1 // pred_fallthru
      _
    %219 = vsyncpa [#allocation3], 1

// kernel: _lambda_.18
$region0: #{_lambda_.18}
  #allocation0 [shape = 'u32[]', space=smem, size = 0x4, offset = 0x4, fixed_abs, tag = 'smem constant byte address 0x4 - core index']
  #allocation1 [shape = 'u32[144,128]{1,0:T(1,128)}', space=vmem, size = 0x12000, scoped, tag = 'internal scratch']
  %s0 = inlined_call_operand.vmem [shape: bf16[16,512], index: 0, kind: input, shape index: {}]
  %s1 = inlined_call_operand.vmem [shape: bf16[512,128], index: 1, kind: input, shape index: {}]
  %s2 = inlined_call_operand.vmem [shape: f32[1,128], index: 2, kind: input, shape index: {}]
  %s3 = inlined_call_operand.vmem [shape: f32[1,128], index: 3, kind: input, shape index: {}]
  %s4 = inlined_call_operand.vmem [shape: bf16[16,128], index: 4, kind: input, shape index: {}, may-alias: {4,5}]
  %s5 = inlined_call_operand.vmem [shape: bf16[16,128], index: 5, kind: output, shape index: {}, may-alias: {4,5}]
  %s6 = sld [smem:[#allocation0]]
  $region30: #{_lambda_.18} parent=0
    _
  %s8 = ssub.s32 1, %s6
  %s9 = scalar_select 0, %s8, %s6
  // Predicated region
  $region2: #{_lambda_.18} parent=0 // pred_check
    _
  $region3: #{_lambda_.18} parent=0 // pred_check_branch
    %11 = sbr.rel (0) target = $region5
  $region4: #{_lambda_.18} parent=0 // pred_region
    _
  $region5: #{_lambda_.18} parent=0 // pred_fallthru
    _
  // Predicated region
  $region6: #{_lambda_.18} parent=0 // pred_check
    _
  $region7: #{_lambda_.18} parent=0 // pred_check_branch
    %13 = sbr.rel (0) target = $region9
  $region8: #{_lambda_.18} parent=0 // pred_region
    _
  $region9: #{_lambda_.18} parent=0 // pred_fallthru
    _
  // Predicated region
  $region10: #{_lambda_.18} parent=0 // pred_check
    _
  $region11: #{_lambda_.18} parent=0 // pred_check_branch
    %15 = sbr.rel (0) target = $region13
  $region12: #{_lambda_.18} parent=0 // pred_region
    _
  $region13: #{_lambda_.18} parent=0 // pred_fallthru
    _
  // Predicated region
  $region14: #{_lambda_.18} parent=0 // pred_check
    _
  $region15: #{_lambda_.18} parent=0 // pred_check_branch
    %17 = sbr.rel (0) target = $region17
  $region16: #{_lambda_.18} parent=0 // pred_region
    _
  $region17: #{_lambda_.18} parent=0 // pred_fallthru
    _
  // Predicated region
  $region18: #{_lambda_.18} parent=0 // pred_check
    _
  $region19: #{_lambda_.18} parent=0 // pred_check_branch
    %19 = sbr.rel (0) target = $region21
  $region20: #{_lambda_.18} parent=0 // pred_region
    _
  $region21: #{_lambda_.18} parent=0 // pred_fallthru
    _
  %v21 = vld [vmem:[%s0] sm:$0xff]
  %v22 = vld [vmem:[%s0 + $0x8] sm:$0xff]
  %v23 = vld [vmem:[%s0 + $0x10] sm:$0xff]
  %v24 = vld [vmem:[%s0 + $0x18] sm:$0xff]
  %v25 = vld [vmem:[%s1] sm:$0xf]
  %v26 = vld [vmem:[%s1 + $0x4] sm:$0xf]
  %v27 = vld [vmem:[%s1 + $0x8] sm:$0xf]
  %v28 = vld [vmem:[%s1 + $0xc] sm:$0xf]
  %v29 = vld [vmem:[%s1 + $0x10] sm:$0xf]
  %v30 = vld [vmem:[%s1 + $0x14] sm:$0xf]
  %v31 = vld [vmem:[%s1 + $0x18] sm:$0xf]
  %v32 = vld [vmem:[%s1 + $0x1c] sm:$0xf]
  %v33 = vld [vmem:[%s1 + $0x20] sm:$0xf]
  %v34 = vld [vmem:[%s1 + $0x24] sm:$0xf]
  %v35 = vld [vmem:[%s1 + $0x28] sm:$0xf]
  %v36 = vld [vmem:[%s1 + $0x2c] sm:$0xf]
  %v37 = vld [vmem:[%s1 + $0x30] sm:$0xf]
  %v38 = vld [vmem:[%s1 + $0x34] sm:$0xf]
  %v39 = vld [vmem:[%s1 + $0x38] sm:$0xf]
  %v40 = vld [vmem:[%s1 + $0x3c] sm:$0xf]
  %v41 = vld [vmem:[%s1 + $0x40] sm:$0xf]
  %v42 = vld [vmem:[%s1 + $0x44] sm:$0xf]
  %v43 = vld [vmem:[%s1 + $0x48] sm:$0xf]
  %v44 = vld [vmem:[%s1 + $0x4c] sm:$0xf]
  %v45 = vld [vmem:[%s1 + $0x50] sm:$0xf]
  %v46 = vld [vmem:[%s1 + $0x54] sm:$0xf]
  %v47 = vld [vmem:[%s1 + $0x58] sm:$0xf]
  %v48 = vld [vmem:[%s1 + $0x5c] sm:$0xf]
  %v49 = vld [vmem:[%s1 + $0x60] sm:$0xf]
  %v50 = vld [vmem:[%s1 + $0x64] sm:$0xf]
  %v51 = vld [vmem:[%s1 + $0x68] sm:$0xf]
  %v52 = vld [vmem:[%s1 + $0x6c] sm:$0xf]
  %v53 = vld [vmem:[%s1 + $0x70] sm:$0xf]
  %v54 = vld [vmem:[%s1 + $0x74] sm:$0xf]
  %v55 = vld [vmem:[%s1 + $0x78] sm:$0xf]
  %v56 = vld [vmem:[%s1 + $0x7c] sm:$0xf]
  %v57 = vld [vmem:[%s1 + $0x80] sm:$0xf]
  %v58 = vld [vmem:[%s1 + $0x84] sm:$0xf]
  %v59 = vld [vmem:[%s1 + $0x88] sm:$0xf]
  %v60 = vld [vmem:[%s1 + $0x8c] sm:$0xf]
  %v61 = vld [vmem:[%s1 + $0x90] sm:$0xf]
  %v62 = vld [vmem:[%s1 + $0x94] sm:$0xf]
  %v63 = vld [vmem:[%s1 + $0x98] sm:$0xf]
  %v64 = vld [vmem:[%s1 + $0x9c] sm:$0xf]
  %v65 = vld [vmem:[%s1 + $0xa0] sm:$0xf]
  %v66 = vld [vmem:[%s1 + $0xa4] sm:$0xf]
  %v67 = vld [vmem:[%s1 + $0xa8] sm:$0xf]
  %v68 = vld [vmem:[%s1 + $0xac] sm:$0xf]
  %v69 = vld [vmem:[%s1 + $0xb0] sm:$0xf]
  %v70 = vld [vmem:[%s1 + $0xb4] sm:$0xf]
  %v71 = vld [vmem:[%s1 + $0xb8] sm:$0xf]
  %v72 = vld [vmem:[%s1 + $0xbc] sm:$0xf]
  %v73 = vld [vmem:[%s1 + $0xc0] sm:$0xf]
  %v74 = vld [vmem:[%s1 + $0xc4] sm:$0xf]
  %v75 = vld [vmem:[%s1 + $0xc8] sm:$0xf]
  %v76 = vld [vmem:[%s1 + $0xcc] sm:$0xf]
  %v77 = vld [vmem:[%s1 + $0xd0] sm:$0xf]
  %v78 = vld [vmem:[%s1 + $0xd4] sm:$0xf]
  %v79 = vld [vmem:[%s1 + $0xd8] sm:$0xf]
  %v80 = vld [vmem:[%s1 + $0xdc] sm:$0xf]
  %v81 = vld [vmem:[%s1 + $0xe0] sm:$0xf]
  %v82 = vld [vmem:[%s1 + $0xe4] sm:$0xf]
  %v83 = vld [vmem:[%s1 + $0xe8] sm:$0xf]
  %v84 = vld [vmem:[%s1 + $0xec] sm:$0xf]
  %v85 = vld [vmem:[%s1 + $0xf0] sm:$0xf]
  %v86 = vld [vmem:[%s1 + $0xf4] sm:$0xf]
  %v87 = vld [vmem:[%s1 + $0xf8] sm:$0xf]
  %v88 = vld [vmem:[%s1 + $0xfc] sm:$0xf]
  %v89 = vld [vmem:[%s2] sm:$0x1]
  %v91 = vlaneseq
  %v92 = vshrl.u32 %v91, 7
  %v93 = vsub.s32 0, %v92
  %v94 = vrot.slane %v89, %v93
  %v100 = vunpack.c.l.b16 %v21
  %v101 = vunpack.c.h.b16 %v21
  %v102 = vunpack.c.l.b16 %v22
  %v103 = vunpack.c.h.b16 %v22
  %v104 = vunpack.c.l.b16 %v23
  %v105 = vunpack.c.h.b16 %v23
  %v106 = vunpack.c.l.b16 %v24
  %v107 = vunpack.c.h.b16 %v24
  %v108 = vpack.c.b16 %v104, %v100
  %v109 = vpack.c.b16 %v105, %v101
  %v110 = vpack.c.b16 %v106, %v102
  %v111 = vpack.c.b16 %v107, %v103
  %v180 = vunpack.c.l.b16 %v25
  %v181 = vunpack.c.l.b16 %v26
  %v182 = vunpack.c.l.b16 %v27
  %v183 = vunpack.c.l.b16 %v28
  %v184 = vunpack.c.l.b16 %v29
  %v185 = vunpack.c.l.b16 %v30
  %v186 = vunpack.c.l.b16 %v31
  %v187 = vunpack.c.l.b16 %v32
  %v188 = vunpack.c.l.b16 %v33
  %v189 = vunpack.c.l.b16 %v34
  %v190 = vunpack.c.l.b16 %v35
  %v191 = vunpack.c.l.b16 %v36
  %v192 = vunpack.c.l.b16 %v37
  %v193 = vunpack.c.l.b16 %v38
  %v194 = vunpack.c.l.b16 %v39
  %v195 = vunpack.c.l.b16 %v40
  %v196 = vunpack.c.l.b16 %v41
  %v197 = vunpack.c.l.b16 %v42
  %v198 = vunpack.c.l.b16 %v43
  %v199 = vunpack.c.l.b16 %v44
  %v200 = vunpack.c.l.b16 %v45
  %v201 = vunpack.c.l.b16 %v46
  %v202 = vunpack.c.l.b16 %v47
  %v203 = vunpack.c.l.b16 %v48
  %v204 = vunpack.c.l.b16 %v49
  %v205 = vunpack.c.l.b16 %v50
  %v206 = vunpack.c.l.b16 %v51
  %v207 = vunpack.c.l.b16 %v52
  %v208 = vunpack.c.l.b16 %v53
  %v209 = vunpack.c.l.b16 %v54
  %v210 = vunpack.c.l.b16 %v55
  %v211 = vunpack.c.l.b16 %v56
  %v212 = vunpack.c.l.b16 %v57
  %v213 = vunpack.c.l.b16 %v58
  %v214 = vunpack.c.l.b16 %v59
  %v215 = vunpack.c.l.b16 %v60
  %v216 = vunpack.c.l.b16 %v61
  %v217 = vunpack.c.l.b16 %v62
  %v218 = vunpack.c.l.b16 %v63
  %v219 = vunpack.c.l.b16 %v64
  %v220 = vunpack.c.l.b16 %v65
  %v221 = vunpack.c.l.b16 %v66
  %v222 = vunpack.c.l.b16 %v67
  %v223 = vunpack.c.l.b16 %v68
  %v224 = vunpack.c.l.b16 %v69
  %v225 = vunpack.c.l.b16 %v70
  %v226 = vunpack.c.l.b16 %v71
  %v227 = vunpack.c.l.b16 %v72
  %v228 = vunpack.c.l.b16 %v73
  %v229 = vunpack.c.l.b16 %v74
  %v230 = vunpack.c.l.b16 %v75
  %v231 = vunpack.c.l.b16 %v76
  %v232 = vunpack.c.l.b16 %v77
  %v233 = vunpack.c.l.b16 %v78
  %v234 = vunpack.c.l.b16 %v79
  %v235 = vunpack.c.l.b16 %v80
  %v236 = vunpack.c.l.b16 %v81
  %v237 = vunpack.c.l.b16 %v82
  %v238 = vunpack.c.l.b16 %v83
  %v239 = vunpack.c.l.b16 %v84
  %v240 = vunpack.c.l.b16 %v85
  %v241 = vunpack.c.l.b16 %v86
  %v242 = vunpack.c.l.b16 %v87
  %v243 = vunpack.c.l.b16 %v88
  %v244 = vpack.c.b16 %v181, %v180
  %v245 = vpack.c.b16 %v183, %v182
  %v246 = vpack.c.b16 %v185, %v184
  %v247 = vpack.c.b16 %v187, %v186
  %v248 = vpack.c.b16 %v189, %v188
  %v249 = vpack.c.b16 %v191, %v190
  %v250 = vpack.c.b16 %v193, %v192
  %v251 = vpack.c.b16 %v195, %v194
  %v252 = vpack.c.b16 %v197, %v196
  %v253 = vpack.c.b16 %v199, %v198
  %v254 = vpack.c.b16 %v201, %v200
  %v255 = vpack.c.b16 %v203, %v202
  %v256 = vpack.c.b16 %v205, %v204
  %v257 = vpack.c.b16 %v207, %v206
  %v258 = vpack.c.b16 %v209, %v208
  %v259 = vpack.c.b16 %v211, %v210
  %v260 = vpack.c.b16 %v213, %v212
  %v261 = vpack.c.b16 %v215, %v214
  %v262 = vpack.c.b16 %v217, %v216
  %v263 = vpack.c.b16 %v219, %v218
  %v264 = vpack.c.b16 %v221, %v220
  %v265 = vpack.c.b16 %v223, %v222
  %v266 = vpack.c.b16 %v225, %v224
  %v267 = vpack.c.b16 %v227, %v226
  %v268 = vpack.c.b16 %v229, %v228
  %v269 = vpack.c.b16 %v231, %v230
  %v270 = vpack.c.b16 %v233, %v232
  %v271 = vpack.c.b16 %v235, %v234
  %v272 = vpack.c.b16 %v237, %v236
  %v273 = vpack.c.b16 %v239, %v238
  %v274 = vpack.c.b16 %v241, %v240
  %v275 = vpack.c.b16 %v243, %v242
  %308 = vmatprep.subr.bf16.mxu0 0
  %309 = vmatpush1.bf16.msra.mxu0 %v251
  %310 = vmatprep.subr.bf16.mxu0 0
  %311 = vmatpush1.bf16.msra.mxu0 %v250
  %312 = vmatprep.subr.bf16.mxu0 0
  %313 = vmatpush1.bf16.msra.mxu0 %v249
  %314 = vmatprep.subr.bf16.mxu0 0
  %315 = vmatpush1.bf16.msra.mxu0 %v248
  %316 = vmatprep.subr.bf16.mxu0 0
  %317 = vmatpush1.bf16.msra.mxu0 %v247
  %318 = vmatprep.subr.bf16.mxu0 0
  %319 = vmatpush1.bf16.msra.mxu0 %v246
  %320 = vmatprep.subr.bf16.mxu0 0
  %321 = vmatpush1.bf16.msra.mxu0 %v245
  %322 = vmatprep.subr.bf16.mxu0 0
  %323 = vmatpush1.bf16.msra.mxu0 %v244
  %324 = vmatprep.subr.bf16.mxu0 0
  %325 = vmatpush2.bf16.msra.mxu0 %v259
  %326 = vmatprep.subr.bf16.mxu0 0
  %327 = vmatpush2.bf16.msra.mxu0 %v258
  %328 = vmatprep.subr.bf16.mxu0 0
  %329 = vmatpush2.bf16.msra.mxu0 %v257
  %330 = vmatprep.subr.bf16.mxu0 0
  %331 = vmatpush2.bf16.msra.mxu0 %v256
  %332 = vmatprep.subr.bf16.mxu0 0
  %333 = vmatpush2.bf16.msra.mxu0 %v255
  %334 = vmatprep.subr.bf16.mxu0 0
  %335 = vmatpush2.bf16.msra.mxu0 %v254
  %336 = vmatprep.subr.bf16.mxu0 0
  %337 = vmatpush2.bf16.msra.mxu0 %v253
  %338 = vmatprep.subr.bf16.mxu0 0
  %339 = vmatpush2.bf16.msra.mxu0 %v252
  %340 = vmatprep.mubr.bf16.mxu0 %v109
  %341 = vmatmul.mubr.bf16.gmra.mxu0 %v108
  %v342 = vpop.f32.mrf.mxu0
  %v343 = vadd.f32 %v94, %v342
  %v344 = vpop.f32.mrf.mxu0
  %v345 = vpop.f32.mrf.mxu0
  %v346 = vadd.f32 %v94, %v345
  %v347 = vpop.f32.mrf.mxu0
  %348 = vdwg.mxu0
  %349 = vmatprep.subr.bf16.mxu0 0
  %350 = vmatpush1.bf16.msra.mxu0 %v267
  %351 = vmatprep.subr.bf16.mxu0 0
  %352 = vmatpush1.bf16.msra.mxu0 %v266
  %353 = vmatprep.subr.bf16.mxu0 0
  %354 = vmatpush1.bf16.msra.mxu0 %v265
  %355 = vmatprep.subr.bf16.mxu0 0
  %356 = vmatpush1.bf16.msra.mxu0 %v264
  %357 = vmatprep.subr.bf16.mxu0 0
  %358 = vmatpush1.bf16.msra.mxu0 %v263
  %359 = vmatprep.subr.bf16.mxu0 0
  %360 = vmatpush1.bf16.msra.mxu0 %v262
  %361 = vmatprep.subr.bf16.mxu0 0
  %362 = vmatpush1.bf16.msra.mxu0 %v261
  %363 = vmatprep.subr.bf16.mxu0 0
  %364 = vmatpush1.bf16.msra.mxu0 %v260
  %365 = vmatprep.subr.bf16.mxu0 0
  %366 = vmatpush2.bf16.msra.mxu0 %v275
  %367 = vmatprep.subr.bf16.mxu0 0
  %368 = vmatpush2.bf16.msra.mxu0 %v274
  %369 = vmatprep.subr.bf16.mxu0 0
  %370 = vmatpush2.bf16.msra.mxu0 %v273
  %371 = vmatprep.subr.bf16.mxu0 0
  %372 = vmatpush2.bf16.msra.mxu0 %v272
  %373 = vmatprep.subr.bf16.mxu0 0
  %374 = vmatpush2.bf16.msra.mxu0 %v271
  %375 = vmatprep.subr.bf16.mxu0 0
  %376 = vmatpush2.bf16.msra.mxu0 %v270
  %377 = vmatprep.subr.bf16.mxu0 0
  %378 = vmatpush2.bf16.msra.mxu0 %v269
  %379 = vmatprep.subr.bf16.mxu0 0
  %380 = vmatpush2.bf16.msra.mxu0 %v268
  %381 = vmatprep.mubr.bf16.mxu0 %v111
  %382 = vmatmul.mubr.bf16.gmra.mxu0 %v110
  %v383 = vpop.f32.mrf.mxu0
  %v384 = vadd.f32 %v343, %v383
  %v385 = vpop.f32.mrf.mxu0
  %v386 = vpop.f32.mrf.mxu0
  %v387 = vadd.f32 %v346, %v386
  %v388 = vpop.f32.mrf.mxu0
  %389 = vdwg.mxu0
  %v390 = vld [vmem:[%s4] sm:$0xf]
  %v391 = vld [vmem:[%s4 + $0x4] sm:$0xf]
  %v392 = vunpack.c.l.bf16 %v390
  %v393 = vunpack.c.l.bf16 %v391
  %v394 = vld [vmem:[%s3] sm:$0x1]
  %v396 = vlaneseq
  %v397 = vshrl.u32 %v396, 7
  %v398 = vsub.s32 0, %v397
  %v399 = vrot.slane %v394, %v398
  %v401 = vmul.f32 %v384, %v399
  %v402 = vmul.f32 %v387, %v399
  %v403 = vadd.f32 %v392, %v401
  %v404 = vadd.f32 %v393, %v402
  %v405 = vpack.c.bf16 %v404, %v403
  %v407 = vunpack.c.l.b16 %v405
  %v408 = vunpack.c.h.b16 %v405
  %v409 = vpack.c.b16 %v407, %v407
  %v410 = vpack.c.b16 %v408, %v408
  %413 = vst [vmem:[%s5] sm:$0xf] %v409
  %414 = vst [vmem:[%s5 + $0x4] sm:$0xf] %v410
  // Predicated region
  $region22: #{_lambda_.18} parent=0 // pred_check
    _
  $region23: #{_lambda_.18} parent=0 // pred_check_branch
    %416 = sbr.rel (0) target = $region25
  $region24: #{_lambda_.18} parent=0 // pred_region
    _
  $region25: #{_lambda_.18} parent=0 // pred_fallthru
    _
  // Predicated region
  $region26: #{_lambda_.18} parent=0 // pred_check
    _
  $region27: #{_lambda_.18} parent=0 // pred_check_branch
    %418 = sbr.rel (0) target = $region29
  $region28: #{_lambda_.18} parent=0 // pred_region
    _
  $region29: #{_lambda_.18} parent=0 // pred_fallthru
    _

</llo_original>
